<compile_context>
chip_gen: v7x
topology: tpu7x:2x2x1
jax: 0.10.0
libtpu: 0.0.40
codegen_flags: <defaults>
</compile_context>

<pallas_src>
import functools

import jax
import jax.numpy as jnp
from jax.experimental import pallas as pl
from jax.experimental.pallas import tpu as pltpu

KSIZE = 7
PAD = (KSIZE - 1) // 2


def _spatial_gate_kernel(w_ref, b_ref, x_ref, o_ref, pad_ref, *, H, W):
    # w_ref  : SMEM (2*7*7,)  conv weight, flattened [in_c, kh, kw] (OIHW order)
    # b_ref  : SMEM (1,)      conv bias
    # x_ref  : VMEM (1, C, H*W)  lane-dense activation block (one batch element)
    # o_ref  : VMEM (1, C, H*W)
    # pad_ref: VMEM scratch (2, H+2*PAD, W+2*PAD) zero-haloed pooled maps
    xf = x_ref[0].astype(jnp.float32)                  # (C, HW), lane-dense

    # ---- channel pooling, lane-dense over the full H*W lane axis ----------
    mx = jnp.max(xf, axis=0, keepdims=True)            # (1, HW)  channel max
    mn = jnp.mean(xf, axis=0, keepdims=True)           # (1, HW)  channel mean

    # ---- re-materialize the two small (H, W) pooled maps into the scratch --
    # (only 2*H*W elements; the halo rows/cols stay zero = conv padding).
    pad_ref[...] = jnp.zeros_like(pad_ref)
    cols = pl.ds(PAD, W)
    for h in range(H):
        row = pl.ds(PAD + h, 1)
        pad_ref[0, row, cols] = mx[:, h * W:(h + 1) * W]
        pad_ref[1, row, cols] = mn[:, h * W:(h + 1) * W]

    # ---- 7x7 conv: 98 taps read as static windows of the padded scratch ----
    # Ref-window loads instead of concatenate/value-slice copies; 4 partial
    # accumulators break the serial add chain so the VALU slots stay busy.
    accs = [jnp.zeros((H, W), jnp.float32) for _ in range(4)]
    t = 0
    for c in range(2):
        for dy in range(KSIZE):
            rows = pl.ds(dy, H)
            for dx in range(KSIZE):
                w = w_ref[c * KSIZE * KSIZE + dy * KSIZE + dx]
                accs[t % 4] = accs[t % 4] + w * pad_ref[c, rows, pl.ds(dx, W)]
                t += 1
    conv = (accs[0] + accs[1]) + (accs[2] + accs[3]) + b_ref[0]
    scale2d = jax.nn.sigmoid(conv)                     # (H, W)

    # ---- flatten the tiny gate back to lane-dense (1, HW) and apply --------
    scale = jnp.concatenate([scale2d[h:h + 1, :] for h in range(H)], axis=1)
    o_ref[0] = (xf * scale).astype(o_ref.dtype)        # unmasked lane-dense store


def spatial_gate(x, weight, bias):
    """x: (N, C, H, W); weight: (1, 2, 7, 7); bias: (1,)."""
    N, C, H, W = x.shape
    HW = H * W
    x2d = x.reshape(N, C, HW)                          # lane-dense kernel layout

    w_flat = weight.reshape(-1).astype(jnp.float32)    # (2*7*7,), [in_c, kh, kw]
    b = bias.reshape(1).astype(jnp.float32)

    # Explicit VMEM budget: in + out blocks, double-buffered, plus the small
    # pooled-map scratch.  Clamp so the same setting is valid on v5e/v6e
    # (128 MiB physical, 16/32 MiB scoped default) and v7x (64 MiB physical).
    itemsize = jnp.dtype(x.dtype).itemsize
    vmem_est = 4 * C * HW * itemsize                   # 2 bufs x (in + out)
    vmem_est += 4 * 2 * (H + 2 * PAD) * (W + 2 * PAD)  # pooled-map scratch
    vmem_est += 8 << 20                                # headroom for temporaries
    vmem_limit = int(min(max(vmem_est, 32 << 20), 60 << 20))
    # NOTE: activations whose per-batch block approaches the 60 MiB cap would
    # need a halo-tiled H-band grid axis; not required at these sizes.

    kernel = functools.partial(_spatial_gate_kernel, H=H, W=W)
    out2d = pl.pallas_call(
        kernel,
        out_shape=jax.ShapeDtypeStruct((N, C, HW), x.dtype),
        grid_spec=pltpu.PrefetchScalarGridSpec(
            num_scalar_prefetch=0,
            grid=(N,),
            in_specs=[
                pl.BlockSpec(memory_space=pltpu.MemorySpace.SMEM),   # conv weight
                pl.BlockSpec(memory_space=pltpu.MemorySpace.SMEM),   # conv bias
                pl.BlockSpec((1, C, HW), lambda n: (n, 0, 0)),       # x, lane-dense
            ],
            out_specs=pl.BlockSpec((1, C, HW), lambda n: (n, 0, 0)),
            scratch_shapes=[
                pltpu.VMEM((2, H + 2 * PAD, W + 2 * PAD), jnp.float32),
            ],
        ),
        compiler_params=pltpu.CompilerParams(
            dimension_semantics=("parallel",),
            vmem_limit_bytes=vmem_limit,
        ),
    )(w_flat, b, x2d)
    return out2d.reshape(N, C, H, W)


def spatial_gate_ref(x, weight, bias):
    """Plain-JAX reference (mirrors the PyTorch forward)."""
    pooled = jnp.concatenate(
        [jnp.max(x, axis=1, keepdims=True), jnp.mean(x, axis=1, keepdims=True)],
        axis=1)                                                     # (N, 2, H, W)
    conv = jax.lax.conv_general_dilated(
        pooled, weight, window_strides=(1, 1),
        padding=[(PAD, PAD), (PAD, PAD)],
        dimension_numbers=("NCHW", "OIHW", "NCHW"))
    conv = conv + bias[None, :, None, None]                         # (N, 1, H, W)
    return x * jax.nn.sigmoid(conv)


if __name__ == "__main__":
    key = jax.random.PRNGKey(0)
    kx, kw, kb = jax.random.split(key, 3)

    N, C, H, W = 2, 4, 16, 16
    x = jax.random.normal(kx, (N, C, H, W), dtype=jnp.float32)

    # Deterministic synthetic Conv2d(2, 1, k=7) parameters (fan_in = 2*7*7).
    fan_in = 2 * KSIZE * KSIZE
    bound = 1.0 / (fan_in ** 0.5)
    weight = jax.random.uniform(kw, (1, 2, KSIZE, KSIZE),
                                minval=-bound, maxval=bound, dtype=jnp.float32)
    bias = jax.random.uniform(kb, (1,), minval=-bound, maxval=bound,
                              dtype=jnp.float32)

    out = spatial_gate(x, weight, bias)
    out = jax.block_until_ready(out)

    ref = spatial_gate_ref(x, weight, bias)
    assert out.shape == (N, C, H, W)
    assert jnp.allclose(out, ref, atol=1e-4, rtol=1e-4), "mismatch vs reference"

    print("KERNEL_OK")
</pallas_src>

<mosaic_0001>
module attributes {stable_mosaic.version = 11 : i64} {
  func.func @_spatial_gate_kernel(%arg0: i32, %arg1: memref<98xf32, #tpu.memory_space<smem>>, %arg2: memref<1xf32, #tpu.memory_space<smem>>, %arg3: memref<1x4x256xf32, #tpu.memory_space<vmem>>, %arg4: memref<1x4x256xf32, #tpu.memory_space<vmem>>, %arg5: memref<2x22x22xf32, #tpu.memory_space<vmem>>) attributes {dimension_semantics = [#tpu.dimension_semantics<parallel>], iteration_bounds = array<i64: 2>, scalar_prefetch = 0 : i64, scratch_operands = 1 : i64, tpu.core_type = #tpu.core_type<tc>, window_params = [{transform_indices = @transform_0, window_bounds = array<i64: 98>}, {transform_indices = @transform_1, window_bounds = array<i64: 1>}, {transform_indices = @transform_2, window_bounds = array<i64: 1, 4, 256>}, {transform_indices = @transform_3, window_bounds = array<i64: 1, 4, 256>}]} {
    %c0 = arith.constant 0 : index
    %c0_0 = arith.constant 0 : index
    %c0_1 = arith.constant 0 : index
    %0 = vector.load %arg3[%c0, %c0_0, %c0_1] : memref<1x4x256xf32, #tpu.memory_space<vmem>>, vector<1x4x256xf32>
    %1 = vector.shape_cast %0 : vector<1x4x256xf32> to vector<4x256xf32>
    %cst = arith.constant dense<0xFF800000> : vector<256xf32>
    %2 = vector.multi_reduction <maximumf>, %1, %cst [0] : vector<4x256xf32> to vector<256xf32>
    %3 = vector.shape_cast %2 : vector<256xf32> to vector<1x256xf32>
    %cst_2 = arith.constant dense<0.000000e+00> : vector<256xf32>
    %4 = vector.multi_reduction <add>, %1, %cst_2 [0] : vector<4x256xf32> to vector<256xf32>
    %5 = vector.shape_cast %4 : vector<256xf32> to vector<1x256xf32>
    %cst_3 = arith.constant 4.000000e+00 : f32
    %6 = vector.broadcast %cst_3 : f32 to vector<1x256xf32>
    %7 = arith.divf %5, %6 : vector<1x256xf32>
    %cst_4 = arith.constant 0.000000e+00 : f32
    %8 = vector.broadcast %cst_4 : f32 to vector<2x22x22xf32>
    %c0_5 = arith.constant 0 : index
    %c0_6 = arith.constant 0 : index
    %c0_7 = arith.constant 0 : index
    %9 = vector.load %arg5[%c0_5, %c0_6, %c0_7] : memref<2x22x22xf32, #tpu.memory_space<vmem>>, vector<2x22x22xf32>
    tpu.vector_store %arg5[%c0_5, %c0_6, %c0_7], %8 {strides = array<i32>} : memref<2x22x22xf32, #tpu.memory_space<vmem>>, vector<2x22x22xf32>,
    %10 = vector.extract_strided_slice %3 {offsets = [0, 0], sizes = [1, 16], strides = [1, 1]} : vector<1x256xf32> to vector<1x16xf32>
    %c0_8 = arith.constant 0 : index
    %c3 = arith.constant 3 : index
    %c3_9 = arith.constant 3 : index
    %11 = vector.load %arg5[%c0_8, %c3, %c3_9] : memref<2x22x22xf32, #tpu.memory_space<vmem>>, vector<1x1x16xf32>
    %12 = vector.shape_cast %11 : vector<1x1x16xf32> to vector<1x16xf32>
    %13 = vector.shape_cast %10 : vector<1x16xf32> to vector<1x1x16xf32>
    tpu.vector_store %arg5[%c0_8, %c3, %c3_9], %13 {strides = array<i32>} : memref<2x22x22xf32, #tpu.memory_space<vmem>>, vector<1x1x16xf32>,
    %14 = vector.extract_strided_slice %7 {offsets = [0, 0], sizes = [1, 16], strides = [1, 1]} : vector<1x256xf32> to vector<1x16xf32>
    %c1 = arith.constant 1 : index
    %c3_10 = arith.constant 3 : index
    %c3_11 = arith.constant 3 : index
    %15 = vector.load %arg5[%c1, %c3_10, %c3_11] : memref<2x22x22xf32, #tpu.memory_space<vmem>>, vector<1x1x16xf32>
    %16 = vector.shape_cast %15 : vector<1x1x16xf32> to vector<1x16xf32>
    %17 = vector.shape_cast %14 : vector<1x16xf32> to vector<1x1x16xf32>
    tpu.vector_store %arg5[%c1, %c3_10, %c3_11], %17 {strides = array<i32>} : memref<2x22x22xf32, #tpu.memory_space<vmem>>, vector<1x1x16xf32>,
    %18 = vector.extract_strided_slice %3 {offsets = [0, 16], sizes = [1, 16], strides = [1, 1]} : vector<1x256xf32> to vector<1x16xf32>
    %c0_12 = arith.constant 0 : index
    %c4 = arith.constant 4 : index
    %c3_13 = arith.constant 3 : index
    %19 = vector.load %arg5[%c0_12, %c4, %c3_13] : memref<2x22x22xf32, #tpu.memory_space<vmem>>, vector<1x1x16xf32>
    %20 = vector.shape_cast %19 : vector<1x1x16xf32> to vector<1x16xf32>
    %21 = vector.shape_cast %18 : vector<1x16xf32> to vector<1x1x16xf32>
    tpu.vector_store %arg5[%c0_12, %c4, %c3_13], %21 {strides = array<i32>} : memref<2x22x22xf32, #tpu.memory_space<vmem>>, vector<1x1x16xf32>,
    %22 = vector.extract_strided_slice %7 {offsets = [0, 16], sizes = [1, 16], strides = [1, 1]} : vector<1x256xf32> to vector<1x16xf32>
    %c1_14 = arith.constant 1 : index
    %c4_15 = arith.constant 4 : index
    %c3_16 = arith.constant 3 : index
    %23 = vector.load %arg5[%c1_14, %c4_15, %c3_16] : memref<2x22x22xf32, #tpu.memory_space<vmem>>, vector<1x1x16xf32>
    %24 = vector.shape_cast %23 : vector<1x1x16xf32> to vector<1x16xf32>
    %25 = vector.shape_cast %22 : vector<1x16xf32> to vector<1x1x16xf32>
    tpu.vector_store %arg5[%c1_14, %c4_15, %c3_16], %25 {strides = array<i32>} : memref<2x22x22xf32, #tpu.memory_space<vmem>>, vector<1x1x16xf32>,
    %26 = vector.extract_strided_slice %3 {offsets = [0, 32], sizes = [1, 16], strides = [1, 1]} : vector<1x256xf32> to vector<1x16xf32>
    %c0_17 = arith.constant 0 : index
    %c5 = arith.constant 5 : index
    %c3_18 = arith.constant 3 : index
    %27 = vector.load %arg5[%c0_17, %c5, %c3_18] : memref<2x22x22xf32, #tpu.memory_space<vmem>>, vector<1x1x16xf32>
    %28 = vector.shape_cast %27 : vector<1x1x16xf32> to vector<1x16xf32>
    %29 = vector.shape_cast %26 : vector<1x16xf32> to vector<1x1x16xf32>
    tpu.vector_store %arg5[%c0_17, %c5, %c3_18], %29 {strides = array<i32>} : memref<2x22x22xf32, #tpu.memory_space<vmem>>, vector<1x1x16xf32>,
    %30 = vector.extract_strided_slice %7 {offsets = [0, 32], sizes = [1, 16], strides = [1, 1]} : vector<1x256xf32> to vector<1x16xf32>
    %c1_19 = arith.constant 1 : index
    %c5_20 = arith.constant 5 : index
    %c3_21 = arith.constant 3 : index
    %31 = vector.load %arg5[%c1_19, %c5_20, %c3_21] : memref<2x22x22xf32, #tpu.memory_space<vmem>>, vector<1x1x16xf32>
    %32 = vector.shape_cast %31 : vector<1x1x16xf32> to vector<1x16xf32>
    %33 = vector.shape_cast %30 : vector<1x16xf32> to vector<1x1x16xf32>
    tpu.vector_store %arg5[%c1_19, %c5_20, %c3_21], %33 {strides = array<i32>} : memref<2x22x22xf32, #tpu.memory_space<vmem>>, vector<1x1x16xf32>,
    %34 = vector.extract_strided_slice %3 {offsets = [0, 48], sizes = [1, 16], strides = [1, 1]} : vector<1x256xf32> to vector<1x16xf32>
    %c0_22 = arith.constant 0 : index
    %c6 = arith.constant 6 : index
    %c3_23 = arith.constant 3 : index
    %35 = vector.load %arg5[%c0_22, %c6, %c3_23] : memref<2x22x22xf32, #tpu.memory_space<vmem>>, vector<1x1x16xf32>
    %36 = vector.shape_cast %35 : vector<1x1x16xf32> to vector<1x16xf32>
    %37 = vector.shape_cast %34 : vector<1x16xf32> to vector<1x1x16xf32>
    tpu.vector_store %arg5[%c0_22, %c6, %c3_23], %37 {strides = array<i32>} : memref<2x22x22xf32, #tpu.memory_space<vmem>>, vector<1x1x16xf32>,
    %38 = vector.extract_strided_slice %7 {offsets = [0, 48], sizes = [1, 16], strides = [1, 1]} : vector<1x256xf32> to vector<1x16xf32>
    %c1_24 = arith.constant 1 : index
    %c6_25 = arith.constant 6 : index
    %c3_26 = arith.constant 3 : index
    %39 = vector.load %arg5[%c1_24, %c6_25, %c3_26] : memref<2x22x22xf32, #tpu.memory_space<vmem>>, vector<1x1x16xf32>
    %40 = vector.shape_cast %39 : vector<1x1x16xf32> to vector<1x16xf32>
    %41 = vector.shape_cast %38 : vector<1x16xf32> to vector<1x1x16xf32>
    tpu.vector_store %arg5[%c1_24, %c6_25, %c3_26], %41 {strides = array<i32>} : memref<2x22x22xf32, #tpu.memory_space<vmem>>, vector<1x1x16xf32>,
    %42 = vector.extract_strided_slice %3 {offsets = [0, 64], sizes = [1, 16], strides = [1, 1]} : vector<1x256xf32> to vector<1x16xf32>
    %c0_27 = arith.constant 0 : index
    %c7 = arith.constant 7 : index
    %c3_28 = arith.constant 3 : index
    %43 = vector.load %arg5[%c0_27, %c7, %c3_28] : memref<2x22x22xf32, #tpu.memory_space<vmem>>, vector<1x1x16xf32>
    %44 = vector.shape_cast %43 : vector<1x1x16xf32> to vector<1x16xf32>
    %45 = vector.shape_cast %42 : vector<1x16xf32> to vector<1x1x16xf32>
    tpu.vector_store %arg5[%c0_27, %c7, %c3_28], %45 {strides = array<i32>} : memref<2x22x22xf32, #tpu.memory_space<vmem>>, vector<1x1x16xf32>,
    %46 = vector.extract_strided_slice %7 {offsets = [0, 64], sizes = [1, 16], strides = [1, 1]} : vector<1x256xf32> to vector<1x16xf32>
    %c1_29 = arith.constant 1 : index
    %c7_30 = arith.constant 7 : index
    %c3_31 = arith.constant 3 : index
    %47 = vector.load %arg5[%c1_29, %c7_30, %c3_31] : memref<2x22x22xf32, #tpu.memory_space<vmem>>, vector<1x1x16xf32>
    %48 = vector.shape_cast %47 : vector<1x1x16xf32> to vector<1x16xf32>
    %49 = vector.shape_cast %46 : vector<1x16xf32> to vector<1x1x16xf32>
    tpu.vector_store %arg5[%c1_29, %c7_30, %c3_31], %49 {strides = array<i32>} : memref<2x22x22xf32, #tpu.memory_space<vmem>>, vector<1x1x16xf32>,
    %50 = vector.extract_strided_slice %3 {offsets = [0, 80], sizes = [1, 16], strides = [1, 1]} : vector<1x256xf32> to vector<1x16xf32>
    %c0_32 = arith.constant 0 : index
    %c8 = arith.constant 8 : index
    %c3_33 = arith.constant 3 : index
    %51 = vector.load %arg5[%c0_32, %c8, %c3_33] : memref<2x22x22xf32, #tpu.memory_space<vmem>>, vector<1x1x16xf32>
    %52 = vector.shape_cast %51 : vector<1x1x16xf32> to vector<1x16xf32>
    %53 = vector.shape_cast %50 : vector<1x16xf32> to vector<1x1x16xf32>
    tpu.vector_store %arg5[%c0_32, %c8, %c3_33], %53 {strides = array<i32>} : memref<2x22x22xf32, #tpu.memory_space<vmem>>, vector<1x1x16xf32>,
    %54 = vector.extract_strided_slice %7 {offsets = [0, 80], sizes = [1, 16], strides = [1, 1]} : vector<1x256xf32> to vector<1x16xf32>
    %c1_34 = arith.constant 1 : index
    %c8_35 = arith.constant 8 : index
    %c3_36 = arith.constant 3 : index
    %55 = vector.load %arg5[%c1_34, %c8_35, %c3_36] : memref<2x22x22xf32, #tpu.memory_space<vmem>>, vector<1x1x16xf32>
    %56 = vector.shape_cast %55 : vector<1x1x16xf32> to vector<1x16xf32>
    %57 = vector.shape_cast %54 : vector<1x16xf32> to vector<1x1x16xf32>
    tpu.vector_store %arg5[%c1_34, %c8_35, %c3_36], %57 {strides = array<i32>} : memref<2x22x22xf32, #tpu.memory_space<vmem>>, vector<1x1x16xf32>,
    %58 = vector.extract_strided_slice %3 {offsets = [0, 96], sizes = [1, 16], strides = [1, 1]} : vector<1x256xf32> to vector<1x16xf32>
    %c0_37 = arith.constant 0 : index
    %c9 = arith.constant 9 : index
    %c3_38 = arith.constant 3 : index
    %59 = vector.load %arg5[%c0_37, %c9, %c3_38] : memref<2x22x22xf32, #tpu.memory_space<vmem>>, vector<1x1x16xf32>
    %60 = vector.shape_cast %59 : vector<1x1x16xf32> to vector<1x16xf32>
    %61 = vector.shape_cast %58 : vector<1x16xf32> to vector<1x1x16xf32>
    tpu.vector_store %arg5[%c0_37, %c9, %c3_38], %61 {strides = array<i32>} : memref<2x22x22xf32, #tpu.memory_space<vmem>>, vector<1x1x16xf32>,
    %62 = vector.extract_strided_slice %7 {offsets = [0, 96], sizes = [1, 16], strides = [1, 1]} : vector<1x256xf32> to vector<1x16xf32>
    %c1_39 = arith.constant 1 : index
    %c9_40 = arith.constant 9 : index
    %c3_41 = arith.constant 3 : index
    %63 = vector.load %arg5[%c1_39, %c9_40, %c3_41] : memref<2x22x22xf32, #tpu.memory_space<vmem>>, vector<1x1x16xf32>
    %64 = vector.shape_cast %63 : vector<1x1x16xf32> to vector<1x16xf32>
    %65 = vector.shape_cast %62 : vector<1x16xf32> to vector<1x1x16xf32>
    tpu.vector_store %arg5[%c1_39, %c9_40, %c3_41], %65 {strides = array<i32>} : memref<2x22x22xf32, #tpu.memory_space<vmem>>, vector<1x1x16xf32>,
    %66 = vector.extract_strided_slice %3 {offsets = [0, 112], sizes = [1, 16], strides = [1, 1]} : vector<1x256xf32> to vector<1x16xf32>
    %c0_42 = arith.constant 0 : index
    %c10 = arith.constant 10 : index
    %c3_43 = arith.constant 3 : index
    %67 = vector.load %arg5[%c0_42, %c10, %c3_43] : memref<2x22x22xf32, #tpu.memory_space<vmem>>, vector<1x1x16xf32>
    %68 = vector.shape_cast %67 : vector<1x1x16xf32> to vector<1x16xf32>
    %69 = vector.shape_cast %66 : vector<1x16xf32> to vector<1x1x16xf32>
    tpu.vector_store %arg5[%c0_42, %c10, %c3_43], %69 {strides = array<i32>} : memref<2x22x22xf32, #tpu.memory_space<vmem>>, vector<1x1x16xf32>,
    %70 = vector.extract_strided_slice %7 {offsets = [0, 112], sizes = [1, 16], strides = [1, 1]} : vector<1x256xf32> to vector<1x16xf32>
    %c1_44 = arith.constant 1 : index
    %c10_45 = arith.constant 10 : index
    %c3_46 = arith.constant 3 : index
    %71 = vector.load %arg5[%c1_44, %c10_45, %c3_46] : memref<2x22x22xf32, #tpu.memory_space<vmem>>, vector<1x1x16xf32>
    %72 = vector.shape_cast %71 : vector<1x1x16xf32> to vector<1x16xf32>
    %73 = vector.shape_cast %70 : vector<1x16xf32> to vector<1x1x16xf32>
    tpu.vector_store %arg5[%c1_44, %c10_45, %c3_46], %73 {strides = array<i32>} : memref<2x22x22xf32, #tpu.memory_space<vmem>>, vector<1x1x16xf32>,
    %74 = vector.extract_strided_slice %3 {offsets = [0, 128], sizes = [1, 16], strides = [1, 1]} : vector<1x256xf32> to vector<1x16xf32>
    %c0_47 = arith.constant 0 : index
    %c11 = arith.constant 11 : index
    %c3_48 = arith.constant 3 : index
    %75 = vector.load %arg5[%c0_47, %c11, %c3_48] : memref<2x22x22xf32, #tpu.memory_space<vmem>>, vector<1x1x16xf32>
    %76 = vector.shape_cast %75 : vector<1x1x16xf32> to vector<1x16xf32>
    %77 = vector.shape_cast %74 : vector<1x16xf32> to vector<1x1x16xf32>
    tpu.vector_store %arg5[%c0_47, %c11, %c3_48], %77 {strides = array<i32>} : memref<2x22x22xf32, #tpu.memory_space<vmem>>, vector<1x1x16xf32>,
    %78 = vector.extract_strided_slice %7 {offsets = [0, 128], sizes = [1, 16], strides = [1, 1]} : vector<1x256xf32> to vector<1x16xf32>
    %c1_49 = arith.constant 1 : index
    %c11_50 = arith.constant 11 : index
    %c3_51 = arith.constant 3 : index
    %79 = vector.load %arg5[%c1_49, %c11_50, %c3_51] : memref<2x22x22xf32, #tpu.memory_space<vmem>>, vector<1x1x16xf32>
    %80 = vector.shape_cast %79 : vector<1x1x16xf32> to vector<1x16xf32>
    %81 = vector.shape_cast %78 : vector<1x16xf32> to vector<1x1x16xf32>
    tpu.vector_store %arg5[%c1_49, %c11_50, %c3_51], %81 {strides = array<i32>} : memref<2x22x22xf32, #tpu.memory_space<vmem>>, vector<1x1x16xf32>,
    %82 = vector.extract_strided_slice %3 {offsets = [0, 144], sizes = [1, 16], strides = [1, 1]} : vector<1x256xf32> to vector<1x16xf32>
    %c0_52 = arith.constant 0 : index
    %c12 = arith.constant 12 : index
    %c3_53 = arith.constant 3 : index
    %83 = vector.load %arg5[%c0_52, %c12, %c3_53] : memref<2x22x22xf32, #tpu.memory_space<vmem>>, vector<1x1x16xf32>
    %84 = vector.shape_cast %83 : vector<1x1x16xf32> to vector<1x16xf32>
    %85 = vector.shape_cast %82 : vector<1x16xf32> to vector<1x1x16xf32>
    tpu.vector_store %arg5[%c0_52, %c12, %c3_53], %85 {strides = array<i32>} : memref<2x22x22xf32, #tpu.memory_space<vmem>>, vector<1x1x16xf32>,
    %86 = vector.extract_strided_slice %7 {offsets = [0, 144], sizes = [1, 16], strides = [1, 1]} : vector<1x256xf32> to vector<1x16xf32>
    %c1_54 = arith.constant 1 : index
    %c12_55 = arith.constant 12 : index
    %c3_56 = arith.constant 3 : index
    %87 = vector.load %arg5[%c1_54, %c12_55, %c3_56] : memref<2x22x22xf32, #tpu.memory_space<vmem>>, vector<1x1x16xf32>
    %88 = vector.shape_cast %87 : vector<1x1x16xf32> to vector<1x16xf32>
    %89 = vector.shape_cast %86 : vector<1x16xf32> to vector<1x1x16xf32>
    tpu.vector_store %arg5[%c1_54, %c12_55, %c3_56], %89 {strides = array<i32>} : memref<2x22x22xf32, #tpu.memory_space<vmem>>, vector<1x1x16xf32>,
    %90 = vector.extract_strided_slice %3 {offsets = [0, 160], sizes = [1, 16], strides = [1, 1]} : vector<1x256xf32> to vector<1x16xf32>
    %c0_57 = arith.constant 0 : index
    %c13 = arith.constant 13 : index
    %c3_58 = arith.constant 3 : index
    %91 = vector.load %arg5[%c0_57, %c13, %c3_58] : memref<2x22x22xf32, #tpu.memory_space<vmem>>, vector<1x1x16xf32>
    %92 = vector.shape_cast %91 : vector<1x1x16xf32> to vector<1x16xf32>
    %93 = vector.shape_cast %90 : vector<1x16xf32> to vector<1x1x16xf32>
    tpu.vector_store %arg5[%c0_57, %c13, %c3_58], %93 {strides = array<i32>} : memref<2x22x22xf32, #tpu.memory_space<vmem>>, vector<1x1x16xf32>,
    %94 = vector.extract_strided_slice %7 {offsets = [0, 160], sizes = [1, 16], strides = [1, 1]} : vector<1x256xf32> to vector<1x16xf32>
    %c1_59 = arith.constant 1 : index
    %c13_60 = arith.constant 13 : index
    %c3_61 = arith.constant 3 : index
    %95 = vector.load %arg5[%c1_59, %c13_60, %c3_61] : memref<2x22x22xf32, #tpu.memory_space<vmem>>, vector<1x1x16xf32>
    %96 = vector.shape_cast %95 : vector<1x1x16xf32> to vector<1x16xf32>
    %97 = vector.shape_cast %94 : vector<1x16xf32> to vector<1x1x16xf32>
    tpu.vector_store %arg5[%c1_59, %c13_60, %c3_61], %97 {strides = array<i32>} : memref<2x22x22xf32, #tpu.memory_space<vmem>>, vector<1x1x16xf32>,
    %98 = vector.extract_strided_slice %3 {offsets = [0, 176], sizes = [1, 16], strides = [1, 1]} : vector<1x256xf32> to vector<1x16xf32>
    %c0_62 = arith.constant 0 : index
    %c14 = arith.constant 14 : index
    %c3_63 = arith.constant 3 : index
    %99 = vector.load %arg5[%c0_62, %c14, %c3_63] : memref<2x22x22xf32, #tpu.memory_space<vmem>>, vector<1x1x16xf32>
    %100 = vector.shape_cast %99 : vector<1x1x16xf32> to vector<1x16xf32>
    %101 = vector.shape_cast %98 : vector<1x16xf32> to vector<1x1x16xf32>
    tpu.vector_store %arg5[%c0_62, %c14, %c3_63], %101 {strides = array<i32>} : memref<2x22x22xf32, #tpu.memory_space<vmem>>, vector<1x1x16xf32>,
    %102 = vector.extract_strided_slice %7 {offsets = [0, 176], sizes = [1, 16], strides = [1, 1]} : vector<1x256xf32> to vector<1x16xf32>
    %c1_64 = arith.constant 1 : index
    %c14_65 = arith.constant 14 : index
    %c3_66 = arith.constant 3 : index
    %103 = vector.load %arg5[%c1_64, %c14_65, %c3_66] : memref<2x22x22xf32, #tpu.memory_space<vmem>>, vector<1x1x16xf32>
    %104 = vector.shape_cast %103 : vector<1x1x16xf32> to vector<1x16xf32>
    %105 = vector.shape_cast %102 : vector<1x16xf32> to vector<1x1x16xf32>
    tpu.vector_store %arg5[%c1_64, %c14_65, %c3_66], %105 {strides = array<i32>} : memref<2x22x22xf32, #tpu.memory_space<vmem>>, vector<1x1x16xf32>,
    %106 = vector.extract_strided_slice %3 {offsets = [0, 192], sizes = [1, 16], strides = [1, 1]} : vector<1x256xf32> to vector<1x16xf32>
    %c0_67 = arith.constant 0 : index
    %c15 = arith.constant 15 : index
    %c3_68 = arith.constant 3 : index
    %107 = vector.load %arg5[%c0_67, %c15, %c3_68] : memref<2x22x22xf32, #tpu.memory_space<vmem>>, vector<1x1x16xf32>
    %108 = vector.shape_cast %107 : vector<1x1x16xf32> to vector<1x16xf32>
    %109 = vector.shape_cast %106 : vector<1x16xf32> to vector<1x1x16xf32>
    tpu.vector_store %arg5[%c0_67, %c15, %c3_68], %109 {strides = array<i32>} : memref<2x22x22xf32, #tpu.memory_space<vmem>>, vector<1x1x16xf32>,
    %110 = vector.extract_strided_slice %7 {offsets = [0, 192], sizes = [1, 16], strides = [1, 1]} : vector<1x256xf32> to vector<1x16xf32>
    %c1_69 = arith.constant 1 : index
    %c15_70 = arith.constant 15 : index
    %c3_71 = arith.constant 3 : index
    %111 = vector.load %arg5[%c1_69, %c15_70, %c3_71] : memref<2x22x22xf32, #tpu.memory_space<vmem>>, vector<1x1x16xf32>
    %112 = vector.shape_cast %111 : vector<1x1x16xf32> to vector<1x16xf32>
    %113 = vector.shape_cast %110 : vector<1x16xf32> to vector<1x1x16xf32>
    tpu.vector_store %arg5[%c1_69, %c15_70, %c3_71], %113 {strides = array<i32>} : memref<2x22x22xf32, #tpu.memory_space<vmem>>, vector<1x1x16xf32>,
    %114 = vector.extract_strided_slice %3 {offsets = [0, 208], sizes = [1, 16], strides = [1, 1]} : vector<1x256xf32> to vector<1x16xf32>
    %c0_72 = arith.constant 0 : index
    %c16 = arith.constant 16 : index
    %c3_73 = arith.constant 3 : index
    %115 = vector.load %arg5[%c0_72, %c16, %c3_73] : memref<2x22x22xf32, #tpu.memory_space<vmem>>, vector<1x1x16xf32>
    %116 = vector.shape_cast %115 : vector<1x1x16xf32> to vector<1x16xf32>
    %117 = vector.shape_cast %114 : vector<1x16xf32> to vector<1x1x16xf32>
    tpu.vector_store %arg5[%c0_72, %c16, %c3_73], %117 {strides = array<i32>} : memref<2x22x22xf32, #tpu.memory_space<vmem>>, vector<1x1x16xf32>,
    %118 = vector.extract_strided_slice %7 {offsets = [0, 208], sizes = [1, 16], strides = [1, 1]} : vector<1x256xf32> to vector<1x16xf32>
    %c1_74 = arith.constant 1 : index
    %c16_75 = arith.constant 16 : index
    %c3_76 = arith.constant 3 : index
    %119 = vector.load %arg5[%c1_74, %c16_75, %c3_76] : memref<2x22x22xf32, #tpu.memory_space<vmem>>, vector<1x1x16xf32>
    %120 = vector.shape_cast %119 : vector<1x1x16xf32> to vector<1x16xf32>
    %121 = vector.shape_cast %118 : vector<1x16xf32> to vector<1x1x16xf32>
    tpu.vector_store %arg5[%c1_74, %c16_75, %c3_76], %121 {strides = array<i32>} : memref<2x22x22xf32, #tpu.memory_space<vmem>>, vector<1x1x16xf32>,
    %122 = vector.extract_strided_slice %3 {offsets = [0, 224], sizes = [1, 16], strides = [1, 1]} : vector<1x256xf32> to vector<1x16xf32>
    %c0_77 = arith.constant 0 : index
    %c17 = arith.constant 17 : index
    %c3_78 = arith.constant 3 : index
    %123 = vector.load %arg5[%c0_77, %c17, %c3_78] : memref<2x22x22xf32, #tpu.memory_space<vmem>>, vector<1x1x16xf32>
    %124 = vector.shape_cast %123 : vector<1x1x16xf32> to vector<1x16xf32>
    %125 = vector.shape_cast %122 : vector<1x16xf32> to vector<1x1x16xf32>
    tpu.vector_store %arg5[%c0_77, %c17, %c3_78], %125 {strides = array<i32>} : memref<2x22x22xf32, #tpu.memory_space<vmem>>, vector<1x1x16xf32>,
    %126 = vector.extract_strided_slice %7 {offsets = [0, 224], sizes = [1, 16], strides = [1, 1]} : vector<1x256xf32> to vector<1x16xf32>
    %c1_79 = arith.constant 1 : index
    %c17_80 = arith.constant 17 : index
    %c3_81 = arith.constant 3 : index
    %127 = vector.load %arg5[%c1_79, %c17_80, %c3_81] : memref<2x22x22xf32, #tpu.memory_space<vmem>>, vector<1x1x16xf32>
    %128 = vector.shape_cast %127 : vector<1x1x16xf32> to vector<1x16xf32>
    %129 = vector.shape_cast %126 : vector<1x16xf32> to vector<1x1x16xf32>
    tpu.vector_store %arg5[%c1_79, %c17_80, %c3_81], %129 {strides = array<i32>} : memref<2x22x22xf32, #tpu.memory_space<vmem>>, vector<1x1x16xf32>,
    %130 = vector.extract_strided_slice %3 {offsets = [0, 240], sizes = [1, 16], strides = [1, 1]} : vector<1x256xf32> to vector<1x16xf32>
    %c0_82 = arith.constant 0 : index
    %c18 = arith.constant 18 : index
    %c3_83 = arith.constant 3 : index
    %131 = vector.load %arg5[%c0_82, %c18, %c3_83] : memref<2x22x22xf32, #tpu.memory_space<vmem>>, vector<1x1x16xf32>
    %132 = vector.shape_cast %131 : vector<1x1x16xf32> to vector<1x16xf32>
    %133 = vector.shape_cast %130 : vector<1x16xf32> to vector<1x1x16xf32>
    tpu.vector_store %arg5[%c0_82, %c18, %c3_83], %133 {strides = array<i32>} : memref<2x22x22xf32, #tpu.memory_space<vmem>>, vector<1x1x16xf32>,
    %134 = vector.extract_strided_slice %7 {offsets = [0, 240], sizes = [1, 16], strides = [1, 1]} : vector<1x256xf32> to vector<1x16xf32>
    %c1_84 = arith.constant 1 : index
    %c18_85 = arith.constant 18 : index
    %c3_86 = arith.constant 3 : index
    %135 = vector.load %arg5[%c1_84, %c18_85, %c3_86] : memref<2x22x22xf32, #tpu.memory_space<vmem>>, vector<1x1x16xf32>
    %136 = vector.shape_cast %135 : vector<1x1x16xf32> to vector<1x16xf32>
    %137 = vector.shape_cast %134 : vector<1x16xf32> to vector<1x1x16xf32>
    tpu.vector_store %arg5[%c1_84, %c18_85, %c3_86], %137 {strides = array<i32>} : memref<2x22x22xf32, #tpu.memory_space<vmem>>, vector<1x1x16xf32>,
    %cst_87 = arith.constant 0.000000e+00 : f32
    %138 = vector.broadcast %cst_87 : f32 to vector<16x16xf32>
    %cst_88 = arith.constant 0.000000e+00 : f32
    %139 = vector.broadcast %cst_88 : f32 to vector<16x16xf32>
    %cst_89 = arith.constant 0.000000e+00 : f32
    %140 = vector.broadcast %cst_89 : f32 to vector<16x16xf32>
    %cst_90 = arith.constant 0.000000e+00 : f32
    %141 = vector.broadcast %cst_90 : f32 to vector<16x16xf32>
    %c0_91 = arith.constant 0 : index
    %142 = memref.load %arg1[%c0_91] : memref<98xf32, #tpu.memory_space<smem>>
    %c0_92 = arith.constant 0 : index
    %c0_93 = arith.constant 0 : index
    %c0_94 = arith.constant 0 : index
    %143 = vector.load %arg5[%c0_92, %c0_93, %c0_94] : memref<2x22x22xf32, #tpu.memory_space<vmem>>, vector<1x16x16xf32>
    %144 = vector.shape_cast %143 : vector<1x16x16xf32> to vector<16x16xf32>
    %145 = vector.broadcast %142 : f32 to vector<16x16xf32>
    %146 = arith.mulf %145, %144 : vector<16x16xf32>
    %147 = arith.addf %138, %146 : vector<16x16xf32>
    %c1_95 = arith.constant 1 : index
    %148 = memref.load %arg1[%c1_95] : memref<98xf32, #tpu.memory_space<smem>>
    %c0_96 = arith.constant 0 : index
    %c0_97 = arith.constant 0 : index
    %c1_98 = arith.constant 1 : index
    %149 = vector.load %arg5[%c0_96, %c0_97, %c1_98] : memref<2x22x22xf32, #tpu.memory_space<vmem>>, vector<1x16x16xf32>
    %150 = vector.shape_cast %149 : vector<1x16x16xf32> to vector<16x16xf32>
    %151 = vector.broadcast %148 : f32 to vector<16x16xf32>
    %152 = arith.mulf %151, %150 : vector<16x16xf32>
    %153 = arith.addf %139, %152 : vector<16x16xf32>
    %c2 = arith.constant 2 : index
    %154 = memref.load %arg1[%c2] : memref<98xf32, #tpu.memory_space<smem>>
    %c0_99 = arith.constant 0 : index
    %c0_100 = arith.constant 0 : index
    %c2_101 = arith.constant 2 : index
    %155 = vector.load %arg5[%c0_99, %c0_100, %c2_101] : memref<2x22x22xf32, #tpu.memory_space<vmem>>, vector<1x16x16xf32>
    %156 = vector.shape_cast %155 : vector<1x16x16xf32> to vector<16x16xf32>
    %157 = vector.broadcast %154 : f32 to vector<16x16xf32>
    %158 = arith.mulf %157, %156 : vector<16x16xf32>
    %159 = arith.addf %140, %158 : vector<16x16xf32>
    %c3_102 = arith.constant 3 : index
    %160 = memref.load %arg1[%c3_102] : memref<98xf32, #tpu.memory_space<smem>>
    %c0_103 = arith.constant 0 : index
    %c0_104 = arith.constant 0 : index
    %c3_105 = arith.constant 3 : index
    %161 = vector.load %arg5[%c0_103, %c0_104, %c3_105] : memref<2x22x22xf32, #tpu.memory_space<vmem>>, vector<1x16x16xf32>
    %162 = vector.shape_cast %161 : vector<1x16x16xf32> to vector<16x16xf32>
    %163 = vector.broadcast %160 : f32 to vector<16x16xf32>
    %164 = arith.mulf %163, %162 : vector<16x16xf32>
    %165 = arith.addf %141, %164 : vector<16x16xf32>
    %c4_106 = arith.constant 4 : index
    %166 = memref.load %arg1[%c4_106] : memref<98xf32, #tpu.memory_space<smem>>
    %c0_107 = arith.constant 0 : index
    %c0_108 = arith.constant 0 : index
    %c4_109 = arith.constant 4 : index
    %167 = vector.load %arg5[%c0_107, %c0_108, %c4_109] : memref<2x22x22xf32, #tpu.memory_space<vmem>>, vector<1x16x16xf32>
    %168 = vector.shape_cast %167 : vector<1x16x16xf32> to vector<16x16xf32>
    %169 = vector.broadcast %166 : f32 to vector<16x16xf32>
    %170 = arith.mulf %169, %168 : vector<16x16xf32>
    %171 = arith.addf %147, %170 : vector<16x16xf32>
    %c5_110 = arith.constant 5 : index
    %172 = memref.load %arg1[%c5_110] : memref<98xf32, #tpu.memory_space<smem>>
    %c0_111 = arith.constant 0 : index
    %c0_112 = arith.constant 0 : index
    %c5_113 = arith.constant 5 : index
    %173 = vector.load %arg5[%c0_111, %c0_112, %c5_113] : memref<2x22x22xf32, #tpu.memory_space<vmem>>, vector<1x16x16xf32>
    %174 = vector.shape_cast %173 : vector<1x16x16xf32> to vector<16x16xf32>
    %175 = vector.broadcast %172 : f32 to vector<16x16xf32>
    %176 = arith.mulf %175, %174 : vector<16x16xf32>
    %177 = arith.addf %153, %176 : vector<16x16xf32>
    %c6_114 = arith.constant 6 : index
    %178 = memref.load %arg1[%c6_114] : memref<98xf32, #tpu.memory_space<smem>>
    %c0_115 = arith.constant 0 : index
    %c0_116 = arith.constant 0 : index
    %c6_117 = arith.constant 6 : index
    %179 = vector.load %arg5[%c0_115, %c0_116, %c6_117] : memref<2x22x22xf32, #tpu.memory_space<vmem>>, vector<1x16x16xf32>
    %180 = vector.shape_cast %179 : vector<1x16x16xf32> to vector<16x16xf32>
    %181 = vector.broadcast %178 : f32 to vector<16x16xf32>
    %182 = arith.mulf %181, %180 : vector<16x16xf32>
    %183 = arith.addf %159, %182 : vector<16x16xf32>
    %c7_118 = arith.constant 7 : index
    %184 = memref.load %arg1[%c7_118] : memref<98xf32, #tpu.memory_space<smem>>
    %c0_119 = arith.constant 0 : index
    %c1_120 = arith.constant 1 : index
    %c0_121 = arith.constant 0 : index
    %185 = vector.load %arg5[%c0_119, %c1_120, %c0_121] : memref<2x22x22xf32, #tpu.memory_space<vmem>>, vector<1x16x16xf32>
    %186 = vector.shape_cast %185 : vector<1x16x16xf32> to vector<16x16xf32>
    %187 = vector.broadcast %184 : f32 to vector<16x16xf32>
    %188 = arith.mulf %187, %186 : vector<16x16xf32>
    %189 = arith.addf %165, %188 : vector<16x16xf32>
    %c8_122 = arith.constant 8 : index
    %190 = memref.load %arg1[%c8_122] : memref<98xf32, #tpu.memory_space<smem>>
    %c0_123 = arith.constant 0 : index
    %c1_124 = arith.constant 1 : index
    %c1_125 = arith.constant 1 : index
    %191 = vector.load %arg5[%c0_123, %c1_124, %c1_125] : memref<2x22x22xf32, #tpu.memory_space<vmem>>, vector<1x16x16xf32>
    %192 = vector.shape_cast %191 : vector<1x16x16xf32> to vector<16x16xf32>
    %193 = vector.broadcast %190 : f32 to vector<16x16xf32>
    %194 = arith.mulf %193, %192 : vector<16x16xf32>
    %195 = arith.addf %171, %194 : vector<16x16xf32>
    %c9_126 = arith.constant 9 : index
    %196 = memref.load %arg1[%c9_126] : memref<98xf32, #tpu.memory_space<smem>>
    %c0_127 = arith.constant 0 : index
    %c1_128 = arith.constant 1 : index
    %c2_129 = arith.constant 2 : index
    %197 = vector.load %arg5[%c0_127, %c1_128, %c2_129] : memref<2x22x22xf32, #tpu.memory_space<vmem>>, vector<1x16x16xf32>
    %198 = vector.shape_cast %197 : vector<1x16x16xf32> to vector<16x16xf32>
    %199 = vector.broadcast %196 : f32 to vector<16x16xf32>
    %200 = arith.mulf %199, %198 : vector<16x16xf32>
    %201 = arith.addf %177, %200 : vector<16x16xf32>
    %c10_130 = arith.constant 10 : index
    %202 = memref.load %arg1[%c10_130] : memref<98xf32, #tpu.memory_space<smem>>
    %c0_131 = arith.constant 0 : index
    %c1_132 = arith.constant 1 : index
    %c3_133 = arith.constant 3 : index
    %203 = vector.load %arg5[%c0_131, %c1_132, %c3_133] : memref<2x22x22xf32, #tpu.memory_space<vmem>>, vector<1x16x16xf32>
    %204 = vector.shape_cast %203 : vector<1x16x16xf32> to vector<16x16xf32>
    %205 = vector.broadcast %202 : f32 to vector<16x16xf32>
    %206 = arith.mulf %205, %204 : vector<16x16xf32>
    %207 = arith.addf %183, %206 : vector<16x16xf32>
    %c11_134 = arith.constant 11 : index
    %208 = memref.load %arg1[%c11_134] : memref<98xf32, #tpu.memory_space<smem>>
    %c0_135 = arith.constant 0 : index
    %c1_136 = arith.constant 1 : index
    %c4_137 = arith.constant 4 : index
    %209 = vector.load %arg5[%c0_135, %c1_136, %c4_137] : memref<2x22x22xf32, #tpu.memory_space<vmem>>, vector<1x16x16xf32>
    %210 = vector.shape_cast %209 : vector<1x16x16xf32> to vector<16x16xf32>
    %211 = vector.broadcast %208 : f32 to vector<16x16xf32>
    %212 = arith.mulf %211, %210 : vector<16x16xf32>
    %213 = arith.addf %189, %212 : vector<16x16xf32>
    %c12_138 = arith.constant 12 : index
    %214 = memref.load %arg1[%c12_138] : memref<98xf32, #tpu.memory_space<smem>>
    %c0_139 = arith.constant 0 : index
    %c1_140 = arith.constant 1 : index
    %c5_141 = arith.constant 5 : index
    %215 = vector.load %arg5[%c0_139, %c1_140, %c5_141] : memref<2x22x22xf32, #tpu.memory_space<vmem>>, vector<1x16x16xf32>
    %216 = vector.shape_cast %215 : vector<1x16x16xf32> to vector<16x16xf32>
    %217 = vector.broadcast %214 : f32 to vector<16x16xf32>
    %218 = arith.mulf %217, %216 : vector<16x16xf32>
    %219 = arith.addf %195, %218 : vector<16x16xf32>
    %c13_142 = arith.constant 13 : index
    %220 = memref.load %arg1[%c13_142] : memref<98xf32, #tpu.memory_space<smem>>
    %c0_143 = arith.constant 0 : index
    %c1_144 = arith.constant 1 : index
    %c6_145 = arith.constant 6 : index
    %221 = vector.load %arg5[%c0_143, %c1_144, %c6_145] : memref<2x22x22xf32, #tpu.memory_space<vmem>>, vector<1x16x16xf32>
    %222 = vector.shape_cast %221 : vector<1x16x16xf32> to vector<16x16xf32>
    %223 = vector.broadcast %220 : f32 to vector<16x16xf32>
    %224 = arith.mulf %223, %222 : vector<16x16xf32>
    %225 = arith.addf %201, %224 : vector<16x16xf32>
    %c14_146 = arith.constant 14 : index
    %226 = memref.load %arg1[%c14_146] : memref<98xf32, #tpu.memory_space<smem>>
    %c0_147 = arith.constant 0 : index
    %c2_148 = arith.constant 2 : index
    %c0_149 = arith.constant 0 : index
    %227 = vector.load %arg5[%c0_147, %c2_148, %c0_149] : memref<2x22x22xf32, #tpu.memory_space<vmem>>, vector<1x16x16xf32>
    %228 = vector.shape_cast %227 : vector<1x16x16xf32> to vector<16x16xf32>
    %229 = vector.broadcast %226 : f32 to vector<16x16xf32>
    %230 = arith.mulf %229, %228 : vector<16x16xf32>
    %231 = arith.addf %207, %230 : vector<16x16xf32>
    %c15_150 = arith.constant 15 : index
    %232 = memref.load %arg1[%c15_150] : memref<98xf32, #tpu.memory_space<smem>>
    %c0_151 = arith.constant 0 : index
    %c2_152 = arith.constant 2 : index
    %c1_153 = arith.constant 1 : index
    %233 = vector.load %arg5[%c0_151, %c2_152, %c1_153] : memref<2x22x22xf32, #tpu.memory_space<vmem>>, vector<1x16x16xf32>
    %234 = vector.shape_cast %233 : vector<1x16x16xf32> to vector<16x16xf32>
    %235 = vector.broadcast %232 : f32 to vector<16x16xf32>
    %236 = arith.mulf %235, %234 : vector<16x16xf32>
    %237 = arith.addf %213, %236 : vector<16x16xf32>
    %c16_154 = arith.constant 16 : index
    %238 = memref.load %arg1[%c16_154] : memref<98xf32, #tpu.memory_space<smem>>
    %c0_155 = arith.constant 0 : index
    %c2_156 = arith.constant 2 : index
    %c2_157 = arith.constant 2 : index
    %239 = vector.load %arg5[%c0_155, %c2_156, %c2_157] : memref<2x22x22xf32, #tpu.memory_space<vmem>>, vector<1x16x16xf32>
    %240 = vector.shape_cast %239 : vector<1x16x16xf32> to vector<16x16xf32>
    %241 = vector.broadcast %238 : f32 to vector<16x16xf32>
    %242 = arith.mulf %241, %240 : vector<16x16xf32>
    %243 = arith.addf %219, %242 : vector<16x16xf32>
    %c17_158 = arith.constant 17 : index
    %244 = memref.load %arg1[%c17_158] : memref<98xf32, #tpu.memory_space<smem>>
    %c0_159 = arith.constant 0 : index
    %c2_160 = arith.constant 2 : index
    %c3_161 = arith.constant 3 : index
    %245 = vector.load %arg5[%c0_159, %c2_160, %c3_161] : memref<2x22x22xf32, #tpu.memory_space<vmem>>, vector<1x16x16xf32>
    %246 = vector.shape_cast %245 : vector<1x16x16xf32> to vector<16x16xf32>
    %247 = vector.broadcast %244 : f32 to vector<16x16xf32>
    %248 = arith.mulf %247, %246 : vector<16x16xf32>
    %249 = arith.addf %225, %248 : vector<16x16xf32>
    %c18_162 = arith.constant 18 : index
    %250 = memref.load %arg1[%c18_162] : memref<98xf32, #tpu.memory_space<smem>>
    %c0_163 = arith.constant 0 : index
    %c2_164 = arith.constant 2 : index
    %c4_165 = arith.constant 4 : index
    %251 = vector.load %arg5[%c0_163, %c2_164, %c4_165] : memref<2x22x22xf32, #tpu.memory_space<vmem>>, vector<1x16x16xf32>
    %252 = vector.shape_cast %251 : vector<1x16x16xf32> to vector<16x16xf32>
    %253 = vector.broadcast %250 : f32 to vector<16x16xf32>
    %254 = arith.mulf %253, %252 : vector<16x16xf32>
    %255 = arith.addf %231, %254 : vector<16x16xf32>
    %c19 = arith.constant 19 : index
    %256 = memref.load %arg1[%c19] : memref<98xf32, #tpu.memory_space<smem>>
    %c0_166 = arith.constant 0 : index
    %c2_167 = arith.constant 2 : index
    %c5_168 = arith.constant 5 : index
    %257 = vector.load %arg5[%c0_166, %c2_167, %c5_168] : memref<2x22x22xf32, #tpu.memory_space<vmem>>, vector<1x16x16xf32>
    %258 = vector.shape_cast %257 : vector<1x16x16xf32> to vector<16x16xf32>
    %259 = vector.broadcast %256 : f32 to vector<16x16xf32>
    %260 = arith.mulf %259, %258 : vector<16x16xf32>
    %261 = arith.addf %237, %260 : vector<16x16xf32>
    %c20 = arith.constant 20 : index
    %262 = memref.load %arg1[%c20] : memref<98xf32, #tpu.memory_space<smem>>
    %c0_169 = arith.constant 0 : index
    %c2_170 = arith.constant 2 : index
    %c6_171 = arith.constant 6 : index
    %263 = vector.load %arg5[%c0_169, %c2_170, %c6_171] : memref<2x22x22xf32, #tpu.memory_space<vmem>>, vector<1x16x16xf32>
    %264 = vector.shape_cast %263 : vector<1x16x16xf32> to vector<16x16xf32>
    %265 = vector.broadcast %262 : f32 to vector<16x16xf32>
    %266 = arith.mulf %265, %264 : vector<16x16xf32>
    %267 = arith.addf %243, %266 : vector<16x16xf32>
    %c21 = arith.constant 21 : index
    %268 = memref.load %arg1[%c21] : memref<98xf32, #tpu.memory_space<smem>>
    %c0_172 = arith.constant 0 : index
    %c3_173 = arith.constant 3 : index
    %c0_174 = arith.constant 0 : index
    %269 = vector.load %arg5[%c0_172, %c3_173, %c0_174] : memref<2x22x22xf32, #tpu.memory_space<vmem>>, vector<1x16x16xf32>
    %270 = vector.shape_cast %269 : vector<1x16x16xf32> to vector<16x16xf32>
    %271 = vector.broadcast %268 : f32 to vector<16x16xf32>
    %272 = arith.mulf %271, %270 : vector<16x16xf32>
    %273 = arith.addf %249, %272 : vector<16x16xf32>
    %c22 = arith.constant 22 : index
    %274 = memref.load %arg1[%c22] : memref<98xf32, #tpu.memory_space<smem>>
    %c0_175 = arith.constant 0 : index
    %c3_176 = arith.constant 3 : index
    %c1_177 = arith.constant 1 : index
    %275 = vector.load %arg5[%c0_175, %c3_176, %c1_177] : memref<2x22x22xf32, #tpu.memory_space<vmem>>, vector<1x16x16xf32>
    %276 = vector.shape_cast %275 : vector<1x16x16xf32> to vector<16x16xf32>
    %277 = vector.broadcast %274 : f32 to vector<16x16xf32>
    %278 = arith.mulf %277, %276 : vector<16x16xf32>
    %279 = arith.addf %255, %278 : vector<16x16xf32>
    %c23 = arith.constant 23 : index
    %280 = memref.load %arg1[%c23] : memref<98xf32, #tpu.memory_space<smem>>
    %c0_178 = arith.constant 0 : index
    %c3_179 = arith.constant 3 : index
    %c2_180 = arith.constant 2 : index
    %281 = vector.load %arg5[%c0_178, %c3_179, %c2_180] : memref<2x22x22xf32, #tpu.memory_space<vmem>>, vector<1x16x16xf32>
    %282 = vector.shape_cast %281 : vector<1x16x16xf32> to vector<16x16xf32>
    %283 = vector.broadcast %280 : f32 to vector<16x16xf32>
    %284 = arith.mulf %283, %282 : vector<16x16xf32>
    %285 = arith.addf %261, %284 : vector<16x16xf32>
    %c24 = arith.constant 24 : index
    %286 = memref.load %arg1[%c24] : memref<98xf32, #tpu.memory_space<smem>>
    %c0_181 = arith.constant 0 : index
    %c3_182 = arith.constant 3 : index
    %c3_183 = arith.constant 3 : index
    %287 = vector.load %arg5[%c0_181, %c3_182, %c3_183] : memref<2x22x22xf32, #tpu.memory_space<vmem>>, vector<1x16x16xf32>
    %288 = vector.shape_cast %287 : vector<1x16x16xf32> to vector<16x16xf32>
    %289 = vector.broadcast %286 : f32 to vector<16x16xf32>
    %290 = arith.mulf %289, %288 : vector<16x16xf32>
    %291 = arith.addf %267, %290 : vector<16x16xf32>
    %c25 = arith.constant 25 : index
    %292 = memref.load %arg1[%c25] : memref<98xf32, #tpu.memory_space<smem>>
    %c0_184 = arith.constant 0 : index
    %c3_185 = arith.constant 3 : index
    %c4_186 = arith.constant 4 : index
    %293 = vector.load %arg5[%c0_184, %c3_185, %c4_186] : memref<2x22x22xf32, #tpu.memory_space<vmem>>, vector<1x16x16xf32>
    %294 = vector.shape_cast %293 : vector<1x16x16xf32> to vector<16x16xf32>
    %295 = vector.broadcast %292 : f32 to vector<16x16xf32>
    %296 = arith.mulf %295, %294 : vector<16x16xf32>
    %297 = arith.addf %273, %296 : vector<16x16xf32>
    %c26 = arith.constant 26 : index
    %298 = memref.load %arg1[%c26] : memref<98xf32, #tpu.memory_space<smem>>
    %c0_187 = arith.constant 0 : index
    %c3_188 = arith.constant 3 : index
    %c5_189 = arith.constant 5 : index
    %299 = vector.load %arg5[%c0_187, %c3_188, %c5_189] : memref<2x22x22xf32, #tpu.memory_space<vmem>>, vector<1x16x16xf32>
    %300 = vector.shape_cast %299 : vector<1x16x16xf32> to vector<16x16xf32>
    %301 = vector.broadcast %298 : f32 to vector<16x16xf32>
    %302 = arith.mulf %301, %300 : vector<16x16xf32>
    %303 = arith.addf %279, %302 : vector<16x16xf32>
    %c27 = arith.constant 27 : index
    %304 = memref.load %arg1[%c27] : memref<98xf32, #tpu.memory_space<smem>>
    %c0_190 = arith.constant 0 : index
    %c3_191 = arith.constant 3 : index
    %c6_192 = arith.constant 6 : index
    %305 = vector.load %arg5[%c0_190, %c3_191, %c6_192] : memref<2x22x22xf32, #tpu.memory_space<vmem>>, vector<1x16x16xf32>
    %306 = vector.shape_cast %305 : vector<1x16x16xf32> to vector<16x16xf32>
    %307 = vector.broadcast %304 : f32 to vector<16x16xf32>
    %308 = arith.mulf %307, %306 : vector<16x16xf32>
    %309 = arith.addf %285, %308 : vector<16x16xf32>
    %c28 = arith.constant 28 : index
    %310 = memref.load %arg1[%c28] : memref<98xf32, #tpu.memory_space<smem>>
    %c0_193 = arith.constant 0 : index
    %c4_194 = arith.constant 4 : index
    %c0_195 = arith.constant 0 : index
    %311 = vector.load %arg5[%c0_193, %c4_194, %c0_195] : memref<2x22x22xf32, #tpu.memory_space<vmem>>, vector<1x16x16xf32>
    %312 = vector.shape_cast %311 : vector<1x16x16xf32> to vector<16x16xf32>
    %313 = vector.broadcast %310 : f32 to vector<16x16xf32>
    %314 = arith.mulf %313, %312 : vector<16x16xf32>
    %315 = arith.addf %291, %314 : vector<16x16xf32>
    %c29 = arith.constant 29 : index
    %316 = memref.load %arg1[%c29] : memref<98xf32, #tpu.memory_space<smem>>
    %c0_196 = arith.constant 0 : index
    %c4_197 = arith.constant 4 : index
    %c1_198 = arith.constant 1 : index
    %317 = vector.load %arg5[%c0_196, %c4_197, %c1_198] : memref<2x22x22xf32, #tpu.memory_space<vmem>>, vector<1x16x16xf32>
    %318 = vector.shape_cast %317 : vector<1x16x16xf32> to vector<16x16xf32>
    %319 = vector.broadcast %316 : f32 to vector<16x16xf32>
    %320 = arith.mulf %319, %318 : vector<16x16xf32>
    %321 = arith.addf %297, %320 : vector<16x16xf32>
    %c30 = arith.constant 30 : index
    %322 = memref.load %arg1[%c30] : memref<98xf32, #tpu.memory_space<smem>>
    %c0_199 = arith.constant 0 : index
    %c4_200 = arith.constant 4 : index
    %c2_201 = arith.constant 2 : index
    %323 = vector.load %arg5[%c0_199, %c4_200, %c2_201] : memref<2x22x22xf32, #tpu.memory_space<vmem>>, vector<1x16x16xf32>
    %324 = vector.shape_cast %323 : vector<1x16x16xf32> to vector<16x16xf32>
    %325 = vector.broadcast %322 : f32 to vector<16x16xf32>
    %326 = arith.mulf %325, %324 : vector<16x16xf32>
    %327 = arith.addf %303, %326 : vector<16x16xf32>
    %c31 = arith.constant 31 : index
    %328 = memref.load %arg1[%c31] : memref<98xf32, #tpu.memory_space<smem>>
    %c0_202 = arith.constant 0 : index
    %c4_203 = arith.constant 4 : index
    %c3_204 = arith.constant 3 : index
    %329 = vector.load %arg5[%c0_202, %c4_203, %c3_204] : memref<2x22x22xf32, #tpu.memory_space<vmem>>, vector<1x16x16xf32>
    %330 = vector.shape_cast %329 : vector<1x16x16xf32> to vector<16x16xf32>
    %331 = vector.broadcast %328 : f32 to vector<16x16xf32>
    %332 = arith.mulf %331, %330 : vector<16x16xf32>
    %333 = arith.addf %309, %332 : vector<16x16xf32>
    %c32 = arith.constant 32 : index
    %334 = memref.load %arg1[%c32] : memref<98xf32, #tpu.memory_space<smem>>
    %c0_205 = arith.constant 0 : index
    %c4_206 = arith.constant 4 : index
    %c4_207 = arith.constant 4 : index
    %335 = vector.load %arg5[%c0_205, %c4_206, %c4_207] : memref<2x22x22xf32, #tpu.memory_space<vmem>>, vector<1x16x16xf32>
    %336 = vector.shape_cast %335 : vector<1x16x16xf32> to vector<16x16xf32>
    %337 = vector.broadcast %334 : f32 to vector<16x16xf32>
    %338 = arith.mulf %337, %336 : vector<16x16xf32>
    %339 = arith.addf %315, %338 : vector<16x16xf32>
    %c33 = arith.constant 33 : index
    %340 = memref.load %arg1[%c33] : memref<98xf32, #tpu.memory_space<smem>>
    %c0_208 = arith.constant 0 : index
    %c4_209 = arith.constant 4 : index
    %c5_210 = arith.constant 5 : index
    %341 = vector.load %arg5[%c0_208, %c4_209, %c5_210] : memref<2x22x22xf32, #tpu.memory_space<vmem>>, vector<1x16x16xf32>
    %342 = vector.shape_cast %341 : vector<1x16x16xf32> to vector<16x16xf32>
    %343 = vector.broadcast %340 : f32 to vector<16x16xf32>
    %344 = arith.mulf %343, %342 : vector<16x16xf32>
    %345 = arith.addf %321, %344 : vector<16x16xf32>
    %c34 = arith.constant 34 : index
    %346 = memref.load %arg1[%c34] : memref<98xf32, #tpu.memory_space<smem>>
    %c0_211 = arith.constant 0 : index
    %c4_212 = arith.constant 4 : index
    %c6_213 = arith.constant 6 : index
    %347 = vector.load %arg5[%c0_211, %c4_212, %c6_213] : memref<2x22x22xf32, #tpu.memory_space<vmem>>, vector<1x16x16xf32>
    %348 = vector.shape_cast %347 : vector<1x16x16xf32> to vector<16x16xf32>
    %349 = vector.broadcast %346 : f32 to vector<16x16xf32>
    %350 = arith.mulf %349, %348 : vector<16x16xf32>
    %351 = arith.addf %327, %350 : vector<16x16xf32>
    %c35 = arith.constant 35 : index
    %352 = memref.load %arg1[%c35] : memref<98xf32, #tpu.memory_space<smem>>
    %c0_214 = arith.constant 0 : index
    %c5_215 = arith.constant 5 : index
    %c0_216 = arith.constant 0 : index
    %353 = vector.load %arg5[%c0_214, %c5_215, %c0_216] : memref<2x22x22xf32, #tpu.memory_space<vmem>>, vector<1x16x16xf32>
    %354 = vector.shape_cast %353 : vector<1x16x16xf32> to vector<16x16xf32>
    %355 = vector.broadcast %352 : f32 to vector<16x16xf32>
    %356 = arith.mulf %355, %354 : vector<16x16xf32>
    %357 = arith.addf %333, %356 : vector<16x16xf32>
    %c36 = arith.constant 36 : index
    %358 = memref.load %arg1[%c36] : memref<98xf32, #tpu.memory_space<smem>>
    %c0_217 = arith.constant 0 : index
    %c5_218 = arith.constant 5 : index
    %c1_219 = arith.constant 1 : index
    %359 = vector.load %arg5[%c0_217, %c5_218, %c1_219] : memref<2x22x22xf32, #tpu.memory_space<vmem>>, vector<1x16x16xf32>
    %360 = vector.shape_cast %359 : vector<1x16x16xf32> to vector<16x16xf32>
    %361 = vector.broadcast %358 : f32 to vector<16x16xf32>
    %362 = arith.mulf %361, %360 : vector<16x16xf32>
    %363 = arith.addf %339, %362 : vector<16x16xf32>
    %c37 = arith.constant 37 : index
    %364 = memref.load %arg1[%c37] : memref<98xf32, #tpu.memory_space<smem>>
    %c0_220 = arith.constant 0 : index
    %c5_221 = arith.constant 5 : index
    %c2_222 = arith.constant 2 : index
    %365 = vector.load %arg5[%c0_220, %c5_221, %c2_222] : memref<2x22x22xf32, #tpu.memory_space<vmem>>, vector<1x16x16xf32>
    %366 = vector.shape_cast %365 : vector<1x16x16xf32> to vector<16x16xf32>
    %367 = vector.broadcast %364 : f32 to vector<16x16xf32>
    %368 = arith.mulf %367, %366 : vector<16x16xf32>
    %369 = arith.addf %345, %368 : vector<16x16xf32>
    %c38 = arith.constant 38 : index
    %370 = memref.load %arg1[%c38] : memref<98xf32, #tpu.memory_space<smem>>
    %c0_223 = arith.constant 0 : index
    %c5_224 = arith.constant 5 : index
    %c3_225 = arith.constant 3 : index
    %371 = vector.load %arg5[%c0_223, %c5_224, %c3_225] : memref<2x22x22xf32, #tpu.memory_space<vmem>>, vector<1x16x16xf32>
    %372 = vector.shape_cast %371 : vector<1x16x16xf32> to vector<16x16xf32>
    %373 = vector.broadcast %370 : f32 to vector<16x16xf32>
    %374 = arith.mulf %373, %372 : vector<16x16xf32>
    %375 = arith.addf %351, %374 : vector<16x16xf32>
    %c39 = arith.constant 39 : index
    %376 = memref.load %arg1[%c39] : memref<98xf32, #tpu.memory_space<smem>>
    %c0_226 = arith.constant 0 : index
    %c5_227 = arith.constant 5 : index
    %c4_228 = arith.constant 4 : index
    %377 = vector.load %arg5[%c0_226, %c5_227, %c4_228] : memref<2x22x22xf32, #tpu.memory_space<vmem>>, vector<1x16x16xf32>
    %378 = vector.shape_cast %377 : vector<1x16x16xf32> to vector<16x16xf32>
    %379 = vector.broadcast %376 : f32 to vector<16x16xf32>
    %380 = arith.mulf %379, %378 : vector<16x16xf32>
    %381 = arith.addf %357, %380 : vector<16x16xf32>
    %c40 = arith.constant 40 : index
    %382 = memref.load %arg1[%c40] : memref<98xf32, #tpu.memory_space<smem>>
    %c0_229 = arith.constant 0 : index
    %c5_230 = arith.constant 5 : index
    %c5_231 = arith.constant 5 : index
    %383 = vector.load %arg5[%c0_229, %c5_230, %c5_231] : memref<2x22x22xf32, #tpu.memory_space<vmem>>, vector<1x16x16xf32>
    %384 = vector.shape_cast %383 : vector<1x16x16xf32> to vector<16x16xf32>
    %385 = vector.broadcast %382 : f32 to vector<16x16xf32>
    %386 = arith.mulf %385, %384 : vector<16x16xf32>
    %387 = arith.addf %363, %386 : vector<16x16xf32>
    %c41 = arith.constant 41 : index
    %388 = memref.load %arg1[%c41] : memref<98xf32, #tpu.memory_space<smem>>
    %c0_232 = arith.constant 0 : index
    %c5_233 = arith.constant 5 : index
    %c6_234 = arith.constant 6 : index
    %389 = vector.load %arg5[%c0_232, %c5_233, %c6_234] : memref<2x22x22xf32, #tpu.memory_space<vmem>>, vector<1x16x16xf32>
    %390 = vector.shape_cast %389 : vector<1x16x16xf32> to vector<16x16xf32>
    %391 = vector.broadcast %388 : f32 to vector<16x16xf32>
    %392 = arith.mulf %391, %390 : vector<16x16xf32>
    %393 = arith.addf %369, %392 : vector<16x16xf32>
    %c42 = arith.constant 42 : index
    %394 = memref.load %arg1[%c42] : memref<98xf32, #tpu.memory_space<smem>>
    %c0_235 = arith.constant 0 : index
    %c6_236 = arith.constant 6 : index
    %c0_237 = arith.constant 0 : index
    %395 = vector.load %arg5[%c0_235, %c6_236, %c0_237] : memref<2x22x22xf32, #tpu.memory_space<vmem>>, vector<1x16x16xf32>
    %396 = vector.shape_cast %395 : vector<1x16x16xf32> to vector<16x16xf32>
    %397 = vector.broadcast %394 : f32 to vector<16x16xf32>
    %398 = arith.mulf %397, %396 : vector<16x16xf32>
    %399 = arith.addf %375, %398 : vector<16x16xf32>
    %c43 = arith.constant 43 : index
    %400 = memref.load %arg1[%c43] : memref<98xf32, #tpu.memory_space<smem>>
    %c0_238 = arith.constant 0 : index
    %c6_239 = arith.constant 6 : index
    %c1_240 = arith.constant 1 : index
    %401 = vector.load %arg5[%c0_238, %c6_239, %c1_240] : memref<2x22x22xf32, #tpu.memory_space<vmem>>, vector<1x16x16xf32>
    %402 = vector.shape_cast %401 : vector<1x16x16xf32> to vector<16x16xf32>
    %403 = vector.broadcast %400 : f32 to vector<16x16xf32>
    %404 = arith.mulf %403, %402 : vector<16x16xf32>
    %405 = arith.addf %381, %404 : vector<16x16xf32>
    %c44 = arith.constant 44 : index
    %406 = memref.load %arg1[%c44] : memref<98xf32, #tpu.memory_space<smem>>
    %c0_241 = arith.constant 0 : index
    %c6_242 = arith.constant 6 : index
    %c2_243 = arith.constant 2 : index
    %407 = vector.load %arg5[%c0_241, %c6_242, %c2_243] : memref<2x22x22xf32, #tpu.memory_space<vmem>>, vector<1x16x16xf32>
    %408 = vector.shape_cast %407 : vector<1x16x16xf32> to vector<16x16xf32>
    %409 = vector.broadcast %406 : f32 to vector<16x16xf32>
    %410 = arith.mulf %409, %408 : vector<16x16xf32>
    %411 = arith.addf %387, %410 : vector<16x16xf32>
    %c45 = arith.constant 45 : index
    %412 = memref.load %arg1[%c45] : memref<98xf32, #tpu.memory_space<smem>>
    %c0_244 = arith.constant 0 : index
    %c6_245 = arith.constant 6 : index
    %c3_246 = arith.constant 3 : index
    %413 = vector.load %arg5[%c0_244, %c6_245, %c3_246] : memref<2x22x22xf32, #tpu.memory_space<vmem>>, vector<1x16x16xf32>
    %414 = vector.shape_cast %413 : vector<1x16x16xf32> to vector<16x16xf32>
    %415 = vector.broadcast %412 : f32 to vector<16x16xf32>
    %416 = arith.mulf %415, %414 : vector<16x16xf32>
    %417 = arith.addf %393, %416 : vector<16x16xf32>
    %c46 = arith.constant 46 : index
    %418 = memref.load %arg1[%c46] : memref<98xf32, #tpu.memory_space<smem>>
    %c0_247 = arith.constant 0 : index
    %c6_248 = arith.constant 6 : index
    %c4_249 = arith.constant 4 : index
    %419 = vector.load %arg5[%c0_247, %c6_248, %c4_249] : memref<2x22x22xf32, #tpu.memory_space<vmem>>, vector<1x16x16xf32>
    %420 = vector.shape_cast %419 : vector<1x16x16xf32> to vector<16x16xf32>
    %421 = vector.broadcast %418 : f32 to vector<16x16xf32>
    %422 = arith.mulf %421, %420 : vector<16x16xf32>
    %423 = arith.addf %399, %422 : vector<16x16xf32>
    %c47 = arith.constant 47 : index
    %424 = memref.load %arg1[%c47] : memref<98xf32, #tpu.memory_space<smem>>
    %c0_250 = arith.constant 0 : index
    %c6_251 = arith.constant 6 : index
    %c5_252 = arith.constant 5 : index
    %425 = vector.load %arg5[%c0_250, %c6_251, %c5_252] : memref<2x22x22xf32, #tpu.memory_space<vmem>>, vector<1x16x16xf32>
    %426 = vector.shape_cast %425 : vector<1x16x16xf32> to vector<16x16xf32>
    %427 = vector.broadcast %424 : f32 to vector<16x16xf32>
    %428 = arith.mulf %427, %426 : vector<16x16xf32>
    %429 = arith.addf %405, %428 : vector<16x16xf32>
    %c48 = arith.constant 48 : index
    %430 = memref.load %arg1[%c48] : memref<98xf32, #tpu.memory_space<smem>>
    %c0_253 = arith.constant 0 : index
    %c6_254 = arith.constant 6 : index
    %c6_255 = arith.constant 6 : index
    %431 = vector.load %arg5[%c0_253, %c6_254, %c6_255] : memref<2x22x22xf32, #tpu.memory_space<vmem>>, vector<1x16x16xf32>
    %432 = vector.shape_cast %431 : vector<1x16x16xf32> to vector<16x16xf32>
    %433 = vector.broadcast %430 : f32 to vector<16x16xf32>
    %434 = arith.mulf %433, %432 : vector<16x16xf32>
    %435 = arith.addf %411, %434 : vector<16x16xf32>
    %c49 = arith.constant 49 : index
    %436 = memref.load %arg1[%c49] : memref<98xf32, #tpu.memory_space<smem>>
    %c1_256 = arith.constant 1 : index
    %c0_257 = arith.constant 0 : index
    %c0_258 = arith.constant 0 : index
    %437 = vector.load %arg5[%c1_256, %c0_257, %c0_258] : memref<2x22x22xf32, #tpu.memory_space<vmem>>, vector<1x16x16xf32>
    %438 = vector.shape_cast %437 : vector<1x16x16xf32> to vector<16x16xf32>
    %439 = vector.broadcast %436 : f32 to vector<16x16xf32>
    %440 = arith.mulf %439, %438 : vector<16x16xf32>
    %441 = arith.addf %417, %440 : vector<16x16xf32>
    %c50 = arith.constant 50 : index
    %442 = memref.load %arg1[%c50] : memref<98xf32, #tpu.memory_space<smem>>
    %c1_259 = arith.constant 1 : index
    %c0_260 = arith.constant 0 : index
    %c1_261 = arith.constant 1 : index
    %443 = vector.load %arg5[%c1_259, %c0_260, %c1_261] : memref<2x22x22xf32, #tpu.memory_space<vmem>>, vector<1x16x16xf32>
    %444 = vector.shape_cast %443 : vector<1x16x16xf32> to vector<16x16xf32>
    %445 = vector.broadcast %442 : f32 to vector<16x16xf32>
    %446 = arith.mulf %445, %444 : vector<16x16xf32>
    %447 = arith.addf %423, %446 : vector<16x16xf32>
    %c51 = arith.constant 51 : index
    %448 = memref.load %arg1[%c51] : memref<98xf32, #tpu.memory_space<smem>>
    %c1_262 = arith.constant 1 : index
    %c0_263 = arith.constant 0 : index
    %c2_264 = arith.constant 2 : index
    %449 = vector.load %arg5[%c1_262, %c0_263, %c2_264] : memref<2x22x22xf32, #tpu.memory_space<vmem>>, vector<1x16x16xf32>
    %450 = vector.shape_cast %449 : vector<1x16x16xf32> to vector<16x16xf32>
    %451 = vector.broadcast %448 : f32 to vector<16x16xf32>
    %452 = arith.mulf %451, %450 : vector<16x16xf32>
    %453 = arith.addf %429, %452 : vector<16x16xf32>
    %c52 = arith.constant 52 : index
    %454 = memref.load %arg1[%c52] : memref<98xf32, #tpu.memory_space<smem>>
    %c1_265 = arith.constant 1 : index
    %c0_266 = arith.constant 0 : index
    %c3_267 = arith.constant 3 : index
    %455 = vector.load %arg5[%c1_265, %c0_266, %c3_267] : memref<2x22x22xf32, #tpu.memory_space<vmem>>, vector<1x16x16xf32>
    %456 = vector.shape_cast %455 : vector<1x16x16xf32> to vector<16x16xf32>
    %457 = vector.broadcast %454 : f32 to vector<16x16xf32>
    %458 = arith.mulf %457, %456 : vector<16x16xf32>
    %459 = arith.addf %435, %458 : vector<16x16xf32>
    %c53 = arith.constant 53 : index
    %460 = memref.load %arg1[%c53] : memref<98xf32, #tpu.memory_space<smem>>
    %c1_268 = arith.constant 1 : index
    %c0_269 = arith.constant 0 : index
    %c4_270 = arith.constant 4 : index
    %461 = vector.load %arg5[%c1_268, %c0_269, %c4_270] : memref<2x22x22xf32, #tpu.memory_space<vmem>>, vector<1x16x16xf32>
    %462 = vector.shape_cast %461 : vector<1x16x16xf32> to vector<16x16xf32>
    %463 = vector.broadcast %460 : f32 to vector<16x16xf32>
    %464 = arith.mulf %463, %462 : vector<16x16xf32>
    %465 = arith.addf %441, %464 : vector<16x16xf32>
    %c54 = arith.constant 54 : index
    %466 = memref.load %arg1[%c54] : memref<98xf32, #tpu.memory_space<smem>>
    %c1_271 = arith.constant 1 : index
    %c0_272 = arith.constant 0 : index
    %c5_273 = arith.constant 5 : index
    %467 = vector.load %arg5[%c1_271, %c0_272, %c5_273] : memref<2x22x22xf32, #tpu.memory_space<vmem>>, vector<1x16x16xf32>
    %468 = vector.shape_cast %467 : vector<1x16x16xf32> to vector<16x16xf32>
    %469 = vector.broadcast %466 : f32 to vector<16x16xf32>
    %470 = arith.mulf %469, %468 : vector<16x16xf32>
    %471 = arith.addf %447, %470 : vector<16x16xf32>
    %c55 = arith.constant 55 : index
    %472 = memref.load %arg1[%c55] : memref<98xf32, #tpu.memory_space<smem>>
    %c1_274 = arith.constant 1 : index
    %c0_275 = arith.constant 0 : index
    %c6_276 = arith.constant 6 : index
    %473 = vector.load %arg5[%c1_274, %c0_275, %c6_276] : memref<2x22x22xf32, #tpu.memory_space<vmem>>, vector<1x16x16xf32>
    %474 = vector.shape_cast %473 : vector<1x16x16xf32> to vector<16x16xf32>
    %475 = vector.broadcast %472 : f32 to vector<16x16xf32>
    %476 = arith.mulf %475, %474 : vector<16x16xf32>
    %477 = arith.addf %453, %476 : vector<16x16xf32>
    %c56 = arith.constant 56 : index
    %478 = memref.load %arg1[%c56] : memref<98xf32, #tpu.memory_space<smem>>
    %c1_277 = arith.constant 1 : index
    %c1_278 = arith.constant 1 : index
    %c0_279 = arith.constant 0 : index
    %479 = vector.load %arg5[%c1_277, %c1_278, %c0_279] : memref<2x22x22xf32, #tpu.memory_space<vmem>>, vector<1x16x16xf32>
    %480 = vector.shape_cast %479 : vector<1x16x16xf32> to vector<16x16xf32>
    %481 = vector.broadcast %478 : f32 to vector<16x16xf32>
    %482 = arith.mulf %481, %480 : vector<16x16xf32>
    %483 = arith.addf %459, %482 : vector<16x16xf32>
    %c57 = arith.constant 57 : index
    %484 = memref.load %arg1[%c57] : memref<98xf32, #tpu.memory_space<smem>>
    %c1_280 = arith.constant 1 : index
    %c1_281 = arith.constant 1 : index
    %c1_282 = arith.constant 1 : index
    %485 = vector.load %arg5[%c1_280, %c1_281, %c1_282] : memref<2x22x22xf32, #tpu.memory_space<vmem>>, vector<1x16x16xf32>
    %486 = vector.shape_cast %485 : vector<1x16x16xf32> to vector<16x16xf32>
    %487 = vector.broadcast %484 : f32 to vector<16x16xf32>
    %488 = arith.mulf %487, %486 : vector<16x16xf32>
    %489 = arith.addf %465, %488 : vector<16x16xf32>
    %c58 = arith.constant 58 : index
    %490 = memref.load %arg1[%c58] : memref<98xf32, #tpu.memory_space<smem>>
    %c1_283 = arith.constant 1 : index
    %c1_284 = arith.constant 1 : index
    %c2_285 = arith.constant 2 : index
    %491 = vector.load %arg5[%c1_283, %c1_284, %c2_285] : memref<2x22x22xf32, #tpu.memory_space<vmem>>, vector<1x16x16xf32>
    %492 = vector.shape_cast %491 : vector<1x16x16xf32> to vector<16x16xf32>
    %493 = vector.broadcast %490 : f32 to vector<16x16xf32>
    %494 = arith.mulf %493, %492 : vector<16x16xf32>
    %495 = arith.addf %471, %494 : vector<16x16xf32>
    %c59 = arith.constant 59 : index
    %496 = memref.load %arg1[%c59] : memref<98xf32, #tpu.memory_space<smem>>
    %c1_286 = arith.constant 1 : index
    %c1_287 = arith.constant 1 : index
    %c3_288 = arith.constant 3 : index
    %497 = vector.load %arg5[%c1_286, %c1_287, %c3_288] : memref<2x22x22xf32, #tpu.memory_space<vmem>>, vector<1x16x16xf32>
    %498 = vector.shape_cast %497 : vector<1x16x16xf32> to vector<16x16xf32>
    %499 = vector.broadcast %496 : f32 to vector<16x16xf32>
    %500 = arith.mulf %499, %498 : vector<16x16xf32>
    %501 = arith.addf %477, %500 : vector<16x16xf32>
    %c60 = arith.constant 60 : index
    %502 = memref.load %arg1[%c60] : memref<98xf32, #tpu.memory_space<smem>>
    %c1_289 = arith.constant 1 : index
    %c1_290 = arith.constant 1 : index
    %c4_291 = arith.constant 4 : index
    %503 = vector.load %arg5[%c1_289, %c1_290, %c4_291] : memref<2x22x22xf32, #tpu.memory_space<vmem>>, vector<1x16x16xf32>
    %504 = vector.shape_cast %503 : vector<1x16x16xf32> to vector<16x16xf32>
    %505 = vector.broadcast %502 : f32 to vector<16x16xf32>
    %506 = arith.mulf %505, %504 : vector<16x16xf32>
    %507 = arith.addf %483, %506 : vector<16x16xf32>
    %c61 = arith.constant 61 : index
    %508 = memref.load %arg1[%c61] : memref<98xf32, #tpu.memory_space<smem>>
    %c1_292 = arith.constant 1 : index
    %c1_293 = arith.constant 1 : index
    %c5_294 = arith.constant 5 : index
    %509 = vector.load %arg5[%c1_292, %c1_293, %c5_294] : memref<2x22x22xf32, #tpu.memory_space<vmem>>, vector<1x16x16xf32>
    %510 = vector.shape_cast %509 : vector<1x16x16xf32> to vector<16x16xf32>
    %511 = vector.broadcast %508 : f32 to vector<16x16xf32>
    %512 = arith.mulf %511, %510 : vector<16x16xf32>
    %513 = arith.addf %489, %512 : vector<16x16xf32>
    %c62 = arith.constant 62 : index
    %514 = memref.load %arg1[%c62] : memref<98xf32, #tpu.memory_space<smem>>
    %c1_295 = arith.constant 1 : index
    %c1_296 = arith.constant 1 : index
    %c6_297 = arith.constant 6 : index
    %515 = vector.load %arg5[%c1_295, %c1_296, %c6_297] : memref<2x22x22xf32, #tpu.memory_space<vmem>>, vector<1x16x16xf32>
    %516 = vector.shape_cast %515 : vector<1x16x16xf32> to vector<16x16xf32>
    %517 = vector.broadcast %514 : f32 to vector<16x16xf32>
    %518 = arith.mulf %517, %516 : vector<16x16xf32>
    %519 = arith.addf %495, %518 : vector<16x16xf32>
    %c63 = arith.constant 63 : index
    %520 = memref.load %arg1[%c63] : memref<98xf32, #tpu.memory_space<smem>>
    %c1_298 = arith.constant 1 : index
    %c2_299 = arith.constant 2 : index
    %c0_300 = arith.constant 0 : index
    %521 = vector.load %arg5[%c1_298, %c2_299, %c0_300] : memref<2x22x22xf32, #tpu.memory_space<vmem>>, vector<1x16x16xf32>
    %522 = vector.shape_cast %521 : vector<1x16x16xf32> to vector<16x16xf32>
    %523 = vector.broadcast %520 : f32 to vector<16x16xf32>
    %524 = arith.mulf %523, %522 : vector<16x16xf32>
    %525 = arith.addf %501, %524 : vector<16x16xf32>
    %c64 = arith.constant 64 : index
    %526 = memref.load %arg1[%c64] : memref<98xf32, #tpu.memory_space<smem>>
    %c1_301 = arith.constant 1 : index
    %c2_302 = arith.constant 2 : index
    %c1_303 = arith.constant 1 : index
    %527 = vector.load %arg5[%c1_301, %c2_302, %c1_303] : memref<2x22x22xf32, #tpu.memory_space<vmem>>, vector<1x16x16xf32>
    %528 = vector.shape_cast %527 : vector<1x16x16xf32> to vector<16x16xf32>
    %529 = vector.broadcast %526 : f32 to vector<16x16xf32>
    %530 = arith.mulf %529, %528 : vector<16x16xf32>
    %531 = arith.addf %507, %530 : vector<16x16xf32>
    %c65 = arith.constant 65 : index
    %532 = memref.load %arg1[%c65] : memref<98xf32, #tpu.memory_space<smem>>
    %c1_304 = arith.constant 1 : index
    %c2_305 = arith.constant 2 : index
    %c2_306 = arith.constant 2 : index
    %533 = vector.load %arg5[%c1_304, %c2_305, %c2_306] : memref<2x22x22xf32, #tpu.memory_space<vmem>>, vector<1x16x16xf32>
    %534 = vector.shape_cast %533 : vector<1x16x16xf32> to vector<16x16xf32>
    %535 = vector.broadcast %532 : f32 to vector<16x16xf32>
    %536 = arith.mulf %535, %534 : vector<16x16xf32>
    %537 = arith.addf %513, %536 : vector<16x16xf32>
    %c66 = arith.constant 66 : index
    %538 = memref.load %arg1[%c66] : memref<98xf32, #tpu.memory_space<smem>>
    %c1_307 = arith.constant 1 : index
    %c2_308 = arith.constant 2 : index
    %c3_309 = arith.constant 3 : index
    %539 = vector.load %arg5[%c1_307, %c2_308, %c3_309] : memref<2x22x22xf32, #tpu.memory_space<vmem>>, vector<1x16x16xf32>
    %540 = vector.shape_cast %539 : vector<1x16x16xf32> to vector<16x16xf32>
    %541 = vector.broadcast %538 : f32 to vector<16x16xf32>
    %542 = arith.mulf %541, %540 : vector<16x16xf32>
    %543 = arith.addf %519, %542 : vector<16x16xf32>
    %c67 = arith.constant 67 : index
    %544 = memref.load %arg1[%c67] : memref<98xf32, #tpu.memory_space<smem>>
    %c1_310 = arith.constant 1 : index
    %c2_311 = arith.constant 2 : index
    %c4_312 = arith.constant 4 : index
    %545 = vector.load %arg5[%c1_310, %c2_311, %c4_312] : memref<2x22x22xf32, #tpu.memory_space<vmem>>, vector<1x16x16xf32>
    %546 = vector.shape_cast %545 : vector<1x16x16xf32> to vector<16x16xf32>
    %547 = vector.broadcast %544 : f32 to vector<16x16xf32>
    %548 = arith.mulf %547, %546 : vector<16x16xf32>
    %549 = arith.addf %525, %548 : vector<16x16xf32>
    %c68 = arith.constant 68 : index
    %550 = memref.load %arg1[%c68] : memref<98xf32, #tpu.memory_space<smem>>
    %c1_313 = arith.constant 1 : index
    %c2_314 = arith.constant 2 : index
    %c5_315 = arith.constant 5 : index
    %551 = vector.load %arg5[%c1_313, %c2_314, %c5_315] : memref<2x22x22xf32, #tpu.memory_space<vmem>>, vector<1x16x16xf32>
    %552 = vector.shape_cast %551 : vector<1x16x16xf32> to vector<16x16xf32>
    %553 = vector.broadcast %550 : f32 to vector<16x16xf32>
    %554 = arith.mulf %553, %552 : vector<16x16xf32>
    %555 = arith.addf %531, %554 : vector<16x16xf32>
    %c69 = arith.constant 69 : index
    %556 = memref.load %arg1[%c69] : memref<98xf32, #tpu.memory_space<smem>>
    %c1_316 = arith.constant 1 : index
    %c2_317 = arith.constant 2 : index
    %c6_318 = arith.constant 6 : index
    %557 = vector.load %arg5[%c1_316, %c2_317, %c6_318] : memref<2x22x22xf32, #tpu.memory_space<vmem>>, vector<1x16x16xf32>
    %558 = vector.shape_cast %557 : vector<1x16x16xf32> to vector<16x16xf32>
    %559 = vector.broadcast %556 : f32 to vector<16x16xf32>
    %560 = arith.mulf %559, %558 : vector<16x16xf32>
    %561 = arith.addf %537, %560 : vector<16x16xf32>
    %c70 = arith.constant 70 : index
    %562 = memref.load %arg1[%c70] : memref<98xf32, #tpu.memory_space<smem>>
    %c1_319 = arith.constant 1 : index
    %c3_320 = arith.constant 3 : index
    %c0_321 = arith.constant 0 : index
    %563 = vector.load %arg5[%c1_319, %c3_320, %c0_321] : memref<2x22x22xf32, #tpu.memory_space<vmem>>, vector<1x16x16xf32>
    %564 = vector.shape_cast %563 : vector<1x16x16xf32> to vector<16x16xf32>
    %565 = vector.broadcast %562 : f32 to vector<16x16xf32>
    %566 = arith.mulf %565, %564 : vector<16x16xf32>
    %567 = arith.addf %543, %566 : vector<16x16xf32>
    %c71 = arith.constant 71 : index
    %568 = memref.load %arg1[%c71] : memref<98xf32, #tpu.memory_space<smem>>
    %c1_322 = arith.constant 1 : index
    %c3_323 = arith.constant 3 : index
    %c1_324 = arith.constant 1 : index
    %569 = vector.load %arg5[%c1_322, %c3_323, %c1_324] : memref<2x22x22xf32, #tpu.memory_space<vmem>>, vector<1x16x16xf32>
    %570 = vector.shape_cast %569 : vector<1x16x16xf32> to vector<16x16xf32>
    %571 = vector.broadcast %568 : f32 to vector<16x16xf32>
    %572 = arith.mulf %571, %570 : vector<16x16xf32>
    %573 = arith.addf %549, %572 : vector<16x16xf32>
    %c72 = arith.constant 72 : index
    %574 = memref.load %arg1[%c72] : memref<98xf32, #tpu.memory_space<smem>>
    %c1_325 = arith.constant 1 : index
    %c3_326 = arith.constant 3 : index
    %c2_327 = arith.constant 2 : index
    %575 = vector.load %arg5[%c1_325, %c3_326, %c2_327] : memref<2x22x22xf32, #tpu.memory_space<vmem>>, vector<1x16x16xf32>
    %576 = vector.shape_cast %575 : vector<1x16x16xf32> to vector<16x16xf32>
    %577 = vector.broadcast %574 : f32 to vector<16x16xf32>
    %578 = arith.mulf %577, %576 : vector<16x16xf32>
    %579 = arith.addf %555, %578 : vector<16x16xf32>
    %c73 = arith.constant 73 : index
    %580 = memref.load %arg1[%c73] : memref<98xf32, #tpu.memory_space<smem>>
    %c1_328 = arith.constant 1 : index
    %c3_329 = arith.constant 3 : index
    %c3_330 = arith.constant 3 : index
    %581 = vector.load %arg5[%c1_328, %c3_329, %c3_330] : memref<2x22x22xf32, #tpu.memory_space<vmem>>, vector<1x16x16xf32>
    %582 = vector.shape_cast %581 : vector<1x16x16xf32> to vector<16x16xf32>
    %583 = vector.broadcast %580 : f32 to vector<16x16xf32>
    %584 = arith.mulf %583, %582 : vector<16x16xf32>
    %585 = arith.addf %561, %584 : vector<16x16xf32>
    %c74 = arith.constant 74 : index
    %586 = memref.load %arg1[%c74] : memref<98xf32, #tpu.memory_space<smem>>
    %c1_331 = arith.constant 1 : index
    %c3_332 = arith.constant 3 : index
    %c4_333 = arith.constant 4 : index
    %587 = vector.load %arg5[%c1_331, %c3_332, %c4_333] : memref<2x22x22xf32, #tpu.memory_space<vmem>>, vector<1x16x16xf32>
    %588 = vector.shape_cast %587 : vector<1x16x16xf32> to vector<16x16xf32>
    %589 = vector.broadcast %586 : f32 to vector<16x16xf32>
    %590 = arith.mulf %589, %588 : vector<16x16xf32>
    %591 = arith.addf %567, %590 : vector<16x16xf32>
    %c75 = arith.constant 75 : index
    %592 = memref.load %arg1[%c75] : memref<98xf32, #tpu.memory_space<smem>>
    %c1_334 = arith.constant 1 : index
    %c3_335 = arith.constant 3 : index
    %c5_336 = arith.constant 5 : index
    %593 = vector.load %arg5[%c1_334, %c3_335, %c5_336] : memref<2x22x22xf32, #tpu.memory_space<vmem>>, vector<1x16x16xf32>
    %594 = vector.shape_cast %593 : vector<1x16x16xf32> to vector<16x16xf32>
    %595 = vector.broadcast %592 : f32 to vector<16x16xf32>
    %596 = arith.mulf %595, %594 : vector<16x16xf32>
    %597 = arith.addf %573, %596 : vector<16x16xf32>
    %c76 = arith.constant 76 : index
    %598 = memref.load %arg1[%c76] : memref<98xf32, #tpu.memory_space<smem>>
    %c1_337 = arith.constant 1 : index
    %c3_338 = arith.constant 3 : index
    %c6_339 = arith.constant 6 : index
    %599 = vector.load %arg5[%c1_337, %c3_338, %c6_339] : memref<2x22x22xf32, #tpu.memory_space<vmem>>, vector<1x16x16xf32>
    %600 = vector.shape_cast %599 : vector<1x16x16xf32> to vector<16x16xf32>
    %601 = vector.broadcast %598 : f32 to vector<16x16xf32>
    %602 = arith.mulf %601, %600 : vector<16x16xf32>
    %603 = arith.addf %579, %602 : vector<16x16xf32>
    %c77 = arith.constant 77 : index
    %604 = memref.load %arg1[%c77] : memref<98xf32, #tpu.memory_space<smem>>
    %c1_340 = arith.constant 1 : index
    %c4_341 = arith.constant 4 : index
    %c0_342 = arith.constant 0 : index
    %605 = vector.load %arg5[%c1_340, %c4_341, %c0_342] : memref<2x22x22xf32, #tpu.memory_space<vmem>>, vector<1x16x16xf32>
    %606 = vector.shape_cast %605 : vector<1x16x16xf32> to vector<16x16xf32>
    %607 = vector.broadcast %604 : f32 to vector<16x16xf32>
    %608 = arith.mulf %607, %606 : vector<16x16xf32>
    %609 = arith.addf %585, %608 : vector<16x16xf32>
    %c78 = arith.constant 78 : index
    %610 = memref.load %arg1[%c78] : memref<98xf32, #tpu.memory_space<smem>>
    %c1_343 = arith.constant 1 : index
    %c4_344 = arith.constant 4 : index
    %c1_345 = arith.constant 1 : index
    %611 = vector.load %arg5[%c1_343, %c4_344, %c1_345] : memref<2x22x22xf32, #tpu.memory_space<vmem>>, vector<1x16x16xf32>
    %612 = vector.shape_cast %611 : vector<1x16x16xf32> to vector<16x16xf32>
    %613 = vector.broadcast %610 : f32 to vector<16x16xf32>
    %614 = arith.mulf %613, %612 : vector<16x16xf32>
    %615 = arith.addf %591, %614 : vector<16x16xf32>
    %c79 = arith.constant 79 : index
    %616 = memref.load %arg1[%c79] : memref<98xf32, #tpu.memory_space<smem>>
    %c1_346 = arith.constant 1 : index
    %c4_347 = arith.constant 4 : index
    %c2_348 = arith.constant 2 : index
    %617 = vector.load %arg5[%c1_346, %c4_347, %c2_348] : memref<2x22x22xf32, #tpu.memory_space<vmem>>, vector<1x16x16xf32>
    %618 = vector.shape_cast %617 : vector<1x16x16xf32> to vector<16x16xf32>
    %619 = vector.broadcast %616 : f32 to vector<16x16xf32>
    %620 = arith.mulf %619, %618 : vector<16x16xf32>
    %621 = arith.addf %597, %620 : vector<16x16xf32>
    %c80 = arith.constant 80 : index
    %622 = memref.load %arg1[%c80] : memref<98xf32, #tpu.memory_space<smem>>
    %c1_349 = arith.constant 1 : index
    %c4_350 = arith.constant 4 : index
    %c3_351 = arith.constant 3 : index
    %623 = vector.load %arg5[%c1_349, %c4_350, %c3_351] : memref<2x22x22xf32, #tpu.memory_space<vmem>>, vector<1x16x16xf32>
    %624 = vector.shape_cast %623 : vector<1x16x16xf32> to vector<16x16xf32>
    %625 = vector.broadcast %622 : f32 to vector<16x16xf32>
    %626 = arith.mulf %625, %624 : vector<16x16xf32>
    %627 = arith.addf %603, %626 : vector<16x16xf32>
    %c81 = arith.constant 81 : index
    %628 = memref.load %arg1[%c81] : memref<98xf32, #tpu.memory_space<smem>>
    %c1_352 = arith.constant 1 : index
    %c4_353 = arith.constant 4 : index
    %c4_354 = arith.constant 4 : index
    %629 = vector.load %arg5[%c1_352, %c4_353, %c4_354] : memref<2x22x22xf32, #tpu.memory_space<vmem>>, vector<1x16x16xf32>
    %630 = vector.shape_cast %629 : vector<1x16x16xf32> to vector<16x16xf32>
    %631 = vector.broadcast %628 : f32 to vector<16x16xf32>
    %632 = arith.mulf %631, %630 : vector<16x16xf32>
    %633 = arith.addf %609, %632 : vector<16x16xf32>
    %c82 = arith.constant 82 : index
    %634 = memref.load %arg1[%c82] : memref<98xf32, #tpu.memory_space<smem>>
    %c1_355 = arith.constant 1 : index
    %c4_356 = arith.constant 4 : index
    %c5_357 = arith.constant 5 : index
    %635 = vector.load %arg5[%c1_355, %c4_356, %c5_357] : memref<2x22x22xf32, #tpu.memory_space<vmem>>, vector<1x16x16xf32>
    %636 = vector.shape_cast %635 : vector<1x16x16xf32> to vector<16x16xf32>
    %637 = vector.broadcast %634 : f32 to vector<16x16xf32>
    %638 = arith.mulf %637, %636 : vector<16x16xf32>
    %639 = arith.addf %615, %638 : vector<16x16xf32>
    %c83 = arith.constant 83 : index
    %640 = memref.load %arg1[%c83] : memref<98xf32, #tpu.memory_space<smem>>
    %c1_358 = arith.constant 1 : index
    %c4_359 = arith.constant 4 : index
    %c6_360 = arith.constant 6 : index
    %641 = vector.load %arg5[%c1_358, %c4_359, %c6_360] : memref<2x22x22xf32, #tpu.memory_space<vmem>>, vector<1x16x16xf32>
    %642 = vector.shape_cast %641 : vector<1x16x16xf32> to vector<16x16xf32>
    %643 = vector.broadcast %640 : f32 to vector<16x16xf32>
    %644 = arith.mulf %643, %642 : vector<16x16xf32>
    %645 = arith.addf %621, %644 : vector<16x16xf32>
    %c84 = arith.constant 84 : index
    %646 = memref.load %arg1[%c84] : memref<98xf32, #tpu.memory_space<smem>>
    %c1_361 = arith.constant 1 : index
    %c5_362 = arith.constant 5 : index
    %c0_363 = arith.constant 0 : index
    %647 = vector.load %arg5[%c1_361, %c5_362, %c0_363] : memref<2x22x22xf32, #tpu.memory_space<vmem>>, vector<1x16x16xf32>
    %648 = vector.shape_cast %647 : vector<1x16x16xf32> to vector<16x16xf32>
    %649 = vector.broadcast %646 : f32 to vector<16x16xf32>
    %650 = arith.mulf %649, %648 : vector<16x16xf32>
    %651 = arith.addf %627, %650 : vector<16x16xf32>
    %c85 = arith.constant 85 : index
    %652 = memref.load %arg1[%c85] : memref<98xf32, #tpu.memory_space<smem>>
    %c1_364 = arith.constant 1 : index
    %c5_365 = arith.constant 5 : index
    %c1_366 = arith.constant 1 : index
    %653 = vector.load %arg5[%c1_364, %c5_365, %c1_366] : memref<2x22x22xf32, #tpu.memory_space<vmem>>, vector<1x16x16xf32>
    %654 = vector.shape_cast %653 : vector<1x16x16xf32> to vector<16x16xf32>
    %655 = vector.broadcast %652 : f32 to vector<16x16xf32>
    %656 = arith.mulf %655, %654 : vector<16x16xf32>
    %657 = arith.addf %633, %656 : vector<16x16xf32>
    %c86 = arith.constant 86 : index
    %658 = memref.load %arg1[%c86] : memref<98xf32, #tpu.memory_space<smem>>
    %c1_367 = arith.constant 1 : index
    %c5_368 = arith.constant 5 : index
    %c2_369 = arith.constant 2 : index
    %659 = vector.load %arg5[%c1_367, %c5_368, %c2_369] : memref<2x22x22xf32, #tpu.memory_space<vmem>>, vector<1x16x16xf32>
    %660 = vector.shape_cast %659 : vector<1x16x16xf32> to vector<16x16xf32>
    %661 = vector.broadcast %658 : f32 to vector<16x16xf32>
    %662 = arith.mulf %661, %660 : vector<16x16xf32>
    %663 = arith.addf %639, %662 : vector<16x16xf32>
    %c87 = arith.constant 87 : index
    %664 = memref.load %arg1[%c87] : memref<98xf32, #tpu.memory_space<smem>>
    %c1_370 = arith.constant 1 : index
    %c5_371 = arith.constant 5 : index
    %c3_372 = arith.constant 3 : index
    %665 = vector.load %arg5[%c1_370, %c5_371, %c3_372] : memref<2x22x22xf32, #tpu.memory_space<vmem>>, vector<1x16x16xf32>
    %666 = vector.shape_cast %665 : vector<1x16x16xf32> to vector<16x16xf32>
    %667 = vector.broadcast %664 : f32 to vector<16x16xf32>
    %668 = arith.mulf %667, %666 : vector<16x16xf32>
    %669 = arith.addf %645, %668 : vector<16x16xf32>
    %c88 = arith.constant 88 : index
    %670 = memref.load %arg1[%c88] : memref<98xf32, #tpu.memory_space<smem>>
    %c1_373 = arith.constant 1 : index
    %c5_374 = arith.constant 5 : index
    %c4_375 = arith.constant 4 : index
    %671 = vector.load %arg5[%c1_373, %c5_374, %c4_375] : memref<2x22x22xf32, #tpu.memory_space<vmem>>, vector<1x16x16xf32>
    %672 = vector.shape_cast %671 : vector<1x16x16xf32> to vector<16x16xf32>
    %673 = vector.broadcast %670 : f32 to vector<16x16xf32>
    %674 = arith.mulf %673, %672 : vector<16x16xf32>
    %675 = arith.addf %651, %674 : vector<16x16xf32>
    %c89 = arith.constant 89 : index
    %676 = memref.load %arg1[%c89] : memref<98xf32, #tpu.memory_space<smem>>
    %c1_376 = arith.constant 1 : index
    %c5_377 = arith.constant 5 : index
    %c5_378 = arith.constant 5 : index
    %677 = vector.load %arg5[%c1_376, %c5_377, %c5_378] : memref<2x22x22xf32, #tpu.memory_space<vmem>>, vector<1x16x16xf32>
    %678 = vector.shape_cast %677 : vector<1x16x16xf32> to vector<16x16xf32>
    %679 = vector.broadcast %676 : f32 to vector<16x16xf32>
    %680 = arith.mulf %679, %678 : vector<16x16xf32>
    %681 = arith.addf %657, %680 : vector<16x16xf32>
    %c90 = arith.constant 90 : index
    %682 = memref.load %arg1[%c90] : memref<98xf32, #tpu.memory_space<smem>>
    %c1_379 = arith.constant 1 : index
    %c5_380 = arith.constant 5 : index
    %c6_381 = arith.constant 6 : index
    %683 = vector.load %arg5[%c1_379, %c5_380, %c6_381] : memref<2x22x22xf32, #tpu.memory_space<vmem>>, vector<1x16x16xf32>
    %684 = vector.shape_cast %683 : vector<1x16x16xf32> to vector<16x16xf32>
    %685 = vector.broadcast %682 : f32 to vector<16x16xf32>
    %686 = arith.mulf %685, %684 : vector<16x16xf32>
    %687 = arith.addf %663, %686 : vector<16x16xf32>
    %c91 = arith.constant 91 : index
    %688 = memref.load %arg1[%c91] : memref<98xf32, #tpu.memory_space<smem>>
    %c1_382 = arith.constant 1 : index
    %c6_383 = arith.constant 6 : index
    %c0_384 = arith.constant 0 : index
    %689 = vector.load %arg5[%c1_382, %c6_383, %c0_384] : memref<2x22x22xf32, #tpu.memory_space<vmem>>, vector<1x16x16xf32>
    %690 = vector.shape_cast %689 : vector<1x16x16xf32> to vector<16x16xf32>
    %691 = vector.broadcast %688 : f32 to vector<16x16xf32>
    %692 = arith.mulf %691, %690 : vector<16x16xf32>
    %693 = arith.addf %669, %692 : vector<16x16xf32>
    %c92 = arith.constant 92 : index
    %694 = memref.load %arg1[%c92] : memref<98xf32, #tpu.memory_space<smem>>
    %c1_385 = arith.constant 1 : index
    %c6_386 = arith.constant 6 : index
    %c1_387 = arith.constant 1 : index
    %695 = vector.load %arg5[%c1_385, %c6_386, %c1_387] : memref<2x22x22xf32, #tpu.memory_space<vmem>>, vector<1x16x16xf32>
    %696 = vector.shape_cast %695 : vector<1x16x16xf32> to vector<16x16xf32>
    %697 = vector.broadcast %694 : f32 to vector<16x16xf32>
    %698 = arith.mulf %697, %696 : vector<16x16xf32>
    %699 = arith.addf %675, %698 : vector<16x16xf32>
    %c93 = arith.constant 93 : index
    %700 = memref.load %arg1[%c93] : memref<98xf32, #tpu.memory_space<smem>>
    %c1_388 = arith.constant 1 : index
    %c6_389 = arith.constant 6 : index
    %c2_390 = arith.constant 2 : index
    %701 = vector.load %arg5[%c1_388, %c6_389, %c2_390] : memref<2x22x22xf32, #tpu.memory_space<vmem>>, vector<1x16x16xf32>
    %702 = vector.shape_cast %701 : vector<1x16x16xf32> to vector<16x16xf32>
    %703 = vector.broadcast %700 : f32 to vector<16x16xf32>
    %704 = arith.mulf %703, %702 : vector<16x16xf32>
    %705 = arith.addf %681, %704 : vector<16x16xf32>
    %c94 = arith.constant 94 : index
    %706 = memref.load %arg1[%c94] : memref<98xf32, #tpu.memory_space<smem>>
    %c1_391 = arith.constant 1 : index
    %c6_392 = arith.constant 6 : index
    %c3_393 = arith.constant 3 : index
    %707 = vector.load %arg5[%c1_391, %c6_392, %c3_393] : memref<2x22x22xf32, #tpu.memory_space<vmem>>, vector<1x16x16xf32>
    %708 = vector.shape_cast %707 : vector<1x16x16xf32> to vector<16x16xf32>
    %709 = vector.broadcast %706 : f32 to vector<16x16xf32>
    %710 = arith.mulf %709, %708 : vector<16x16xf32>
    %711 = arith.addf %687, %710 : vector<16x16xf32>
    %c95 = arith.constant 95 : index
    %712 = memref.load %arg1[%c95] : memref<98xf32, #tpu.memory_space<smem>>
    %c1_394 = arith.constant 1 : index
    %c6_395 = arith.constant 6 : index
    %c4_396 = arith.constant 4 : index
    %713 = vector.load %arg5[%c1_394, %c6_395, %c4_396] : memref<2x22x22xf32, #tpu.memory_space<vmem>>, vector<1x16x16xf32>
    %714 = vector.shape_cast %713 : vector<1x16x16xf32> to vector<16x16xf32>
    %715 = vector.broadcast %712 : f32 to vector<16x16xf32>
    %716 = arith.mulf %715, %714 : vector<16x16xf32>
    %717 = arith.addf %693, %716 : vector<16x16xf32>
    %c96 = arith.constant 96 : index
    %718 = memref.load %arg1[%c96] : memref<98xf32, #tpu.memory_space<smem>>
    %c1_397 = arith.constant 1 : index
    %c6_398 = arith.constant 6 : index
    %c5_399 = arith.constant 5 : index
    %719 = vector.load %arg5[%c1_397, %c6_398, %c5_399] : memref<2x22x22xf32, #tpu.memory_space<vmem>>, vector<1x16x16xf32>
    %720 = vector.shape_cast %719 : vector<1x16x16xf32> to vector<16x16xf32>
    %721 = vector.broadcast %718 : f32 to vector<16x16xf32>
    %722 = arith.mulf %721, %720 : vector<16x16xf32>
    %723 = arith.addf %699, %722 : vector<16x16xf32>
    %c97 = arith.constant 97 : index
    %724 = memref.load %arg1[%c97] : memref<98xf32, #tpu.memory_space<smem>>
    %c1_400 = arith.constant 1 : index
    %c6_401 = arith.constant 6 : index
    %c6_402 = arith.constant 6 : index
    %725 = vector.load %arg5[%c1_400, %c6_401, %c6_402] : memref<2x22x22xf32, #tpu.memory_space<vmem>>, vector<1x16x16xf32>
    %726 = vector.shape_cast %725 : vector<1x16x16xf32> to vector<16x16xf32>
    %727 = vector.broadcast %724 : f32 to vector<16x16xf32>
    %728 = arith.mulf %727, %726 : vector<16x16xf32>
    %729 = arith.addf %705, %728 : vector<16x16xf32>
    %730 = arith.addf %723, %729 : vector<16x16xf32>
    %731 = arith.addf %711, %717 : vector<16x16xf32>
    %732 = arith.addf %730, %731 : vector<16x16xf32>
    %c0_403 = arith.constant 0 : index
    %733 = memref.load %arg2[%c0_403] : memref<1xf32, #tpu.memory_space<smem>>
    %734 = vector.broadcast %733 : f32 to vector<16x16xf32>
    %735 = arith.addf %732, %734 : vector<16x16xf32>
    %736 = arith.negf %735 : vector<16x16xf32>
    %737 = math.exp %736 : vector<16x16xf32>
    %cst_404 = arith.constant 1.000000e+00 : f32
    %738 = vector.broadcast %cst_404 : f32 to vector<16x16xf32>
    %739 = arith.addf %738, %737 : vector<16x16xf32>
    %740 = arith.divf %738, %739 : vector<16x16xf32>
    %741 = vector.extract_strided_slice %740 {offsets = [0, 0], sizes = [1, 16], strides = [1, 1]} : vector<16x16xf32> to vector<1x16xf32>
    %742 = vector.extract_strided_slice %740 {offsets = [1, 0], sizes = [1, 16], strides = [1, 1]} : vector<16x16xf32> to vector<1x16xf32>
    %743 = vector.extract_strided_slice %740 {offsets = [2, 0], sizes = [1, 16], strides = [1, 1]} : vector<16x16xf32> to vector<1x16xf32>
    %744 = vector.extract_strided_slice %740 {offsets = [3, 0], sizes = [1, 16], strides = [1, 1]} : vector<16x16xf32> to vector<1x16xf32>
    %745 = vector.extract_strided_slice %740 {offsets = [4, 0], sizes = [1, 16], strides = [1, 1]} : vector<16x16xf32> to vector<1x16xf32>
    %746 = vector.extract_strided_slice %740 {offsets = [5, 0], sizes = [1, 16], strides = [1, 1]} : vector<16x16xf32> to vector<1x16xf32>
    %747 = vector.extract_strided_slice %740 {offsets = [6, 0], sizes = [1, 16], strides = [1, 1]} : vector<16x16xf32> to vector<1x16xf32>
    %748 = vector.extract_strided_slice %740 {offsets = [7, 0], sizes = [1, 16], strides = [1, 1]} : vector<16x16xf32> to vector<1x16xf32>
    %749 = vector.extract_strided_slice %740 {offsets = [8, 0], sizes = [1, 16], strides = [1, 1]} : vector<16x16xf32> to vector<1x16xf32>
    %750 = vector.extract_strided_slice %740 {offsets = [9, 0], sizes = [1, 16], strides = [1, 1]} : vector<16x16xf32> to vector<1x16xf32>
    %751 = vector.extract_strided_slice %740 {offsets = [10, 0], sizes = [1, 16], strides = [1, 1]} : vector<16x16xf32> to vector<1x16xf32>
    %752 = vector.extract_strided_slice %740 {offsets = [11, 0], sizes = [1, 16], strides = [1, 1]} : vector<16x16xf32> to vector<1x16xf32>
    %753 = vector.extract_strided_slice %740 {offsets = [12, 0], sizes = [1, 16], strides = [1, 1]} : vector<16x16xf32> to vector<1x16xf32>
    %754 = vector.extract_strided_slice %740 {offsets = [13, 0], sizes = [1, 16], strides = [1, 1]} : vector<16x16xf32> to vector<1x16xf32>
    %755 = vector.extract_strided_slice %740 {offsets = [14, 0], sizes = [1, 16], strides = [1, 1]} : vector<16x16xf32> to vector<1x16xf32>
    %756 = vector.extract_strided_slice %740 {offsets = [15, 0], sizes = [1, 16], strides = [1, 1]} : vector<16x16xf32> to vector<1x16xf32>
    %757 = tpu.concatenate %741, %742, %743, %744, %745, %746, %747, %748, %749, %750, %751, %752, %753, %754, %755, %756 in 1 : vector<1x16xf32>, vector<1x16xf32>, vector<1x16xf32>, vector<1x16xf32>, vector<1x16xf32>, vector<1x16xf32>, vector<1x16xf32>, vector<1x16xf32>, vector<1x16xf32>, vector<1x16xf32>, vector<1x16xf32>, vector<1x16xf32>, vector<1x16xf32>, vector<1x16xf32>, vector<1x16xf32>, vector<1x16xf32> -> vector<1x256xf32>
    %758 = vector.broadcast %757 : vector<1x256xf32> to vector<4x256xf32>
    %759 = arith.mulf %1, %758 : vector<4x256xf32>
    %c0_405 = arith.constant 0 : index
    %c0_406 = arith.constant 0 : index
    %c0_407 = arith.constant 0 : index
    %760 = vector.load %arg4[%c0_405, %c0_406, %c0_407] : memref<1x4x256xf32, #tpu.memory_space<vmem>>, vector<1x4x256xf32>
    %761 = vector.shape_cast %760 : vector<1x4x256xf32> to vector<4x256xf32>
    %762 = vector.shape_cast %759 : vector<4x256xf32> to vector<1x4x256xf32>
    tpu.vector_store %arg4[%c0_405, %c0_406, %c0_407], %762 {strides = array<i32>} : memref<1x4x256xf32, #tpu.memory_space<vmem>>, vector<1x4x256xf32>,
    return
  }
  func.func @transform_0(%arg0: i32) -> i32 {
    %c0_i32 = arith.constant 0 : i32
    %c0_i32_0 = arith.constant 0 : i32
    return %c0_i32 : i32
  }
  func.func @transform_1(%arg0: i32) -> i32 {
    %c0_i32 = arith.constant 0 : i32
    %c0_i32_0 = arith.constant 0 : i32
    return %c0_i32 : i32
  }
  func.func @transform_2(%arg0: i32) -> (i32, i32, i32) {
    %c0_i32 = arith.constant 0 : i32
    %c0_i32_0 = arith.constant 0 : i32
    %c0_i32_1 = arith.constant 0 : i32
    return %arg0, %c0_i32, %c0_i32_0 : i32, i32, i32
  }
  func.func @transform_3(%arg0: i32) -> (i32, i32, i32) {
    %c0_i32 = arith.constant 0 : i32
    %c0_i32_0 = arith.constant 0 : i32
    %c0_i32_1 = arith.constant 0 : i32
    return %arg0, %c0_i32, %c0_i32_0 : i32, i32, i32
  }
}

</mosaic_0001>

<llo_original>
// kernel: tpu_custom_call.1
$region0: #{tpu_custom_call.1}
  #allocation0 [shape = 'u32[]', space=smem, size = 0x4, offset = 0x4, fixed_abs, tag = 'smem constant byte address 0x4 - core index']
  #allocation1 [shape = 'u32[144,128]{1,0:T(1,128)}', space=vmem, size = 0x12000, scoped, tag = 'internal scratch']
  #allocation2 [shape = 'f32[2,22,22]{2,1,0:T(8,128)}', space=vmem, size = 0x6000, scoped, tag = 'scratch operand']
  #allocation3 [shape = 'f32[1]{0:T(128)S(6)}', space=smem, size = 0x200, scoped, tag = 'scoped memory for tpu_custom_call.1']
  %s0 = inlined_call_operand.vmem [shape: f32[98], index: 0, kind: input, shape index: {}]
  %s1 = inlined_call_operand.<no memory space> [shape: f32[1], index: 1, kind: input, shape index: {}]
  %s2 = inlined_call_operand.hbm [shape: f32[2,4,256], index: 2, kind: input, shape index: {}]
  %s3 = inlined_call_operand.hbm [shape: f32[2,4,256], index: 3, kind: output, shape index: {}]
  %s4 = sld [smem:[#allocation0]]
  $region53: #{tpu_custom_call.1} parent=0
    _
  %s6 = ssub.s32 1, %s4
  %s7 = scalar_select 0, %s6, %s4
  %8 = sst [smem:[#allocation3]] %s1
  $region1: #{tpu_custom_call.1} parent=0
    #allocation4 [shape = 'u8[512]{0}', space=smem, size = 0x200, scoped, tag = 'input window, operand 0, single buffered']
    #allocation5 [shape = 's32[2]{0}', space=sflag, size = 0x8, scoped, tag = 'scoped memory for tpu_custom_call.1']
    #allocation6 [shape = 's32[2]{0}', space=sflag, size = 0x8, scoped, tag = 'scoped memory for tpu_custom_call.1']
    #allocation7 [shape = 's32[2]{0}', space=sflag, size = 0x8, scoped, tag = 'scoped memory for tpu_custom_call.1']
    #allocation8 [shape = 'u8[8192]{0}', space=vmem, size = 0x2000, scoped, tag = 'input window, operand 2']
    #allocation9 [shape = 'u8[8192]{0}', space=vmem, size = 0x2000, scoped, tag = 'output window, operand 0']
    %9 = vsyncpa [#allocation7], 0
    %10 = vsyncpa [#allocation5], 0
    %s11 = scalar_lea.sflag [#allocation5], 1
    %12 = vsyncpa %s11, 0
    %13 = vsyncpa [#allocation6], 0
    %s14 = scalar_lea.sflag [#allocation6], 1
    %15 = vsyncpa %s14, 0
    loop: start=0, step=1, limit=4
    $region2: #{tpu_custom_call.1} parent=1 // loop_pre_header
      _
    $region3: #{tpu_custom_call.1} parent=1 // loop_header
      %s17 = sphi 0, %s21
      %p18 = scmp.ge.s32.totalorder %s17, 4
      %s25 = sphi 0, %s25
      %s27 = sphi 0, %s25
      %s28 = sphi 0, %s27
      %s42 = sphi 0, %s28
      %s46 = sphi 0, %s46
      %s48 = sphi 0, %s46
      %s49 = sphi 0, %s48
      %s63 = sphi 0, %s49
      %s69 = sphi 0, %s71
      %s72 = sphi 0, %s69
      %s73 = sphi 0, %s72
      %s89 = sphi 0, %s73
      %s95 = sphi 0, %s97
      %s98 = sphi 0, %s95
      %s99 = sphi 0, %s98
      %s115 = sphi 0, %s99
    $region4: #{tpu_custom_call.1} parent=1 // loop_header_branch
      %20 = sbr.rel (%p18) target = $region8
    $region5: #{tpu_custom_call.1} parent=1 // loop_body
      %s22 = ssub.s32 %s17, 1
      %s23 = ssub.s32 %s17, 2
      %s24 = sadd.s32 %s17, 1
      %s26 = sadd.s32 %s25, 1
      %p29 = scmp.eq.s32.totalorder %s17, 1
      %p30 = scmp.ne.s32.totalorder %s25, %s27
      %p31 = scmp.eq.s32.totalorder %s17, 0
      %p32 = por %p30, %p31
      %p33 = scmp.ne.s32.totalorder %s25, %s27
      %p34 = scmp.eq.s32.totalorder %s22, 1
      %p35 = por %p33, %p34
      %p36 = scmp.ne.s32.totalorder %s27, %s28
      %p37 = scmp.eq.s32.totalorder %s22, 0
      %p38 = por %p36, %p37
      %p39 = scmp.ne.s32.totalorder %s27, %s28
      %p40 = scmp.eq.s32.totalorder %s23, 1
      %p41 = por %p39, %p40
      %p43 = scmp.ne.s32.totalorder %s28, %s42
      %p44 = scmp.eq.s32.totalorder %s23, 0
      %p45 = por %p43, %p44
      %s47 = sadd.s32 %s46, 1
      %p50 = scmp.eq.s32.totalorder %s17, 1
      %p51 = scmp.ne.s32.totalorder %s46, %s48
      %p52 = scmp.eq.s32.totalorder %s17, 0
      %p53 = por %p51, %p52
      %p54 = scmp.ne.s32.totalorder %s46, %s48
      %p55 = scmp.eq.s32.totalorder %s22, 1
      %p56 = por %p54, %p55
      %p57 = scmp.ne.s32.totalorder %s48, %s49
      %p58 = scmp.eq.s32.totalorder %s22, 0
      %p59 = por %p57, %p58
      %p60 = scmp.ne.s32.totalorder %s48, %s49
      %p61 = scmp.eq.s32.totalorder %s23, 1
      %p62 = por %p60, %p61
      %p64 = scmp.ne.s32.totalorder %s49, %s63
      %p65 = scmp.eq.s32.totalorder %s23, 0
      %p66 = por %p64, %p65
      %s67 = ssub.s32 %s17, %s24
      %p68 = scmp.eq.s32.totalorder %s67, 0
      %s70 = sadd.s32 %s69, 1
      %s71 = scalar_select %p68, %s69, %s70
      %p74 = pneg %p68
      %p75 = scmp.eq.s32.totalorder %s17, 1
      %p76 = por %p74, %p75
      %p77 = scmp.ne.s32.totalorder %s69, %s72
      %p78 = scmp.eq.s32.totalorder %s17, 0
      %p79 = por %p77, %p78
      %p80 = scmp.ne.s32.totalorder %s69, %s72
      %p81 = scmp.eq.s32.totalorder %s22, 1
      %p82 = por %p80, %p81
      %p83 = scmp.ne.s32.totalorder %s72, %s73
      %p84 = scmp.eq.s32.totalorder %s22, 0
      %p85 = por %p83, %p84
      %p86 = scmp.ne.s32.totalorder %s72, %s73
      %p87 = scmp.eq.s32.totalorder %s23, 1
      %p88 = por %p86, %p87
      %p90 = scmp.ne.s32.totalorder %s73, %s89
      %p91 = scmp.eq.s32.totalorder %s23, 0
      %p92 = por %p90, %p91
      %s93 = ssub.s32 %s17, %s24
      %p94 = scmp.eq.s32.totalorder %s93, 0
      %s96 = sadd.s32 %s95, 1
      %s97 = scalar_select %p94, %s95, %s96
      %p100 = pneg %p94
      %p101 = scmp.eq.s32.totalorder %s17, 1
      %p102 = por %p100, %p101
      %p103 = scmp.ne.s32.totalorder %s95, %s98
      %p104 = scmp.eq.s32.totalorder %s17, 0
      %p105 = por %p103, %p104
      %p106 = scmp.ne.s32.totalorder %s95, %s98
      %p107 = scmp.eq.s32.totalorder %s22, 1
      %p108 = por %p106, %p107
      %p109 = scmp.ne.s32.totalorder %s98, %s99
      %p110 = scmp.eq.s32.totalorder %s22, 0
      %p111 = por %p109, %p110
      %p112 = scmp.ne.s32.totalorder %s98, %s99
      %p113 = scmp.eq.s32.totalorder %s23, 1
      %p114 = por %p112, %p113
      %p116 = scmp.ne.s32.totalorder %s99, %s115
      %p117 = scmp.eq.s32.totalorder %s23, 0
      %p118 = por %p116, %p117
      %p119 = scmp.le.s32.totalorder 1, %s17
      %p120 = scmp.lt.s32.totalorder %s17, 3
      %p121 = pnand %p119, %p120
      %p122 = pneg %p121
      // Predicated region
      $region9: #{tpu_custom_call.1} parent=5 // pred_check
        _
      $region10: #{tpu_custom_call.1} parent=5 // pred_check_branch
        %124 = sbr.rel (%p121) target = $region12
      $region11: #{tpu_custom_call.1} parent=5 // pred_region
        %s125 = ssub.s32 %s17, 1
        // Predicated region
        $region13: #{tpu_custom_call.1} parent=11 // pred_check
          %p126 = pneg %p38
        $region14: #{tpu_custom_call.1} parent=11 // pred_check_branch
          %128 = sbr.rel (%p126) target = $region16
        $region15: #{tpu_custom_call.1} parent=11 // pred_region
          %s130 = ssub.s32 16, 16
          %131 = vsyncadd [#allocation7], %s130
          %s133 = sshll.u32 %s0, 4
          %s134 = int_to_ptr.vmem [resolvable:$true] %s133
          %136 = dma.vmem_to_smem %s134, 16, [#allocation4], [#allocation7]
        $region16: #{tpu_custom_call.1} parent=11 // pred_fallthru
          _
        // Predicated region
        $region17: #{tpu_custom_call.1} parent=11 // pred_check
          %p137 = pneg %p59
        $region18: #{tpu_custom_call.1} parent=11 // pred_check_branch
          %139 = sbr.rel (%p137) target = $region20
        $region19: #{tpu_custom_call.1} parent=11 // pred_region
          _
        $region20: #{tpu_custom_call.1} parent=11 // pred_fallthru
          _
      $region12: #{tpu_custom_call.1} parent=5 // pred_fallthru
        _
      %p140 = scmp.lt.s32.totalorder %s17, 2
      // Predicated region
      $region21: #{tpu_custom_call.1} parent=5 // pred_check
        %p141 = pneg %p140
      $region22: #{tpu_custom_call.1} parent=5 // pred_check_branch
        %143 = sbr.rel (%p141) target = $region24
      $region23: #{tpu_custom_call.1} parent=5 // pred_region
        // Predicated region
        $region25: #{tpu_custom_call.1} parent=23 // pred_check
          %p144 = pneg %p79
        $region26: #{tpu_custom_call.1} parent=23 // pred_check_branch
          %146 = sbr.rel (%p144) target = $region28
        $region27: #{tpu_custom_call.1} parent=23 // pred_region
          %s147 = sand.u32 %s69, 1
          %s148 = scalar_lea.sflag [#allocation5], %s147
          %s149 = sand.u32 %s69, 1
          %s150 = smul.addr %s149, 8
          %s151 = scalar_lea.vmem [#allocation8], %s150
          %s153 = ssub.s32 128, 128
          %154 = vsyncadd %s148, %s153
          %s155 = smul.addr %s17, 2
          %s156 = smul.addr %s155, 64
          %s157 = scalar_lea.hbm %s2, %s156
          %s159 = sshll.u32 %s151, 4
          %s160 = int_to_ptr.vmem [resolvable:$true] %s159
          %162 = dma.hbm_to_vmem [thread:$0]  %s157, 128, %s160, %s148
        $region28: #{tpu_custom_call.1} parent=23 // pred_fallthru
          _
      $region24: #{tpu_custom_call.1} parent=5 // pred_fallthru
        _
      %p163 = scmp.le.s32.totalorder 1, %s17
      %p164 = scmp.lt.s32.totalorder %s17, 3
      %p165 = pnand %p163, %p164
      %p166 = pneg %p165
      // Predicated region
      $region29: #{tpu_custom_call.1} parent=5 // pred_check
        _
      $region30: #{tpu_custom_call.1} parent=5 // pred_check_branch
        %168 = sbr.rel (%p165) target = $region32
      $region31: #{tpu_custom_call.1} parent=5 // pred_region
        %s169 = ssub.s32 %s17, 1
        // Predicated region
        $region33: #{tpu_custom_call.1} parent=31 // pred_check
          %p170 = pneg %p38
        $region34: #{tpu_custom_call.1} parent=31 // pred_check_branch
          %172 = sbr.rel (%p170) target = $region36
        $region35: #{tpu_custom_call.1} parent=31 // pred_region
          %173 = dma.done [#allocation7], 16
        $region36: #{tpu_custom_call.1} parent=31 // pred_fallthru
          _
        %s174 = sand.u32 %s72, 1
        %s175 = scalar_lea.sflag [#allocation5], %s174
        %s176 = sand.u32 %s72, 1
        %s177 = smul.addr %s176, 8
        %s178 = scalar_lea.vmem [#allocation8], %s177
        // Predicated region
        $region37: #{tpu_custom_call.1} parent=31 // pred_check
          %p179 = pneg %p85
        $region38: #{tpu_custom_call.1} parent=31 // pred_check_branch
          %181 = sbr.rel (%p179) target = $region40
        $region39: #{tpu_custom_call.1} parent=31 // pred_region
          %182 = dma.done %s175, 128
        $region40: #{tpu_custom_call.1} parent=31 // pred_fallthru
          _
        %183 = sfence
        %p184 = pneg %p38
        %p185 = pneg %p35
        %p186 = pneg %p59
        %p187 = pneg %p56
        %s188 = sand.u32 %s72, 1
        %s189 = scalar_lea.sflag [#allocation5], %s188
        %s190 = sand.u32 %s72, 1
        %s191 = smul.addr %s190, 8
        %s192 = scalar_lea.vmem [#allocation8], %s191
        %p193 = pneg %p85
        %p194 = pneg %p82
        %p195 = pneg %p111
        %p196 = pneg %p108
        %s197 = sand.u32 %s98, 1
        %s198 = scalar_lea.sflag [#allocation6], %s197
        %s199 = sand.u32 %s98, 1
        %s200 = smul.addr %s199, 8
        %s201 = scalar_lea.vmem [#allocation9], %s200
        %v202 = vld [vmem:[%s178] sm:$0xff]
        %v204 = vcombine.high %v202, %v202
        %vm206 = vcmask 1043456
        %v207 = vsel %vm206, %v202, -inf
        %v208 = vrot.slane %v207, 4
        %v209 = vmax.f32 %v207, %v208
        %v210 = vrot.slane %v209, 2
        %v211 = vmax.f32 %v209, %v210
        %v212 = vrot.slane %v211, 1
        %v213 = vmax.f32 %v211, %v212
        %v214 = vsel %vm206, %v204, -inf
        %v215 = vrot.slane %v214, 4
        %v216 = vmax.f32 %v214, %v215
        %v217 = vrot.slane %v216, 2
        %v218 = vmax.f32 %v216, %v217
        %v219 = vrot.slane %v218, 1
        %v220 = vmax.f32 %v218, %v219
        %v221 = vsel %vm206, %v202, 0.0
        %v222 = vrot.slane %v221, 4
        %v223 = vadd.f32 %v221, %v222
        %v224 = vrot.slane %v223, 2
        %v225 = vadd.f32 %v223, %v224
        %v226 = vrot.slane %v225, 1
        %v227 = vadd.f32 %v225, %v226
        %v228 = vsel %vm206, %v204, 0.0
        %v229 = vrot.slane %v228, 4
        %v230 = vadd.f32 %v228, %v229
        %v231 = vrot.slane %v230, 2
        %v232 = vadd.f32 %v230, %v231
        %v233 = vrot.slane %v232, 1
        %v234 = vadd.f32 %v232, %v233
        %v235 = vrcp.pop 4.0
        %v236 = vmul.f32 %v227, %v235
        %v237 = vmul.f32 %v234, %v235
        %vm238 = vcmask 179200
        %239 = vst.msk [vmem:[#allocation2] sm:$0xff] %vm238, 0.0
        %240 = vst.msk [vmem:[#allocation2 + $0x8] sm:$0xff] %vm238, 0.0
        %vm241 = vcmask 177152
        %242 = vst.msk [vmem:[#allocation2 + $0x10] sm:$0x3f] %vm241, 0.0
        %243 = vst.msk [vmem:[#allocation2 + $0x18] sm:$0xff] %vm238, 0.0
        %244 = vst.msk [vmem:[#allocation2 + $0x20] sm:$0xff] %vm238, 0.0
        %245 = vst.msk [vmem:[#allocation2 + $0x28] sm:$0x3f] %vm241, 0.0
        %247 = vrot.lane.b32.xlu0 %v213, 3
        %v248 = vpop.permute.xlu0 %247
        %vm250 = vcmask 147480
        %251 = vst.msk [vmem:[#allocation2 + $0x3] sm:$0x1] %vm250, %v248
        %253 = vrot.lane.b32.xlu0 %v236, 3
        %v254 = vpop.permute.xlu0 %253
        %s256 = scalar_lea.vmem [#allocation2], 24
        %257 = vst.msk [vmem:[%s256 + $0x3] sm:$0x1] %vm250, %v254
        %258 = vrot.lane.b32.xlu0 %v213, 115
        %v259 = vpop.permute.xlu0 %258
        %261 = vst.msk [vmem:[#allocation2 + $0x4] sm:$0x1] %vm250, %v259
        %262 = vrot.lane.b32.xlu0 %v236, 115
        %v263 = vpop.permute.xlu0 %262
        %265 = vst.msk [vmem:[%s256 + $0x4] sm:$0x1] %vm250, %v263
        %266 = vrot.lane.b32.xlu0 %v213, 99
        %v267 = vpop.permute.xlu0 %266
        %269 = vst.msk [vmem:[#allocation2 + $0x5] sm:$0x1] %vm250, %v267
        %270 = vrot.lane.b32.xlu0 %v236, 99
        %v271 = vpop.permute.xlu0 %270
        %273 = vst.msk [vmem:[%s256 + $0x5] sm:$0x1] %vm250, %v271
        %274 = vrot.lane.b32.xlu0 %v213, 83
        %v275 = vpop.permute.xlu0 %274
        %277 = vst.msk [vmem:[#allocation2 + $0x6] sm:$0x1] %vm250, %v275
        %278 = vrot.lane.b32.xlu0 %v236, 83
        %v279 = vpop.permute.xlu0 %278
        %281 = vst.msk [vmem:[%s256 + $0x6] sm:$0x1] %vm250, %v279
        %282 = vrot.lane.b32.xlu0 %v213, 67
        %v283 = vpop.permute.xlu0 %282
        %285 = vst.msk [vmem:[#allocation2 + $0x7] sm:$0x1] %vm250, %v283
        %286 = vrot.lane.b32.xlu0 %v236, 67
        %v287 = vpop.permute.xlu0 %286
        %289 = vst.msk [vmem:[%s256 + $0x7] sm:$0x1] %vm250, %v287
        %290 = vrot.lane.b32.xlu0 %v213, 51
        %v291 = vpop.permute.xlu0 %290
        %293 = vst.msk [vmem:[#allocation2 + $0x8] sm:$0x1] %vm250, %v291
        %294 = vrot.lane.b32.xlu0 %v236, 51
        %v295 = vpop.permute.xlu0 %294
        %297 = vst.msk [vmem:[%s256 + $0x8] sm:$0x1] %vm250, %v295
        %298 = vrot.lane.b32.xlu0 %v213, 35
        %v299 = vpop.permute.xlu0 %298
        %301 = vst.msk [vmem:[#allocation2 + $0x9] sm:$0x1] %vm250, %v299
        %302 = vrot.lane.b32.xlu0 %v236, 35
        %v303 = vpop.permute.xlu0 %302
        %305 = vst.msk [vmem:[%s256 + $0x9] sm:$0x1] %vm250, %v303
        %306 = vrot.lane.b32.xlu0 %v213, 19
        %v307 = vpop.permute.xlu0 %306
        %309 = vst.msk [vmem:[#allocation2 + $0xa] sm:$0x1] %vm250, %v307
        %310 = vrot.lane.b32.xlu0 %v236, 19
        %v311 = vpop.permute.xlu0 %310
        %313 = vst.msk [vmem:[%s256 + $0xa] sm:$0x1] %vm250, %v311
        %315 = vrot.lane.b32.xlu0 %v220, 3
        %v316 = vpop.permute.xlu0 %315
        %318 = vst.msk [vmem:[#allocation2 + $0xb] sm:$0x1] %vm250, %v316
        %320 = vrot.lane.b32.xlu0 %v237, 3
        %v321 = vpop.permute.xlu0 %320
        %323 = vst.msk [vmem:[%s256 + $0xb] sm:$0x1] %vm250, %v321
        %324 = vrot.lane.b32.xlu0 %v220, 115
        %v325 = vpop.permute.xlu0 %324
        %327 = vst.msk [vmem:[#allocation2 + $0xc] sm:$0x1] %vm250, %v325
        %328 = vrot.lane.b32.xlu0 %v237, 115
        %v329 = vpop.permute.xlu0 %328
        %331 = vst.msk [vmem:[%s256 + $0xc] sm:$0x1] %vm250, %v329
        %332 = vrot.lane.b32.xlu0 %v220, 99
        %v333 = vpop.permute.xlu0 %332
        %335 = vst.msk [vmem:[#allocation2 + $0xd] sm:$0x1] %vm250, %v333
        %336 = vrot.lane.b32.xlu0 %v237, 99
        %v337 = vpop.permute.xlu0 %336
        %339 = vst.msk [vmem:[%s256 + $0xd] sm:$0x1] %vm250, %v337
        %340 = vrot.lane.b32.xlu0 %v220, 83
        %v341 = vpop.permute.xlu0 %340
        %343 = vst.msk [vmem:[#allocation2 + $0xe] sm:$0x1] %vm250, %v341
        %344 = vrot.lane.b32.xlu0 %v237, 83
        %v345 = vpop.permute.xlu0 %344
        %347 = vst.msk [vmem:[%s256 + $0xe] sm:$0x1] %vm250, %v345
        %348 = vrot.lane.b32.xlu0 %v220, 67
        %v349 = vpop.permute.xlu0 %348
        %351 = vst.msk [vmem:[#allocation2 + $0xf] sm:$0x1] %vm250, %v349
        %352 = vrot.lane.b32.xlu0 %v237, 67
        %v353 = vpop.permute.xlu0 %352
        %355 = vst.msk [vmem:[%s256 + $0xf] sm:$0x1] %vm250, %v353
        %356 = vrot.lane.b32.xlu0 %v220, 51
        %v357 = vpop.permute.xlu0 %356
        %359 = vst.msk [vmem:[#allocation2 + $0x10] sm:$0x1] %vm250, %v357
        %360 = vrot.lane.b32.xlu0 %v237, 51
        %v361 = vpop.permute.xlu0 %360
        %363 = vst.msk [vmem:[%s256 + $0x10] sm:$0x1] %vm250, %v361
        %364 = vrot.lane.b32.xlu0 %v220, 35
        %v365 = vpop.permute.xlu0 %364
        %367 = vst.msk [vmem:[#allocation2 + $0x11] sm:$0x1] %vm250, %v365
        %368 = vrot.lane.b32.xlu0 %v237, 35
        %v369 = vpop.permute.xlu0 %368
        %371 = vst.msk [vmem:[%s256 + $0x11] sm:$0x1] %vm250, %v369
        %372 = vrot.lane.b32.xlu0 %v220, 19
        %v373 = vpop.permute.xlu0 %372
        %375 = vst.msk [vmem:[#allocation2 + $0x12] sm:$0x1] %vm250, %v373
        %376 = vrot.lane.b32.xlu0 %v237, 19
        %v377 = vpop.permute.xlu0 %376
        %379 = vst.msk [vmem:[%s256 + $0x12] sm:$0x1] %vm250, %v377
        %s380 = sld [smem:[#allocation4]]
        %v381 = vld [vmem:[#allocation2] sm:$0xff]
        %v382 = vld [vmem:[#allocation2 + $0x8] sm:$0xff]
        %v383 = vstv %s380
        %v384 = vmul.f32 %v383, %v381
        %v385 = vmul.f32 %v383, %v382
        %v386 = vadd.f32 %v384, 0.0
        %v387 = vadd.f32 %v385, 0.0
        %s388 = sld [smem:[#allocation4 + $0x1]]
        %v389 = vstv %s388
        %v390 = vmul.f32 %v389, %v381
        %v391 = vmul.f32 %v389, %v382
        %v392 = vadd.f32 %v390, 0.0
        %v393 = vadd.f32 %v391, 0.0
        %s394 = sld [smem:[#allocation4 + $0x2]]
        %v395 = vstv %s394
        %v396 = vmul.f32 %v395, %v381
        %v397 = vmul.f32 %v395, %v382
        %v398 = vadd.f32 %v396, 0.0
        %v399 = vadd.f32 %v397, 0.0
        %s400 = sld [smem:[#allocation4 + $0x3]]
        %v401 = vstv %s400
        %v402 = vmul.f32 %v401, %v381
        %v403 = vmul.f32 %v401, %v382
        %v404 = vadd.f32 %v402, 0.0
        %v405 = vadd.f32 %v403, 0.0
        %s406 = sld [smem:[#allocation4 + $0x4]]
        %v407 = vstv %s406
        %v408 = vmul.f32 %v407, %v381
        %v409 = vmul.f32 %v407, %v382
        %412 = vrot.lane.b32.xlu0 %v408, 124
        %v413 = vpop.permute.xlu0 %412
        %414 = vrot.lane.b32.xlu0 %v409, 124
        %v415 = vpop.permute.xlu0 %414
        %v418 = vadd.f32 %v386, %v413
        %v419 = vadd.f32 %v387, %v415
        %s420 = sld [smem:[#allocation4 + $0x5]]
        %v421 = vstv %s420
        %v422 = vmul.f32 %v421, %v381
        %v423 = vmul.f32 %v421, %v382
        %426 = vrot.lane.b32.xlu0 %v422, 124
        %v427 = vpop.permute.xlu0 %426
        %428 = vrot.lane.b32.xlu0 %v423, 124
        %v429 = vpop.permute.xlu0 %428
        %v432 = vadd.f32 %v392, %v427
        %v433 = vadd.f32 %v393, %v429
        %s434 = sld [smem:[#allocation4 + $0x6]]
        %v435 = vstv %s434
        %v436 = vmul.f32 %v435, %v381
        %v437 = vmul.f32 %v435, %v382
        %440 = vrot.lane.b32.xlu0 %v436, 124
        %v441 = vpop.permute.xlu0 %440
        %442 = vrot.lane.b32.xlu0 %v437, 124
        %v443 = vpop.permute.xlu0 %442
        %v446 = vadd.f32 %v398, %v441
        %v447 = vadd.f32 %v399, %v443
        %s448 = sld [smem:[#allocation4 + $0x7]]
        %v449 = vld [vmem:[#allocation2 + $0x1] sm:$0xff]
        %v450 = vld [vmem:[#allocation2 + $0x9] sm:$0xff]
        %v451 = vstv %s448
        %v452 = vmul.f32 %v451, %v449
        %v453 = vmul.f32 %v451, %v450
        %456 = vrot.lane.b32.xlu0 %v452, 3
        %v457 = vpop.permute.xlu0 %456
        %458 = vrot.lane.b32.xlu0 %v453, 3
        %v459 = vpop.permute.xlu0 %458
        %v462 = vadd.f32 %v404, %v457
        %v463 = vadd.f32 %v405, %v459
        %s464 = sld [smem:[#allocation4 + $0x8]]
        %v465 = vstv %s464
        %v466 = vmul.f32 %v465, %v449
        %v467 = vmul.f32 %v465, %v450
        %470 = vrot.lane.b32.xlu0 %v466, 127
        %v471 = vpop.permute.xlu0 %470
        %472 = vrot.lane.b32.xlu0 %v467, 127
        %v473 = vpop.permute.xlu0 %472
        %v476 = vadd.f32 %v418, %v471
        %v477 = vadd.f32 %v419, %v473
        %s478 = sld [smem:[#allocation4 + $0x9]]
        %v479 = vstv %s478
        %v480 = vmul.f32 %v479, %v449
        %v481 = vmul.f32 %v479, %v450
        %484 = vrot.lane.b32.xlu0 %v480, 127
        %v485 = vpop.permute.xlu0 %484
        %486 = vrot.lane.b32.xlu0 %v481, 127
        %v487 = vpop.permute.xlu0 %486
        %v490 = vadd.f32 %v432, %v485
        %v491 = vadd.f32 %v433, %v487
        %s492 = sld [smem:[#allocation4 + $0xa]]
        %v493 = vstv %s492
        %v494 = vmul.f32 %v493, %v449
        %v495 = vmul.f32 %v493, %v450
        %498 = vrot.lane.b32.xlu0 %v494, 127
        %v499 = vpop.permute.xlu0 %498
        %500 = vrot.lane.b32.xlu0 %v495, 127
        %v501 = vpop.permute.xlu0 %500
        %v504 = vadd.f32 %v446, %v499
        %v505 = vadd.f32 %v447, %v501
        %s506 = sld [smem:[#allocation4 + $0xb]]
        %v507 = vstv %s506
        %v508 = vmul.f32 %v507, %v449
        %v509 = vmul.f32 %v507, %v450
        %512 = vrot.lane.b32.xlu0 %v508, 127
        %v513 = vpop.permute.xlu0 %512
        %514 = vrot.lane.b32.xlu0 %v509, 127
        %v515 = vpop.permute.xlu0 %514
        %v518 = vadd.f32 %v462, %v513
        %v519 = vadd.f32 %v463, %v515
        %s520 = sld [smem:[#allocation4 + $0xc]]
        %v521 = vstv %s520
        %v522 = vmul.f32 %v521, %v449
        %v523 = vmul.f32 %v521, %v450
        %526 = vrot.lane.b32.xlu0 %v522, 123
        %v527 = vpop.permute.xlu0 %526
        %528 = vrot.lane.b32.xlu0 %v523, 123
        %v529 = vpop.permute.xlu0 %528
        %v532 = vadd.f32 %v476, %v527
        %v533 = vadd.f32 %v477, %v529
        %s534 = sld [smem:[#allocation4 + $0xd]]
        %v535 = vstv %s534
        %v536 = vmul.f32 %v535, %v449
        %v537 = vmul.f32 %v535, %v450
        %540 = vrot.lane.b32.xlu0 %v536, 123
        %v541 = vpop.permute.xlu0 %540
        %542 = vrot.lane.b32.xlu0 %v537, 123
        %v543 = vpop.permute.xlu0 %542
        %v546 = vadd.f32 %v490, %v541
        %v547 = vadd.f32 %v491, %v543
        %s548 = sld [smem:[#allocation4 + $0xe]]
        %v549 = vld [vmem:[#allocation2 + $0x2] sm:$0xff]
        %v550 = vld [vmem:[#allocation2 + $0xa] sm:$0xff]
        %v551 = vstv %s548
        %v552 = vmul.f32 %v551, %v549
        %v553 = vmul.f32 %v551, %v550
        %556 = vrot.lane.b32.xlu0 %v552, 2
        %v557 = vpop.permute.xlu0 %556
        %558 = vrot.lane.b32.xlu0 %v553, 2
        %v559 = vpop.permute.xlu0 %558
        %v562 = vadd.f32 %v504, %v557
        %v563 = vadd.f32 %v505, %v559
        %s564 = sld [smem:[#allocation4 + $0xf]]
        %v565 = vstv %s564
        %v566 = vmul.f32 %v565, %v549
        %v567 = vmul.f32 %v565, %v550
        %570 = vrot.lane.b32.xlu0 %v566, 2
        %v571 = vpop.permute.xlu0 %570
        %572 = vrot.lane.b32.xlu0 %v567, 2
        %v573 = vpop.permute.xlu0 %572
        %v576 = vadd.f32 %v518, %v571
        %v577 = vadd.f32 %v519, %v573
        %s578 = sld [smem:[#allocation4 + $0x10]]
        %v579 = vstv %s578
        %v580 = vmul.f32 %v579, %v549
        %v581 = vmul.f32 %v579, %v550
        %584 = vrot.lane.b32.xlu0 %v580, 126
        %v585 = vpop.permute.xlu0 %584
        %586 = vrot.lane.b32.xlu0 %v581, 126
        %v587 = vpop.permute.xlu0 %586
        %v590 = vadd.f32 %v532, %v585
        %v591 = vadd.f32 %v533, %v587
        %s592 = sld [smem:[#allocation4 + $0x11]]
        %v593 = vstv %s592
        %v594 = vmul.f32 %v593, %v549
        %v595 = vmul.f32 %v593, %v550
        %598 = vrot.lane.b32.xlu0 %v594, 126
        %v599 = vpop.permute.xlu0 %598
        %600 = vrot.lane.b32.xlu0 %v595, 126
        %v601 = vpop.permute.xlu0 %600
        %v604 = vadd.f32 %v546, %v599
        %v605 = vadd.f32 %v547, %v601
        %s606 = sld [smem:[#allocation4 + $0x12]]
        %v607 = vstv %s606
        %v608 = vmul.f32 %v607, %v549
        %v609 = vmul.f32 %v607, %v550
        %612 = vrot.lane.b32.xlu0 %v608, 126
        %v613 = vpop.permute.xlu0 %612
        %614 = vrot.lane.b32.xlu0 %v609, 126
        %v615 = vpop.permute.xlu0 %614
        %v618 = vadd.f32 %v562, %v613
        %v619 = vadd.f32 %v563, %v615
        %s620 = sld [smem:[#allocation4 + $0x13]]
        %v621 = vstv %s620
        %v622 = vmul.f32 %v621, %v549
        %v623 = vmul.f32 %v621, %v550
        %626 = vrot.lane.b32.xlu0 %v622, 126
        %v627 = vpop.permute.xlu0 %626
        %628 = vrot.lane.b32.xlu0 %v623, 126
        %v629 = vpop.permute.xlu0 %628
        %v632 = vadd.f32 %v576, %v627
        %v633 = vadd.f32 %v577, %v629
        %s634 = sld [smem:[#allocation4 + $0x14]]
        %v635 = vstv %s634
        %v636 = vmul.f32 %v635, %v549
        %v637 = vmul.f32 %v635, %v550
        %640 = vrot.lane.b32.xlu0 %v636, 122
        %v641 = vpop.permute.xlu0 %640
        %642 = vrot.lane.b32.xlu0 %v637, 122
        %v643 = vpop.permute.xlu0 %642
        %v646 = vadd.f32 %v590, %v641
        %v647 = vadd.f32 %v591, %v643
        %s648 = sld [smem:[#allocation4 + $0x15]]
        %v649 = vld [vmem:[#allocation2 + $0x3] sm:$0xff]
        %v650 = vld [vmem:[#allocation2 + $0xb] sm:$0xff]
        %v651 = vstv %s648
        %v652 = vmul.f32 %v651, %v649
        %v653 = vmul.f32 %v651, %v650
        %656 = vrot.lane.b32.xlu0 %v652, 1
        %v657 = vpop.permute.xlu0 %656
        %658 = vrot.lane.b32.xlu0 %v653, 1
        %v659 = vpop.permute.xlu0 %658
        %v662 = vadd.f32 %v604, %v657
        %v663 = vadd.f32 %v605, %v659
        %s664 = sld [smem:[#allocation4 + $0x16]]
        %v665 = vstv %s664
        %v666 = vmul.f32 %v665, %v649
        %v667 = vmul.f32 %v665, %v650
        %670 = vrot.lane.b32.xlu0 %v666, 1
        %v671 = vpop.permute.xlu0 %670
        %672 = vrot.lane.b32.xlu0 %v667, 1
        %v673 = vpop.permute.xlu0 %672
        %v676 = vadd.f32 %v618, %v671
        %v677 = vadd.f32 %v619, %v673
        %s678 = sld [smem:[#allocation4 + $0x17]]
        %v679 = vstv %s678
        %v680 = vmul.f32 %v679, %v649
        %v681 = vmul.f32 %v679, %v650
        %684 = vrot.lane.b32.xlu0 %v680, 1
        %v685 = vpop.permute.xlu0 %684
        %686 = vrot.lane.b32.xlu0 %v681, 1
        %v687 = vpop.permute.xlu0 %686
        %v690 = vadd.f32 %v632, %v685
        %v691 = vadd.f32 %v633, %v687
        %s692 = sld [smem:[#allocation4 + $0x18]]
        %v693 = vstv %s692
        %v694 = vmul.f32 %v693, %v649
        %v695 = vmul.f32 %v693, %v650
        %698 = vrot.lane.b32.xlu0 %v694, 125
        %v699 = vpop.permute.xlu0 %698
        %700 = vrot.lane.b32.xlu0 %v695, 125
        %v701 = vpop.permute.xlu0 %700
        %v704 = vadd.f32 %v646, %v699
        %v705 = vadd.f32 %v647, %v701
        %s706 = sld [smem:[#allocation4 + $0x19]]
        %v707 = vstv %s706
        %v708 = vmul.f32 %v707, %v649
        %v709 = vmul.f32 %v707, %v650
        %712 = vrot.lane.b32.xlu0 %v708, 125
        %v713 = vpop.permute.xlu0 %712
        %714 = vrot.lane.b32.xlu0 %v709, 125
        %v715 = vpop.permute.xlu0 %714
        %v718 = vadd.f32 %v662, %v713
        %v719 = vadd.f32 %v663, %v715
        %s720 = sld [smem:[#allocation4 + $0x1a]]
        %v721 = vstv %s720
        %v722 = vmul.f32 %v721, %v649
        %v723 = vmul.f32 %v721, %v650
        %726 = vrot.lane.b32.xlu0 %v722, 125
        %v727 = vpop.permute.xlu0 %726
        %728 = vrot.lane.b32.xlu0 %v723, 125
        %v729 = vpop.permute.xlu0 %728
        %v732 = vadd.f32 %v676, %v727
        %v733 = vadd.f32 %v677, %v729
        %s734 = sld [smem:[#allocation4 + $0x1b]]
        %v735 = vstv %s734
        %v736 = vmul.f32 %v735, %v649
        %v737 = vmul.f32 %v735, %v650
        %740 = vrot.lane.b32.xlu0 %v736, 125
        %v741 = vpop.permute.xlu0 %740
        %742 = vrot.lane.b32.xlu0 %v737, 125
        %v743 = vpop.permute.xlu0 %742
        %v746 = vadd.f32 %v690, %v741
        %v747 = vadd.f32 %v691, %v743
        %s748 = sld [smem:[#allocation4 + $0x1c]]
        %v749 = vld [vmem:[#allocation2 + $0x4] sm:$0xff]
        %v750 = vld [vmem:[#allocation2 + $0xc] sm:$0xff]
        %v751 = vstv %s748
        %v752 = vmul.f32 %v751, %v749
        %v753 = vmul.f32 %v751, %v750
        %v754 = vadd.f32 %v704, %v752
        %v755 = vadd.f32 %v705, %v753
        %s756 = sld [smem:[#allocation4 + $0x1d]]
        %v757 = vstv %s756
        %v758 = vmul.f32 %v757, %v749
        %v759 = vmul.f32 %v757, %v750
        %v760 = vadd.f32 %v718, %v758
        %v761 = vadd.f32 %v719, %v759
        %s762 = sld [smem:[#allocation4 + $0x1e]]
        %v763 = vstv %s762
        %v764 = vmul.f32 %v763, %v749
        %v765 = vmul.f32 %v763, %v750
        %v766 = vadd.f32 %v732, %v764
        %v767 = vadd.f32 %v733, %v765
        %s768 = sld [smem:[#allocation4 + $0x1f]]
        %v769 = vstv %s768
        %v770 = vmul.f32 %v769, %v749
        %v771 = vmul.f32 %v769, %v750
        %v772 = vadd.f32 %v746, %v770
        %v773 = vadd.f32 %v747, %v771
        %s774 = sld [smem:[#allocation4 + $0x20]]
        %v775 = vstv %s774
        %v776 = vmul.f32 %v775, %v749
        %v777 = vmul.f32 %v775, %v750
        %780 = vrot.lane.b32.xlu0 %v776, 124
        %v781 = vpop.permute.xlu0 %780
        %782 = vrot.lane.b32.xlu0 %v777, 124
        %v783 = vpop.permute.xlu0 %782
        %v786 = vadd.f32 %v754, %v781
        %v787 = vadd.f32 %v755, %v783
        %s788 = sld [smem:[#allocation4 + $0x21]]
        %v789 = vstv %s788
        %v790 = vmul.f32 %v789, %v749
        %v791 = vmul.f32 %v789, %v750
        %794 = vrot.lane.b32.xlu0 %v790, 124
        %v795 = vpop.permute.xlu0 %794
        %796 = vrot.lane.b32.xlu0 %v791, 124
        %v797 = vpop.permute.xlu0 %796
        %v800 = vadd.f32 %v760, %v795
        %v801 = vadd.f32 %v761, %v797
        %s802 = sld [smem:[#allocation4 + $0x22]]
        %v803 = vstv %s802
        %v804 = vmul.f32 %v803, %v749
        %v805 = vmul.f32 %v803, %v750
        %808 = vrot.lane.b32.xlu0 %v804, 124
        %v809 = vpop.permute.xlu0 %808
        %810 = vrot.lane.b32.xlu0 %v805, 124
        %v811 = vpop.permute.xlu0 %810
        %v814 = vadd.f32 %v766, %v809
        %v815 = vadd.f32 %v767, %v811
        %s816 = sld [smem:[#allocation4 + $0x23]]
        %v817 = vld [vmem:[#allocation2 + $0x5] sm:$0xff]
        %v818 = vld [vmem:[#allocation2 + $0xd] sm:$0xff]
        %v819 = vstv %s816
        %v820 = vmul.f32 %v819, %v817
        %v821 = vmul.f32 %v819, %v818
        %824 = vrot.lane.b32.xlu0 %v820, 3
        %v825 = vpop.permute.xlu0 %824
        %826 = vrot.lane.b32.xlu0 %v821, 3
        %v827 = vpop.permute.xlu0 %826
        %v830 = vadd.f32 %v772, %v825
        %v831 = vadd.f32 %v773, %v827
        %s832 = sld [smem:[#allocation4 + $0x24]]
        %v833 = vstv %s832
        %v834 = vmul.f32 %v833, %v817
        %v835 = vmul.f32 %v833, %v818
        %838 = vrot.lane.b32.xlu0 %v834, 127
        %v839 = vpop.permute.xlu0 %838
        %840 = vrot.lane.b32.xlu0 %v835, 127
        %v841 = vpop.permute.xlu0 %840
        %v844 = vadd.f32 %v786, %v839
        %v845 = vadd.f32 %v787, %v841
        %s846 = sld [smem:[#allocation4 + $0x25]]
        %v847 = vstv %s846
        %v848 = vmul.f32 %v847, %v817
        %v849 = vmul.f32 %v847, %v818
        %852 = vrot.lane.b32.xlu0 %v848, 127
        %v853 = vpop.permute.xlu0 %852
        %854 = vrot.lane.b32.xlu0 %v849, 127
        %v855 = vpop.permute.xlu0 %854
        %v858 = vadd.f32 %v800, %v853
        %v859 = vadd.f32 %v801, %v855
        %s860 = sld [smem:[#allocation4 + $0x26]]
        %v861 = vstv %s860
        %v862 = vmul.f32 %v861, %v817
        %v863 = vmul.f32 %v861, %v818
        %866 = vrot.lane.b32.xlu0 %v862, 127
        %v867 = vpop.permute.xlu0 %866
        %868 = vrot.lane.b32.xlu0 %v863, 127
        %v869 = vpop.permute.xlu0 %868
        %v872 = vadd.f32 %v814, %v867
        %v873 = vadd.f32 %v815, %v869
        %s874 = sld [smem:[#allocation4 + $0x27]]
        %v875 = vstv %s874
        %v876 = vmul.f32 %v875, %v817
        %v877 = vmul.f32 %v875, %v818
        %880 = vrot.lane.b32.xlu0 %v876, 127
        %v881 = vpop.permute.xlu0 %880
        %882 = vrot.lane.b32.xlu0 %v877, 127
        %v883 = vpop.permute.xlu0 %882
        %v886 = vadd.f32 %v830, %v881
        %v887 = vadd.f32 %v831, %v883
        %s888 = sld [smem:[#allocation4 + $0x28]]
        %v889 = vstv %s888
        %v890 = vmul.f32 %v889, %v817
        %v891 = vmul.f32 %v889, %v818
        %894 = vrot.lane.b32.xlu0 %v890, 123
        %v895 = vpop.permute.xlu0 %894
        %896 = vrot.lane.b32.xlu0 %v891, 123
        %v897 = vpop.permute.xlu0 %896
        %v900 = vadd.f32 %v844, %v895
        %v901 = vadd.f32 %v845, %v897
        %s902 = sld [smem:[#allocation4 + $0x29]]
        %v903 = vstv %s902
        %v904 = vmul.f32 %v903, %v817
        %v905 = vmul.f32 %v903, %v818
        %908 = vrot.lane.b32.xlu0 %v904, 123
        %v909 = vpop.permute.xlu0 %908
        %910 = vrot.lane.b32.xlu0 %v905, 123
        %v911 = vpop.permute.xlu0 %910
        %v914 = vadd.f32 %v858, %v909
        %v915 = vadd.f32 %v859, %v911
        %s916 = sld [smem:[#allocation4 + $0x2a]]
        %v917 = vld [vmem:[#allocation2 + $0x6] sm:$0xff]
        %v918 = vld [vmem:[#allocation2 + $0xe] sm:$0xff]
        %v919 = vstv %s916
        %v920 = vmul.f32 %v919, %v917
        %v921 = vmul.f32 %v919, %v918
        %924 = vrot.lane.b32.xlu0 %v920, 2
        %v925 = vpop.permute.xlu0 %924
        %926 = vrot.lane.b32.xlu0 %v921, 2
        %v927 = vpop.permute.xlu0 %926
        %v930 = vadd.f32 %v872, %v925
        %v931 = vadd.f32 %v873, %v927
        %s932 = sld [smem:[#allocation4 + $0x2b]]
        %v933 = vstv %s932
        %v934 = vmul.f32 %v933, %v917
        %v935 = vmul.f32 %v933, %v918
        %938 = vrot.lane.b32.xlu0 %v934, 2
        %v939 = vpop.permute.xlu0 %938
        %940 = vrot.lane.b32.xlu0 %v935, 2
        %v941 = vpop.permute.xlu0 %940
        %v944 = vadd.f32 %v886, %v939
        %v945 = vadd.f32 %v887, %v941
        %s946 = sld [smem:[#allocation4 + $0x2c]]
        %v947 = vstv %s946
        %v948 = vmul.f32 %v947, %v917
        %v949 = vmul.f32 %v947, %v918
        %952 = vrot.lane.b32.xlu0 %v948, 126
        %v953 = vpop.permute.xlu0 %952
        %954 = vrot.lane.b32.xlu0 %v949, 126
        %v955 = vpop.permute.xlu0 %954
        %v958 = vadd.f32 %v900, %v953
        %v959 = vadd.f32 %v901, %v955
        %s960 = sld [smem:[#allocation4 + $0x2d]]
        %v961 = vstv %s960
        %v962 = vmul.f32 %v961, %v917
        %v963 = vmul.f32 %v961, %v918
        %966 = vrot.lane.b32.xlu0 %v962, 126
        %v967 = vpop.permute.xlu0 %966
        %968 = vrot.lane.b32.xlu0 %v963, 126
        %v969 = vpop.permute.xlu0 %968
        %v972 = vadd.f32 %v914, %v967
        %v973 = vadd.f32 %v915, %v969
        %s974 = sld [smem:[#allocation4 + $0x2e]]
        %v975 = vstv %s974
        %v976 = vmul.f32 %v975, %v917
        %v977 = vmul.f32 %v975, %v918
        %980 = vrot.lane.b32.xlu0 %v976, 126
        %v981 = vpop.permute.xlu0 %980
        %982 = vrot.lane.b32.xlu0 %v977, 126
        %v983 = vpop.permute.xlu0 %982
        %v986 = vadd.f32 %v930, %v981
        %v987 = vadd.f32 %v931, %v983
        %s988 = sld [smem:[#allocation4 + $0x2f]]
        %v989 = vstv %s988
        %v990 = vmul.f32 %v989, %v917
        %v991 = vmul.f32 %v989, %v918
        %994 = vrot.lane.b32.xlu0 %v990, 126
        %v995 = vpop.permute.xlu0 %994
        %996 = vrot.lane.b32.xlu0 %v991, 126
        %v997 = vpop.permute.xlu0 %996
        %v1000 = vadd.f32 %v944, %v995
        %v1001 = vadd.f32 %v945, %v997
        %s1002 = sld [smem:[#allocation4 + $0x30]]
        %v1003 = vstv %s1002
        %v1004 = vmul.f32 %v1003, %v917
        %v1005 = vmul.f32 %v1003, %v918
        %1008 = vrot.lane.b32.xlu0 %v1004, 122
        %v1009 = vpop.permute.xlu0 %1008
        %1010 = vrot.lane.b32.xlu0 %v1005, 122
        %v1011 = vpop.permute.xlu0 %1010
        %v1014 = vadd.f32 %v958, %v1009
        %v1015 = vadd.f32 %v959, %v1011
        %s1016 = sld [smem:[#allocation4 + $0x31]]
        %v1017 = vld [vmem:[%s256] sm:$0xff]
        %v1018 = vld [vmem:[%s256 + $0x8] sm:$0xff]
        %v1019 = vstv %s1016
        %v1020 = vmul.f32 %v1019, %v1017
        %v1021 = vmul.f32 %v1019, %v1018
        %1024 = vrot.lane.b32.xlu0 %v1020, 1
        %v1025 = vpop.permute.xlu0 %1024
        %1026 = vrot.lane.b32.xlu0 %v1021, 1
        %v1027 = vpop.permute.xlu0 %1026
        %v1030 = vadd.f32 %v972, %v1025
        %v1031 = vadd.f32 %v973, %v1027
        %s1032 = sld [smem:[#allocation4 + $0x32]]
        %v1033 = vstv %s1032
        %v1034 = vmul.f32 %v1033, %v1017
        %v1035 = vmul.f32 %v1033, %v1018
        %1038 = vrot.lane.b32.xlu0 %v1034, 1
        %v1039 = vpop.permute.xlu0 %1038
        %1040 = vrot.lane.b32.xlu0 %v1035, 1
        %v1041 = vpop.permute.xlu0 %1040
        %v1044 = vadd.f32 %v986, %v1039
        %v1045 = vadd.f32 %v987, %v1041
        %s1046 = sld [smem:[#allocation4 + $0x33]]
        %v1047 = vstv %s1046
        %v1048 = vmul.f32 %v1047, %v1017
        %v1049 = vmul.f32 %v1047, %v1018
        %1052 = vrot.lane.b32.xlu0 %v1048, 1
        %v1053 = vpop.permute.xlu0 %1052
        %1054 = vrot.lane.b32.xlu0 %v1049, 1
        %v1055 = vpop.permute.xlu0 %1054
        %v1058 = vadd.f32 %v1000, %v1053
        %v1059 = vadd.f32 %v1001, %v1055
        %s1060 = sld [smem:[#allocation4 + $0x34]]
        %v1061 = vstv %s1060
        %v1062 = vmul.f32 %v1061, %v1017
        %v1063 = vmul.f32 %v1061, %v1018
        %1066 = vrot.lane.b32.xlu0 %v1062, 125
        %v1067 = vpop.permute.xlu0 %1066
        %1068 = vrot.lane.b32.xlu0 %v1063, 125
        %v1069 = vpop.permute.xlu0 %1068
        %v1072 = vadd.f32 %v1014, %v1067
        %v1073 = vadd.f32 %v1015, %v1069
        %s1074 = sld [smem:[#allocation4 + $0x35]]
        %v1075 = vstv %s1074
        %v1076 = vmul.f32 %v1075, %v1017
        %v1077 = vmul.f32 %v1075, %v1018
        %1080 = vrot.lane.b32.xlu0 %v1076, 125
        %v1081 = vpop.permute.xlu0 %1080
        %1082 = vrot.lane.b32.xlu0 %v1077, 125
        %v1083 = vpop.permute.xlu0 %1082
        %v1086 = vadd.f32 %v1030, %v1081
        %v1087 = vadd.f32 %v1031, %v1083
        %s1088 = sld [smem:[#allocation4 + $0x36]]
        %v1089 = vstv %s1088
        %v1090 = vmul.f32 %v1089, %v1017
        %v1091 = vmul.f32 %v1089, %v1018
        %1094 = vrot.lane.b32.xlu0 %v1090, 125
        %v1095 = vpop.permute.xlu0 %1094
        %1096 = vrot.lane.b32.xlu0 %v1091, 125
        %v1097 = vpop.permute.xlu0 %1096
        %v1100 = vadd.f32 %v1044, %v1095
        %v1101 = vadd.f32 %v1045, %v1097
        %s1102 = sld [smem:[#allocation4 + $0x37]]
        %v1103 = vstv %s1102
        %v1104 = vmul.f32 %v1103, %v1017
        %v1105 = vmul.f32 %v1103, %v1018
        %1108 = vrot.lane.b32.xlu0 %v1104, 125
        %v1109 = vpop.permute.xlu0 %1108
        %1110 = vrot.lane.b32.xlu0 %v1105, 125
        %v1111 = vpop.permute.xlu0 %1110
        %v1114 = vadd.f32 %v1058, %v1109
        %v1115 = vadd.f32 %v1059, %v1111
        %s1116 = sld [smem:[#allocation4 + $0x38]]
        %v1117 = vld [vmem:[%s256 + $0x1] sm:$0xff]
        %v1118 = vld [vmem:[%s256 + $0x9] sm:$0xff]
        %v1119 = vstv %s1116
        %v1120 = vmul.f32 %v1119, %v1117
        %v1121 = vmul.f32 %v1119, %v1118
        %v1122 = vadd.f32 %v1072, %v1120
        %v1123 = vadd.f32 %v1073, %v1121
        %s1124 = sld [smem:[#allocation4 + $0x39]]
        %v1125 = vstv %s1124
        %v1126 = vmul.f32 %v1125, %v1117
        %v1127 = vmul.f32 %v1125, %v1118
        %v1128 = vadd.f32 %v1086, %v1126
        %v1129 = vadd.f32 %v1087, %v1127
        %s1130 = sld [smem:[#allocation4 + $0x3a]]
        %v1131 = vstv %s1130
        %v1132 = vmul.f32 %v1131, %v1117
        %v1133 = vmul.f32 %v1131, %v1118
        %v1134 = vadd.f32 %v1100, %v1132
        %v1135 = vadd.f32 %v1101, %v1133
        %s1136 = sld [smem:[#allocation4 + $0x3b]]
        %v1137 = vstv %s1136
        %v1138 = vmul.f32 %v1137, %v1117
        %v1139 = vmul.f32 %v1137, %v1118
        %v1140 = vadd.f32 %v1114, %v1138
        %v1141 = vadd.f32 %v1115, %v1139
        %s1142 = sld [smem:[#allocation4 + $0x3c]]
        %v1143 = vstv %s1142
        %v1144 = vmul.f32 %v1143, %v1117
        %v1145 = vmul.f32 %v1143, %v1118
        %1148 = vrot.lane.b32.xlu0 %v1144, 124
        %v1149 = vpop.permute.xlu0 %1148
        %1150 = vrot.lane.b32.xlu0 %v1145, 124
        %v1151 = vpop.permute.xlu0 %1150
        %v1154 = vadd.f32 %v1122, %v1149
        %v1155 = vadd.f32 %v1123, %v1151
        %s1156 = sld [smem:[#allocation4 + $0x3d]]
        %v1157 = vstv %s1156
        %v1158 = vmul.f32 %v1157, %v1117
        %v1159 = vmul.f32 %v1157, %v1118
        %1162 = vrot.lane.b32.xlu0 %v1158, 124
        %v1163 = vpop.permute.xlu0 %1162
        %1164 = vrot.lane.b32.xlu0 %v1159, 124
        %v1165 = vpop.permute.xlu0 %1164
        %v1168 = vadd.f32 %v1128, %v1163
        %v1169 = vadd.f32 %v1129, %v1165
        %s1170 = sld [smem:[#allocation4 + $0x3e]]
        %v1171 = vstv %s1170
        %v1172 = vmul.f32 %v1171, %v1117
        %v1173 = vmul.f32 %v1171, %v1118
        %1176 = vrot.lane.b32.xlu0 %v1172, 124
        %v1177 = vpop.permute.xlu0 %1176
        %1178 = vrot.lane.b32.xlu0 %v1173, 124
        %v1179 = vpop.permute.xlu0 %1178
        %v1182 = vadd.f32 %v1134, %v1177
        %v1183 = vadd.f32 %v1135, %v1179
        %s1184 = sld [smem:[#allocation4 + $0x3f]]
        %v1185 = vld [vmem:[%s256 + $0x2] sm:$0xff]
        %v1186 = vld [vmem:[%s256 + $0xa] sm:$0xff]
        %v1187 = vstv %s1184
        %v1188 = vmul.f32 %v1187, %v1185
        %v1189 = vmul.f32 %v1187, %v1186
        %1192 = vrot.lane.b32.xlu0 %v1188, 3
        %v1193 = vpop.permute.xlu0 %1192
        %1194 = vrot.lane.b32.xlu0 %v1189, 3
        %v1195 = vpop.permute.xlu0 %1194
        %v1198 = vadd.f32 %v1140, %v1193
        %v1199 = vadd.f32 %v1141, %v1195
        %s1200 = sld [smem:[#allocation4 + $0x40]]
        %v1201 = vstv %s1200
        %v1202 = vmul.f32 %v1201, %v1185
        %v1203 = vmul.f32 %v1201, %v1186
        %1206 = vrot.lane.b32.xlu0 %v1202, 127
        %v1207 = vpop.permute.xlu0 %1206
        %1208 = vrot.lane.b32.xlu0 %v1203, 127
        %v1209 = vpop.permute.xlu0 %1208
        %v1212 = vadd.f32 %v1154, %v1207
        %v1213 = vadd.f32 %v1155, %v1209
        %s1214 = sld [smem:[#allocation4 + $0x41]]
        %v1215 = vstv %s1214
        %v1216 = vmul.f32 %v1215, %v1185
        %v1217 = vmul.f32 %v1215, %v1186
        %1220 = vrot.lane.b32.xlu0 %v1216, 127
        %v1221 = vpop.permute.xlu0 %1220
        %1222 = vrot.lane.b32.xlu0 %v1217, 127
        %v1223 = vpop.permute.xlu0 %1222
        %v1226 = vadd.f32 %v1168, %v1221
        %v1227 = vadd.f32 %v1169, %v1223
        %s1228 = sld [smem:[#allocation4 + $0x42]]
        %v1229 = vstv %s1228
        %v1230 = vmul.f32 %v1229, %v1185
        %v1231 = vmul.f32 %v1229, %v1186
        %1234 = vrot.lane.b32.xlu0 %v1230, 127
        %v1235 = vpop.permute.xlu0 %1234
        %1236 = vrot.lane.b32.xlu0 %v1231, 127
        %v1237 = vpop.permute.xlu0 %1236
        %v1240 = vadd.f32 %v1182, %v1235
        %v1241 = vadd.f32 %v1183, %v1237
        %s1242 = sld [smem:[#allocation4 + $0x43]]
        %v1243 = vstv %s1242
        %v1244 = vmul.f32 %v1243, %v1185
        %v1245 = vmul.f32 %v1243, %v1186
        %1248 = vrot.lane.b32.xlu0 %v1244, 127
        %v1249 = vpop.permute.xlu0 %1248
        %1250 = vrot.lane.b32.xlu0 %v1245, 127
        %v1251 = vpop.permute.xlu0 %1250
        %v1254 = vadd.f32 %v1198, %v1249
        %v1255 = vadd.f32 %v1199, %v1251
        %s1256 = sld [smem:[#allocation4 + $0x44]]
        %v1257 = vstv %s1256
        %v1258 = vmul.f32 %v1257, %v1185
        %v1259 = vmul.f32 %v1257, %v1186
        %1262 = vrot.lane.b32.xlu0 %v1258, 123
        %v1263 = vpop.permute.xlu0 %1262
        %1264 = vrot.lane.b32.xlu0 %v1259, 123
        %v1265 = vpop.permute.xlu0 %1264
        %v1268 = vadd.f32 %v1212, %v1263
        %v1269 = vadd.f32 %v1213, %v1265
        %s1270 = sld [smem:[#allocation4 + $0x45]]
        %v1271 = vstv %s1270
        %v1272 = vmul.f32 %v1271, %v1185
        %v1273 = vmul.f32 %v1271, %v1186
        %1276 = vrot.lane.b32.xlu0 %v1272, 123
        %v1277 = vpop.permute.xlu0 %1276
        %1278 = vrot.lane.b32.xlu0 %v1273, 123
        %v1279 = vpop.permute.xlu0 %1278
        %v1282 = vadd.f32 %v1226, %v1277
        %v1283 = vadd.f32 %v1227, %v1279
        %s1284 = sld [smem:[#allocation4 + $0x46]]
        %v1285 = vld [vmem:[%s256 + $0x3] sm:$0xff]
        %v1286 = vld [vmem:[%s256 + $0xb] sm:$0xff]
        %v1287 = vstv %s1284
        %v1288 = vmul.f32 %v1287, %v1285
        %v1289 = vmul.f32 %v1287, %v1286
        %1292 = vrot.lane.b32.xlu0 %v1288, 2
        %v1293 = vpop.permute.xlu0 %1292
        %1294 = vrot.lane.b32.xlu0 %v1289, 2
        %v1295 = vpop.permute.xlu0 %1294
        %v1298 = vadd.f32 %v1240, %v1293
        %v1299 = vadd.f32 %v1241, %v1295
        %s1300 = sld [smem:[#allocation4 + $0x47]]
        %v1301 = vstv %s1300
        %v1302 = vmul.f32 %v1301, %v1285
        %v1303 = vmul.f32 %v1301, %v1286
        %1306 = vrot.lane.b32.xlu0 %v1302, 2
        %v1307 = vpop.permute.xlu0 %1306
        %1308 = vrot.lane.b32.xlu0 %v1303, 2
        %v1309 = vpop.permute.xlu0 %1308
        %v1312 = vadd.f32 %v1254, %v1307
        %v1313 = vadd.f32 %v1255, %v1309
        %s1314 = sld [smem:[#allocation4 + $0x48]]
        %v1315 = vstv %s1314
        %v1316 = vmul.f32 %v1315, %v1285
        %v1317 = vmul.f32 %v1315, %v1286
        %1320 = vrot.lane.b32.xlu0 %v1316, 126
        %v1321 = vpop.permute.xlu0 %1320
        %1322 = vrot.lane.b32.xlu0 %v1317, 126
        %v1323 = vpop.permute.xlu0 %1322
        %v1326 = vadd.f32 %v1268, %v1321
        %v1327 = vadd.f32 %v1269, %v1323
        %s1328 = sld [smem:[#allocation4 + $0x49]]
        %v1329 = vstv %s1328
        %v1330 = vmul.f32 %v1329, %v1285
        %v1331 = vmul.f32 %v1329, %v1286
        %1334 = vrot.lane.b32.xlu0 %v1330, 126
        %v1335 = vpop.permute.xlu0 %1334
        %1336 = vrot.lane.b32.xlu0 %v1331, 126
        %v1337 = vpop.permute.xlu0 %1336
        %v1340 = vadd.f32 %v1282, %v1335
        %v1341 = vadd.f32 %v1283, %v1337
        %s1342 = sld [smem:[#allocation4 + $0x4a]]
        %v1343 = vstv %s1342
        %v1344 = vmul.f32 %v1343, %v1285
        %v1345 = vmul.f32 %v1343, %v1286
        %1348 = vrot.lane.b32.xlu0 %v1344, 126
        %v1349 = vpop.permute.xlu0 %1348
        %1350 = vrot.lane.b32.xlu0 %v1345, 126
        %v1351 = vpop.permute.xlu0 %1350
        %v1354 = vadd.f32 %v1298, %v1349
        %v1355 = vadd.f32 %v1299, %v1351
        %s1356 = sld [smem:[#allocation4 + $0x4b]]
        %v1357 = vstv %s1356
        %v1358 = vmul.f32 %v1357, %v1285
        %v1359 = vmul.f32 %v1357, %v1286
        %1362 = vrot.lane.b32.xlu0 %v1358, 126
        %v1363 = vpop.permute.xlu0 %1362
        %1364 = vrot.lane.b32.xlu0 %v1359, 126
        %v1365 = vpop.permute.xlu0 %1364
        %v1368 = vadd.f32 %v1312, %v1363
        %v1369 = vadd.f32 %v1313, %v1365
        %s1370 = sld [smem:[#allocation4 + $0x4c]]
        %v1371 = vstv %s1370
        %v1372 = vmul.f32 %v1371, %v1285
        %v1373 = vmul.f32 %v1371, %v1286
        %1376 = vrot.lane.b32.xlu0 %v1372, 122
        %v1377 = vpop.permute.xlu0 %1376
        %1378 = vrot.lane.b32.xlu0 %v1373, 122
        %v1379 = vpop.permute.xlu0 %1378
        %v1382 = vadd.f32 %v1326, %v1377
        %v1383 = vadd.f32 %v1327, %v1379
        %s1384 = sld [smem:[#allocation4 + $0x4d]]
        %v1385 = vld [vmem:[%s256 + $0x4] sm:$0xff]
        %v1386 = vld [vmem:[%s256 + $0xc] sm:$0xff]
        %v1387 = vstv %s1384
        %v1388 = vmul.f32 %v1387, %v1385
        %v1389 = vmul.f32 %v1387, %v1386
        %1392 = vrot.lane.b32.xlu0 %v1388, 1
        %v1393 = vpop.permute.xlu0 %1392
        %1394 = vrot.lane.b32.xlu0 %v1389, 1
        %v1395 = vpop.permute.xlu0 %1394
        %v1398 = vadd.f32 %v1340, %v1393
        %v1399 = vadd.f32 %v1341, %v1395
        %s1400 = sld [smem:[#allocation4 + $0x4e]]
        %v1401 = vstv %s1400
        %v1402 = vmul.f32 %v1401, %v1385
        %v1403 = vmul.f32 %v1401, %v1386
        %1406 = vrot.lane.b32.xlu0 %v1402, 1
        %v1407 = vpop.permute.xlu0 %1406
        %1408 = vrot.lane.b32.xlu0 %v1403, 1
        %v1409 = vpop.permute.xlu0 %1408
        %v1412 = vadd.f32 %v1354, %v1407
        %v1413 = vadd.f32 %v1355, %v1409
        %s1414 = sld [smem:[#allocation4 + $0x4f]]
        %v1415 = vstv %s1414
        %v1416 = vmul.f32 %v1415, %v1385
        %v1417 = vmul.f32 %v1415, %v1386
        %1420 = vrot.lane.b32.xlu0 %v1416, 1
        %v1421 = vpop.permute.xlu0 %1420
        %1422 = vrot.lane.b32.xlu0 %v1417, 1
        %v1423 = vpop.permute.xlu0 %1422
        %v1426 = vadd.f32 %v1368, %v1421
        %v1427 = vadd.f32 %v1369, %v1423
        %s1428 = sld [smem:[#allocation4 + $0x50]]
        %v1429 = vstv %s1428
        %v1430 = vmul.f32 %v1429, %v1385
        %v1431 = vmul.f32 %v1429, %v1386
        %1434 = vrot.lane.b32.xlu0 %v1430, 125
        %v1435 = vpop.permute.xlu0 %1434
        %1436 = vrot.lane.b32.xlu0 %v1431, 125
        %v1437 = vpop.permute.xlu0 %1436
        %v1440 = vadd.f32 %v1382, %v1435
        %v1441 = vadd.f32 %v1383, %v1437
        %s1442 = sld [smem:[#allocation4 + $0x51]]
        %v1443 = vstv %s1442
        %v1444 = vmul.f32 %v1443, %v1385
        %v1445 = vmul.f32 %v1443, %v1386
        %1448 = vrot.lane.b32.xlu0 %v1444, 125
        %v1449 = vpop.permute.xlu0 %1448
        %1450 = vrot.lane.b32.xlu0 %v1445, 125
        %v1451 = vpop.permute.xlu0 %1450
        %v1454 = vadd.f32 %v1398, %v1449
        %v1455 = vadd.f32 %v1399, %v1451
        %s1456 = sld [smem:[#allocation4 + $0x52]]
        %v1457 = vstv %s1456
        %v1458 = vmul.f32 %v1457, %v1385
        %v1459 = vmul.f32 %v1457, %v1386
        %1462 = vrot.lane.b32.xlu0 %v1458, 125
        %v1463 = vpop.permute.xlu0 %1462
        %1464 = vrot.lane.b32.xlu0 %v1459, 125
        %v1465 = vpop.permute.xlu0 %1464
        %v1468 = vadd.f32 %v1412, %v1463
        %v1469 = vadd.f32 %v1413, %v1465
        %s1470 = sld [smem:[#allocation4 + $0x53]]
        %v1471 = vstv %s1470
        %v1472 = vmul.f32 %v1471, %v1385
        %v1473 = vmul.f32 %v1471, %v1386
        %1476 = vrot.lane.b32.xlu0 %v1472, 125
        %v1477 = vpop.permute.xlu0 %1476
        %1478 = vrot.lane.b32.xlu0 %v1473, 125
        %v1479 = vpop.permute.xlu0 %1478
        %v1482 = vadd.f32 %v1426, %v1477
        %v1483 = vadd.f32 %v1427, %v1479
        %s1484 = sld [smem:[#allocation4 + $0x54]]
        %v1485 = vld [vmem:[%s256 + $0x5] sm:$0xff]
        %v1486 = vld [vmem:[%s256 + $0xd] sm:$0xff]
        %v1487 = vstv %s1484
        %v1488 = vmul.f32 %v1487, %v1485
        %v1489 = vmul.f32 %v1487, %v1486
        %v1490 = vadd.f32 %v1440, %v1488
        %v1491 = vadd.f32 %v1441, %v1489
        %s1492 = sld [smem:[#allocation4 + $0x55]]
        %v1493 = vstv %s1492
        %v1494 = vmul.f32 %v1493, %v1485
        %v1495 = vmul.f32 %v1493, %v1486
        %v1496 = vadd.f32 %v1454, %v1494
        %v1497 = vadd.f32 %v1455, %v1495
        %s1498 = sld [smem:[#allocation4 + $0x56]]
        %v1499 = vstv %s1498
        %v1500 = vmul.f32 %v1499, %v1485
        %v1501 = vmul.f32 %v1499, %v1486
        %v1502 = vadd.f32 %v1468, %v1500
        %v1503 = vadd.f32 %v1469, %v1501
        %s1504 = sld [smem:[#allocation4 + $0x57]]
        %v1505 = vstv %s1504
        %v1506 = vmul.f32 %v1505, %v1485
        %v1507 = vmul.f32 %v1505, %v1486
        %v1508 = vadd.f32 %v1482, %v1506
        %v1509 = vadd.f32 %v1483, %v1507
        %s1510 = sld [smem:[#allocation4 + $0x58]]
        %v1511 = vstv %s1510
        %v1512 = vmul.f32 %v1511, %v1485
        %v1513 = vmul.f32 %v1511, %v1486
        %1516 = vrot.lane.b32.xlu0 %v1512, 124
        %v1517 = vpop.permute.xlu0 %1516
        %1518 = vrot.lane.b32.xlu0 %v1513, 124
        %v1519 = vpop.permute.xlu0 %1518
        %v1522 = vadd.f32 %v1490, %v1517
        %v1523 = vadd.f32 %v1491, %v1519
        %s1524 = sld [smem:[#allocation4 + $0x59]]
        %v1525 = vstv %s1524
        %v1526 = vmul.f32 %v1525, %v1485
        %v1527 = vmul.f32 %v1525, %v1486
        %1530 = vrot.lane.b32.xlu0 %v1526, 124
        %v1531 = vpop.permute.xlu0 %1530
        %1532 = vrot.lane.b32.xlu0 %v1527, 124
        %v1533 = vpop.permute.xlu0 %1532
        %v1536 = vadd.f32 %v1496, %v1531
        %v1537 = vadd.f32 %v1497, %v1533
        %s1538 = sld [smem:[#allocation4 + $0x5a]]
        %v1539 = vstv %s1538
        %v1540 = vmul.f32 %v1539, %v1485
        %v1541 = vmul.f32 %v1539, %v1486
        %1544 = vrot.lane.b32.xlu0 %v1540, 124
        %v1545 = vpop.permute.xlu0 %1544
        %1546 = vrot.lane.b32.xlu0 %v1541, 124
        %v1547 = vpop.permute.xlu0 %1546
        %v1550 = vadd.f32 %v1502, %v1545
        %v1551 = vadd.f32 %v1503, %v1547
        %s1552 = sld [smem:[#allocation4 + $0x5b]]
        %v1553 = vld [vmem:[%s256 + $0x6] sm:$0xff]
        %v1554 = vld [vmem:[%s256 + $0xe] sm:$0xff]
        %v1555 = vstv %s1552
        %v1556 = vmul.f32 %v1555, %v1553
        %v1557 = vmul.f32 %v1555, %v1554
        %1560 = vrot.lane.b32.xlu0 %v1556, 3
        %v1561 = vpop.permute.xlu0 %1560
        %1562 = vrot.lane.b32.xlu0 %v1557, 3
        %v1563 = vpop.permute.xlu0 %1562
        %v1566 = vadd.f32 %v1508, %v1561
        %v1567 = vadd.f32 %v1509, %v1563
        %s1568 = sld [smem:[#allocation4 + $0x5c]]
        %v1569 = vstv %s1568
        %v1570 = vmul.f32 %v1569, %v1553
        %v1571 = vmul.f32 %v1569, %v1554
        %1574 = vrot.lane.b32.xlu0 %v1570, 127
        %v1575 = vpop.permute.xlu0 %1574
        %1576 = vrot.lane.b32.xlu0 %v1571, 127
        %v1577 = vpop.permute.xlu0 %1576
        %v1580 = vadd.f32 %v1522, %v1575
        %v1581 = vadd.f32 %v1523, %v1577
        %s1582 = sld [smem:[#allocation4 + $0x5d]]
        %v1583 = vstv %s1582
        %v1584 = vmul.f32 %v1583, %v1553
        %v1585 = vmul.f32 %v1583, %v1554
        %1588 = vrot.lane.b32.xlu0 %v1584, 127
        %v1589 = vpop.permute.xlu0 %1588
        %1590 = vrot.lane.b32.xlu0 %v1585, 127
        %v1591 = vpop.permute.xlu0 %1590
        %v1594 = vadd.f32 %v1536, %v1589
        %v1595 = vadd.f32 %v1537, %v1591
        %s1596 = sld [smem:[#allocation4 + $0x5e]]
        %v1597 = vstv %s1596
        %v1598 = vmul.f32 %v1597, %v1553
        %v1599 = vmul.f32 %v1597, %v1554
        %1602 = vrot.lane.b32.xlu0 %v1598, 127
        %v1603 = vpop.permute.xlu0 %1602
        %1604 = vrot.lane.b32.xlu0 %v1599, 127
        %v1605 = vpop.permute.xlu0 %1604
        %v1608 = vadd.f32 %v1550, %v1603
        %v1609 = vadd.f32 %v1551, %v1605
        %s1610 = sld [smem:[#allocation4 + $0x5f]]
        %v1611 = vstv %s1610
        %v1612 = vmul.f32 %v1611, %v1553
        %v1613 = vmul.f32 %v1611, %v1554
        %1616 = vrot.lane.b32.xlu0 %v1612, 127
        %v1617 = vpop.permute.xlu0 %1616
        %1618 = vrot.lane.b32.xlu0 %v1613, 127
        %v1619 = vpop.permute.xlu0 %1618
        %v1622 = vadd.f32 %v1566, %v1617
        %v1623 = vadd.f32 %v1567, %v1619
        %s1624 = sld [smem:[#allocation4 + $0x60]]
        %v1625 = vstv %s1624
        %v1626 = vmul.f32 %v1625, %v1553
        %v1627 = vmul.f32 %v1625, %v1554
        %1630 = vrot.lane.b32.xlu0 %v1626, 123
        %v1631 = vpop.permute.xlu0 %1630
        %1632 = vrot.lane.b32.xlu0 %v1627, 123
        %v1633 = vpop.permute.xlu0 %1632
        %v1636 = vadd.f32 %v1580, %v1631
        %v1637 = vadd.f32 %v1581, %v1633
        %s1638 = sld [smem:[#allocation4 + $0x61]]
        %v1639 = vstv %s1638
        %v1640 = vmul.f32 %v1639, %v1553
        %v1641 = vmul.f32 %v1639, %v1554
        %1644 = vrot.lane.b32.xlu0 %v1640, 123
        %v1645 = vpop.permute.xlu0 %1644
        %1646 = vrot.lane.b32.xlu0 %v1641, 123
        %v1647 = vpop.permute.xlu0 %1646
        %v1650 = vadd.f32 %v1594, %v1645
        %v1651 = vadd.f32 %v1595, %v1647
        %1654 = vrot.lane.b32.xlu0 %v1650, 127
        %v1655 = vpop.permute.xlu0 %1654
        %1656 = vrot.lane.b32.xlu0 %v1651, 127
        %v1657 = vpop.permute.xlu0 %1656
        %v1660 = vadd.f32 %v1636, %v1655
        %v1661 = vadd.f32 %v1637, %v1657
        %1664 = vrot.lane.b32.xlu0 %v1622, 127
        %v1665 = vpop.permute.xlu0 %1664
        %1666 = vrot.lane.b32.xlu0 %v1623, 127
        %v1667 = vpop.permute.xlu0 %1666
        %v1670 = vadd.f32 %v1608, %v1665
        %v1671 = vadd.f32 %v1609, %v1667
        %1674 = vrot.lane.b32.xlu0 %v1670, 126
        %v1675 = vpop.permute.xlu0 %1674
        %1676 = vrot.lane.b32.xlu0 %v1671, 126
        %v1677 = vpop.permute.xlu0 %1676
        %v1680 = vadd.f32 %v1660, %v1675
        %v1681 = vadd.f32 %v1661, %v1677
        %s1682 = sld [smem:[#allocation3]]
        %v1683 = vstv %s1682
        %v1684 = vadd.f32 %v1680, %v1683
        %v1685 = vadd.f32 %v1681, %v1683
        %v1686 = vxor.u32 %v1684, 2147483648
        %v1687 = vxor.u32 %v1685, 2147483648
        %v1688 = vmul.f32 %v1686, 1.442695
        %v1689 = vpow.pop %v1688
        %v1690 = vmul.f32 %v1687, 1.442695
        %v1691 = vpow.pop %v1690
        %v1692 = vadd.f32 %v1689, 1.0
        %v1693 = vadd.f32 %v1691, 1.0
        %v1694 = vrcp.pop %v1692
        %v1695 = vmul.f32 1.0, %v1694
        %v1696 = vrcp.pop %v1693
        %v1697 = vmul.f32 1.0, %v1696
        %v1699 = vrot.slane %v1695, 1
        %1700 = vrot.lane.b32.xlu0 %v1699, 16
        %v1701 = vpop.permute.xlu0 %1700
        %v1703 = vrot.slane %v1695, 2
        %1704 = vrot.lane.b32.xlu0 %v1703, 32
        %v1705 = vpop.permute.xlu0 %1704
        %v1707 = vrot.slane %v1695, 3
        %1708 = vrot.lane.b32.xlu0 %v1707, 48
        %v1709 = vpop.permute.xlu0 %1708
        %v1711 = vrot.slane %v1695, 4
        %1712 = vrot.lane.b32.xlu0 %v1711, 64
        %v1713 = vpop.permute.xlu0 %1712
        %v1715 = vrot.slane %v1695, 5
        %1716 = vrot.lane.b32.xlu0 %v1715, 80
        %v1717 = vpop.permute.xlu0 %1716
        %v1719 = vrot.slane %v1695, 6
        %1720 = vrot.lane.b32.xlu0 %v1719, 96
        %v1721 = vpop.permute.xlu0 %1720
        %v1723 = vrot.slane %v1695, 7
        %1724 = vrot.lane.b32.xlu0 %v1723, 112
        %v1725 = vpop.permute.xlu0 %1724
        %v1728 = vrot.slane %v1697, 1
        %1729 = vrot.lane.b32.xlu0 %v1728, 16
        %v1730 = vpop.permute.xlu0 %1729
        %v1732 = vrot.slane %v1697, 2
        %1733 = vrot.lane.b32.xlu0 %v1732, 32
        %v1734 = vpop.permute.xlu0 %1733
        %v1736 = vrot.slane %v1697, 3
        %1737 = vrot.lane.b32.xlu0 %v1736, 48
        %v1738 = vpop.permute.xlu0 %1737
        %v1740 = vrot.slane %v1697, 4
        %1741 = vrot.lane.b32.xlu0 %v1740, 64
        %v1742 = vpop.permute.xlu0 %1741
        %v1744 = vrot.slane %v1697, 5
        %1745 = vrot.lane.b32.xlu0 %v1744, 80
        %v1746 = vpop.permute.xlu0 %1745
        %v1748 = vrot.slane %v1697, 6
        %1749 = vrot.lane.b32.xlu0 %v1748, 96
        %v1750 = vpop.permute.xlu0 %1749
        %v1752 = vrot.slane %v1697, 7
        %1753 = vrot.lane.b32.xlu0 %v1752, 112
        %v1754 = vpop.permute.xlu0 %1753
        %vm1756 = vcmask 130048
        %v1757 = vsel %vm1756, %v1695, %v1701
        %vm1758 = vcmask 261120
        %v1759 = vsel %vm1758, %v1757, %v1705
        %vm1760 = vcmask 392192
        %v1761 = vsel %vm1760, %v1759, %v1709
        %vm1762 = vcmask 523264
        %v1763 = vsel %vm1762, %v1761, %v1713
        %vm1764 = vcmask 654336
        %v1765 = vsel %vm1764, %v1763, %v1717
        %vm1766 = vcmask 785408
        %v1767 = vsel %vm1766, %v1765, %v1721
        %vm1768 = vcmask 916480
        %v1769 = vsel %vm1768, %v1767, %v1725
        %v1770 = vsel %vm1756, %v1697, %v1730
        %v1771 = vsel %vm1758, %v1770, %v1734
        %v1772 = vsel %vm1760, %v1771, %v1738
        %v1773 = vsel %vm1762, %v1772, %v1742
        %v1774 = vsel %vm1764, %v1773, %v1746
        %v1775 = vsel %vm1766, %v1774, %v1750
        %v1776 = vsel %vm1768, %v1775, %v1754
        %v1777 = vlaneseq
        %v1778 = vshrl.u32 %v1777, 7
        %v1779 = vsub.s32 0, %v1778
        %v1780 = vrot.slane %v1769, %v1779
        %v1781 = vlaneseq
        %v1782 = vshrl.u32 %v1781, 7
        %v1783 = vsub.s32 0, %v1782
        %v1784 = vrot.slane %v1776, %v1783
        %v1787 = vcombine.low %v1780, %v1784
        %v1789 = vmul.f32 %v202, %v1787
        %1790 = vst [vmem:[%s201] sm:$0xff] %v1789
        %s1791 = sand.u32 %s98, 1
        %s1792 = scalar_lea.sflag [#allocation6], %s1791
        %s1793 = sand.u32 %s98, 1
        %s1794 = smul.addr %s1793, 8
        %s1795 = scalar_lea.vmem [#allocation9], %s1794
        // Predicated region
        $region41: #{tpu_custom_call.1} parent=31 // pred_check
          %p1796 = pneg %p108
        $region42: #{tpu_custom_call.1} parent=31 // pred_check_branch
          %1798 = sbr.rel (%p1796) target = $region44
        $region43: #{tpu_custom_call.1} parent=31 // pred_region
          %s1800 = ssub.s32 128, 128
          %1801 = vsyncadd %s1792, %s1800
          %s1802 = smul.addr %s22, 2
          %s1803 = smul.addr %s1802, 64
          %s1804 = scalar_lea.hbm %s3, %s1803
          %s1806 = sshll.u32 %s1795, 4
          %s1807 = int_to_ptr.vmem [resolvable:$true] %s1806
          %1809 = dma.vmem_to_hbm [thread:$0]  %s1807, 128, %s1804, %s1792
        $region44: #{tpu_custom_call.1} parent=31 // pred_fallthru
          _
      $region32: #{tpu_custom_call.1} parent=5 // pred_fallthru
        _
      %p1810 = scmp.le.s32.totalorder 2, %s17
      // Predicated region
      $region45: #{tpu_custom_call.1} parent=5 // pred_check
        %p1811 = pneg %p1810
      $region46: #{tpu_custom_call.1} parent=5 // pred_check_branch
        %1813 = sbr.rel (%p1811) target = $region48
      $region47: #{tpu_custom_call.1} parent=5 // pred_region
        %s1814 = ssub.s32 %s17, 2
        // Predicated region
        $region49: #{tpu_custom_call.1} parent=47 // pred_check
          %p1815 = pneg %p114
        $region50: #{tpu_custom_call.1} parent=47 // pred_check_branch
          %1817 = sbr.rel (%p1815) target = $region52
        $region51: #{tpu_custom_call.1} parent=47 // pred_region
          %s1818 = sand.u32 %s99, 1
          %s1819 = scalar_lea.sflag [#allocation6], %s1818
          %s1820 = sand.u32 %s99, 1
          %s1821 = smul.addr %s1820, 8
          %s1822 = scalar_lea.vmem [#allocation9], %s1821
          %1823 = dma.done %s1819, 128
        $region52: #{tpu_custom_call.1} parent=47 // pred_fallthru
          _
      $region48: #{tpu_custom_call.1} parent=5 // pred_fallthru
        _
    $region6: #{tpu_custom_call.1} parent=1 // loop_footer
      %s21 = sadd.s32 1, %s17
    $region7: #{tpu_custom_call.1} parent=1 // loop_footer_branch
      %16 = sbr.rel target = $region3
    $region8: #{tpu_custom_call.1} parent=1 // loop_exit
      _
    %1824 = vsyncpa [#allocation5], 1
    %s1825 = scalar_lea.sflag [#allocation5], 1
    %1826 = vsyncpa %s1825, 1
    %1827 = vsyncpa [#allocation6], 1
    %s1828 = scalar_lea.sflag [#allocation6], 1
    %1829 = vsyncpa %s1828, 1
    %1830 = vsyncpa [#allocation7], 1
    %s1831 = scalar_lea.sflag [#allocation7], 1
    %1832 = vsyncpa %s1831, 1

</llo_original>
